<compile_context>
chip_gen: v7x
topology: tpu7x:2x2x1
jax: 0.10.0
libtpu: 0.0.40
codegen_flags: <defaults>
</compile_context>

<pallas_src>
import jax
import jax.numpy as jnp
from jax import lax
from jax.experimental import pallas as pl
from jax.experimental.pallas import tpu as pltpu

# Small, TPU-friendly synthetic sizes.
B = 16         # batch (split 2 x 8 across the grid -> both v7x TensorCores)
BLK_B = 8      # batch block per grid step (one sublane tile)
T = 8          # source code-sequence length
E = 32         # embedding dim (only appears in param init; fused away)
H = 32         # LSTM hidden dim (4*H = 128 -> one full lane tile)
V = 128        # code vocabulary size
MAX_LEN = 8    # greedy generation length
BOS = 1        # begin-of-sequence code id


def _gates_to_state(gates, c):
    """LSTM cell update.  Gate columns are pre-permuted to (i, f, o, g) so the
    three sigmoid gates occupy one contiguous 96-lane range (1 EUP sweep) and
    tanh(g) is a second dense 32-lane sweep."""
    s = jax.nn.sigmoid(gates[:, :3 * H])          # [B, 3H]
    g = jnp.tanh(gates[:, 3 * H:])                # [B, H]
    i = s[:, 0:H]
    f = s[:, H:2 * H]
    o = s[:, 2 * H:3 * H]
    c_new = f * c + i * g
    h_new = o * jnp.tanh(c_new)
    return h_new, c_new


# ---------------------------------------------------------------------------
# Fused encoder + greedy-decoder kernel.  One grid step == one batch half.
# Embedding lookups are one-hot matmuls against pre-fused (emb @ W_ih) tables.
# ---------------------------------------------------------------------------
def seq2seq_kernel(src_ref, enc_tab_ref, whh_e_ref, b_e_ref,
                   dec_tab_ref, whh_d_ref, b_d_ref,
                   wout_ref, bout_ref,
                   enc_ref, tok_ref):
    vocab_iota = lax.broadcasted_iota(jnp.int32, (BLK_B, V), 1)

    # ----------------------- encoder -----------------------
    # Input projections hoisted out of the recurrence: all T one-hot @ enc_tab
    # matmuls are independent of (h, c), so only h @ W_hh remains on the
    # serial dependency chain.
    xproj = []
    for t in range(T):
        tok_t = src_ref[:, t:t + 1]                              # [BLK_B, 1] i32
        onehot = (tok_t == vocab_iota).astype(jnp.float32)       # [BLK_B, V]
        xproj.append(jnp.dot(onehot, enc_tab_ref[...],
                             preferred_element_type=jnp.float32))  # [BLK_B, 4H]

    h = jnp.zeros((BLK_B, H), jnp.float32)
    c = jnp.zeros((BLK_B, H), jnp.float32)
    for t in range(T):                                           # unrolled recurrence
        gates = (xproj[t]
                 + jnp.dot(h, whh_e_ref[...], preferred_element_type=jnp.float32)
                 + b_e_ref[...])
        h, c = _gates_to_state(gates, c)
        enc_ref[t] = h                                           # static-index store

    # -------------------- greedy decoder --------------------
    # (h, c) carried directly from the encoder in registers (no HBM trip).
    prev = jnp.full((BLK_B, 1), BOS, jnp.int32)
    for step in range(MAX_LEN):                                  # unrolled decode
        onehot = (prev == vocab_iota).astype(jnp.float32)        # [BLK_B, V]
        gates = (jnp.dot(onehot, dec_tab_ref[...], preferred_element_type=jnp.float32)
                 + jnp.dot(h, whh_d_ref[...], preferred_element_type=jnp.float32)
                 + b_d_ref[...])
        h, c = _gates_to_state(gates, c)
        logits = (jnp.dot(h, wout_ref[...], preferred_element_type=jnp.float32)
                  + bout_ref[...])                               # [BLK_B, V]
        # Greedy argmax with first-index tie-breaking.
        max_v = jnp.max(logits, axis=-1, keepdims=True)
        idx = jnp.min(jnp.where(logits == max_v, vocab_iota, V),
                      axis=-1, keepdims=True).astype(jnp.int32)  # [BLK_B, 1]
        prev = idx
        tok_ref[:, step:step + 1] = idx                          # static column store


def seq2seq_generate(codes, fp):
    """codes: [B, T] int32 discrete units -> (enc_hseq [T,B,H], tokens [B,MAX_LEN])."""
    n_blk = B // BLK_B
    return pl.pallas_call(
        seq2seq_kernel,
        out_shape=(
            jax.ShapeDtypeStruct((T, B, H), jnp.float32),
            jax.ShapeDtypeStruct((B, MAX_LEN), jnp.int32),
        ),
        grid_spec=pltpu.PrefetchScalarGridSpec(
            num_scalar_prefetch=0,
            grid=(n_blk,),
            in_specs=[
                pl.BlockSpec((BLK_B, T), lambda b: (b, 0)),       # codes
                pl.BlockSpec((V, 4 * H), lambda b: (0, 0)),       # enc_table
                pl.BlockSpec((H, 4 * H), lambda b: (0, 0)),       # w_hh_e
                pl.BlockSpec((1, 4 * H), lambda b: (0, 0)),       # b_e
                pl.BlockSpec((V, 4 * H), lambda b: (0, 0)),       # dec_table
                pl.BlockSpec((H, 4 * H), lambda b: (0, 0)),       # w_hh_d
                pl.BlockSpec((1, 4 * H), lambda b: (0, 0)),       # b_d
                pl.BlockSpec((H, V), lambda b: (0, 0)),           # w_out
                pl.BlockSpec((1, V), lambda b: (0, 0)),           # b_out
            ],
            out_specs=(
                pl.BlockSpec((T, BLK_B, H), lambda b: (0, b, 0)),
                pl.BlockSpec((BLK_B, MAX_LEN), lambda b: (b, 0)),
            ),
        ),
        compiler_params=pltpu.CompilerParams(
            dimension_semantics=("parallel",)),                   # batch halves -> v7x TCs
    )(codes,
      fp["enc_table"], fp["w_hh_e"], fp["b_e"],
      fp["dec_table"], fp["w_hh_d"], fp["b_d"],
      fp["w_out"], fp["b_out"])


# ---------------------------------------------------------------------------
# Parameter init (PyTorch gate order) + one-time fusion/permutation.
# ---------------------------------------------------------------------------
def init_params(key):
    ks = jax.random.split(key, 8)
    s = 0.1
    return dict(
        emb_enc=jax.random.normal(ks[0], (V, E), jnp.float32) * s,
        w_ih_e=jax.random.normal(ks[1], (E, 4 * H), jnp.float32) * s,
        w_hh_e=jax.random.normal(ks[2], (H, 4 * H), jnp.float32) * s,
        b_e=jnp.zeros((1, 4 * H), jnp.float32),
        emb_dec=jax.random.normal(ks[3], (V, E), jnp.float32) * s,
        w_ih_d=jax.random.normal(ks[4], (E, 4 * H), jnp.float32) * s,
        w_hh_d=jax.random.normal(ks[5], (H, 4 * H), jnp.float32) * s,
        b_d=jnp.zeros((1, 4 * H), jnp.float32),
        w_out=jax.random.normal(ks[6], (H, V), jnp.float32) * s,
        b_out=jnp.zeros((1, V), jnp.float32),
    )


def _reorder_gates(w):
    """PyTorch gate order (i, f, g, o) -> kernel order (i, f, o, g)."""
    return jnp.concatenate(
        [w[..., 0:H], w[..., H:2 * H], w[..., 3 * H:4 * H], w[..., 2 * H:3 * H]],
        axis=-1)


def prepare_fused_params(p):
    """One-time weight prep: fuse embedding with the input projection and
    permute gate columns so the kernel applies nonlinearities lane-densely."""
    return dict(
        enc_table=jnp.dot(p["emb_enc"], _reorder_gates(p["w_ih_e"])),   # [V, 4H]
        w_hh_e=_reorder_gates(p["w_hh_e"]),
        b_e=_reorder_gates(p["b_e"]),
        dec_table=jnp.dot(p["emb_dec"], _reorder_gates(p["w_ih_d"])),   # [V, 4H]
        w_hh_d=_reorder_gates(p["w_hh_d"]),
        b_d=_reorder_gates(p["b_d"]),
        w_out=p["w_out"],
        b_out=p["b_out"],
    )


def generate_waveform_from_code_forward(fused_params, sample):
    """Analog of GenerateWaveformFromCode.forward: {'code': [B,T]} -> hypotheses."""
    codes = sample["code"]                                        # [B, T] int32 units
    enc_hseq, tokens = seq2seq_generate(codes, fused_params)
    hypos = [{"tokens": tokens[b]} for b in range(B)]
    return hypos, enc_hseq

# TODO(synk): vocoder checkpoint / JSON-config loading, duration prediction and
# the CodeHiFiGANVocoder conv-transpose upsampling stack have no clean Pallas
# equivalent here; greedy generation over a synthetic code-conditioned LSTM
# seq2seq stands in for the code->output hot path.


if __name__ == "__main__":
    key = jax.random.PRNGKey(0)
    pkey, dkey = jax.random.split(key)
    params = init_params(pkey)
    fused = prepare_fused_params(params)

    codes = jax.random.randint(dkey, (B, T), 2, V, dtype=jnp.int32)
    sample = {"code": codes}

    hypos, enc_hseq = generate_waveform_from_code_forward(fused, sample)
    jax.block_until_ready(enc_hseq)
    for hyp in hypos:
        jax.block_until_ready(hyp["tokens"])

    assert enc_hseq.shape == (T, B, H)
    assert hypos[0]["tokens"].shape == (MAX_LEN,)
    print("KERNEL_OK")
</pallas_src>

<mosaic_0001>
module attributes {stable_mosaic.version = 11 : i64} {
  func.func @seq2seq_kernel(%arg0: i32, %arg1: memref<8x8xi32, #tpu.memory_space<vmem>>, %arg2: memref<128x128xf32, #tpu.memory_space<vmem>>, %arg3: memref<32x128xf32, #tpu.memory_space<vmem>>, %arg4: memref<1x128xf32, #tpu.memory_space<vmem>>, %arg5: memref<128x128xf32, #tpu.memory_space<vmem>>, %arg6: memref<32x128xf32, #tpu.memory_space<vmem>>, %arg7: memref<1x128xf32, #tpu.memory_space<vmem>>, %arg8: memref<32x128xf32, #tpu.memory_space<vmem>>, %arg9: memref<1x128xf32, #tpu.memory_space<vmem>>, %arg10: memref<8x8x32xf32, #tpu.memory_space<vmem>>, %arg11: memref<8x8xi32, #tpu.memory_space<vmem>>) attributes {dimension_semantics = [#tpu.dimension_semantics<parallel>], iteration_bounds = array<i64: 2>, scalar_prefetch = 0 : i64, scratch_operands = 0 : i64, tpu.core_type = #tpu.core_type<tc>, window_params = [{transform_indices = @transform_0, window_bounds = array<i64: 8, 8>}, {pipeline_mode = #tpu.pipeline_mode<synchronous>, transform_indices = @transform_1, window_bounds = array<i64: 128, 128>}, {pipeline_mode = #tpu.pipeline_mode<synchronous>, transform_indices = @transform_2, window_bounds = array<i64: 32, 128>}, {pipeline_mode = #tpu.pipeline_mode<synchronous>, transform_indices = @transform_3, window_bounds = array<i64: 1, 128>}, {pipeline_mode = #tpu.pipeline_mode<synchronous>, transform_indices = @transform_4, window_bounds = array<i64: 128, 128>}, {pipeline_mode = #tpu.pipeline_mode<synchronous>, transform_indices = @transform_5, window_bounds = array<i64: 32, 128>}, {pipeline_mode = #tpu.pipeline_mode<synchronous>, transform_indices = @transform_6, window_bounds = array<i64: 1, 128>}, {pipeline_mode = #tpu.pipeline_mode<synchronous>, transform_indices = @transform_7, window_bounds = array<i64: 32, 128>}, {pipeline_mode = #tpu.pipeline_mode<synchronous>, transform_indices = @transform_8, window_bounds = array<i64: 1, 128>}, {transform_indices = @transform_9, window_bounds = array<i64: 8, 8, 32>}, {transform_indices = @transform_10, window_bounds = array<i64: 8, 8>}]} {
    %0 = tpu.iota {dimensions = array<i32: 1>} : vector<8x128xi32>
    %c0 = arith.constant 0 : index
    %c0_0 = arith.constant 0 : index
    %1 = vector.load %arg1[%c0, %c0_0] : memref<8x8xi32, #tpu.memory_space<vmem>>, vector<8x1xi32>
    %2 = vector.broadcast %1 : vector<8x1xi32> to vector<8x128xi32>
    %3 = arith.cmpi eq, %2, %0 : vector<8x128xi32>
    %4 = arith.extui %3 : vector<8x128xi1> to vector<8x128xi32>
    %5 = arith.sitofp %4 : vector<8x128xi32> to vector<8x128xf32>
    %c0_1 = arith.constant 0 : index
    %c0_2 = arith.constant 0 : index
    %6 = vector.load %arg2[%c0_1, %c0_2] : memref<128x128xf32, #tpu.memory_space<vmem>>, vector<128x128xf32>
    %cst = arith.constant dense<0.000000e+00> : vector<8x128xf32>
    %7 = tpu.matmul %5, %6, %cst {dimension_numbers = #tpu.dot_dimension_numbers<[1], [0], [0], [1], [0, 0, 1, 1], [], []>} : vector<8x128xf32>, vector<128x128xf32>, vector<8x128xf32> -> vector<8x128xf32>
    %c0_3 = arith.constant 0 : index
    %c1 = arith.constant 1 : index
    %8 = vector.load %arg1[%c0_3, %c1] : memref<8x8xi32, #tpu.memory_space<vmem>>, vector<8x1xi32>
    %9 = vector.broadcast %8 : vector<8x1xi32> to vector<8x128xi32>
    %10 = arith.cmpi eq, %9, %0 : vector<8x128xi32>
    %11 = arith.extui %10 : vector<8x128xi1> to vector<8x128xi32>
    %12 = arith.sitofp %11 : vector<8x128xi32> to vector<8x128xf32>
    %c0_4 = arith.constant 0 : index
    %c0_5 = arith.constant 0 : index
    %13 = vector.load %arg2[%c0_4, %c0_5] : memref<128x128xf32, #tpu.memory_space<vmem>>, vector<128x128xf32>
    %cst_6 = arith.constant dense<0.000000e+00> : vector<8x128xf32>
    %14 = tpu.matmul %12, %13, %cst_6 {dimension_numbers = #tpu.dot_dimension_numbers<[1], [0], [0], [1], [0, 0, 1, 1], [], []>} : vector<8x128xf32>, vector<128x128xf32>, vector<8x128xf32> -> vector<8x128xf32>
    %c0_7 = arith.constant 0 : index
    %c2 = arith.constant 2 : index
    %15 = vector.load %arg1[%c0_7, %c2] : memref<8x8xi32, #tpu.memory_space<vmem>>, vector<8x1xi32>
    %16 = vector.broadcast %15 : vector<8x1xi32> to vector<8x128xi32>
    %17 = arith.cmpi eq, %16, %0 : vector<8x128xi32>
    %18 = arith.extui %17 : vector<8x128xi1> to vector<8x128xi32>
    %19 = arith.sitofp %18 : vector<8x128xi32> to vector<8x128xf32>
    %c0_8 = arith.constant 0 : index
    %c0_9 = arith.constant 0 : index
    %20 = vector.load %arg2[%c0_8, %c0_9] : memref<128x128xf32, #tpu.memory_space<vmem>>, vector<128x128xf32>
    %cst_10 = arith.constant dense<0.000000e+00> : vector<8x128xf32>
    %21 = tpu.matmul %19, %20, %cst_10 {dimension_numbers = #tpu.dot_dimension_numbers<[1], [0], [0], [1], [0, 0, 1, 1], [], []>} : vector<8x128xf32>, vector<128x128xf32>, vector<8x128xf32> -> vector<8x128xf32>
    %c0_11 = arith.constant 0 : index
    %c3 = arith.constant 3 : index
    %22 = vector.load %arg1[%c0_11, %c3] : memref<8x8xi32, #tpu.memory_space<vmem>>, vector<8x1xi32>
    %23 = vector.broadcast %22 : vector<8x1xi32> to vector<8x128xi32>
    %24 = arith.cmpi eq, %23, %0 : vector<8x128xi32>
    %25 = arith.extui %24 : vector<8x128xi1> to vector<8x128xi32>
    %26 = arith.sitofp %25 : vector<8x128xi32> to vector<8x128xf32>
    %c0_12 = arith.constant 0 : index
    %c0_13 = arith.constant 0 : index
    %27 = vector.load %arg2[%c0_12, %c0_13] : memref<128x128xf32, #tpu.memory_space<vmem>>, vector<128x128xf32>
    %cst_14 = arith.constant dense<0.000000e+00> : vector<8x128xf32>
    %28 = tpu.matmul %26, %27, %cst_14 {dimension_numbers = #tpu.dot_dimension_numbers<[1], [0], [0], [1], [0, 0, 1, 1], [], []>} : vector<8x128xf32>, vector<128x128xf32>, vector<8x128xf32> -> vector<8x128xf32>
    %c0_15 = arith.constant 0 : index
    %c4 = arith.constant 4 : index
    %29 = vector.load %arg1[%c0_15, %c4] : memref<8x8xi32, #tpu.memory_space<vmem>>, vector<8x1xi32>
    %30 = vector.broadcast %29 : vector<8x1xi32> to vector<8x128xi32>
    %31 = arith.cmpi eq, %30, %0 : vector<8x128xi32>
    %32 = arith.extui %31 : vector<8x128xi1> to vector<8x128xi32>
    %33 = arith.sitofp %32 : vector<8x128xi32> to vector<8x128xf32>
    %c0_16 = arith.constant 0 : index
    %c0_17 = arith.constant 0 : index
    %34 = vector.load %arg2[%c0_16, %c0_17] : memref<128x128xf32, #tpu.memory_space<vmem>>, vector<128x128xf32>
    %cst_18 = arith.constant dense<0.000000e+00> : vector<8x128xf32>
    %35 = tpu.matmul %33, %34, %cst_18 {dimension_numbers = #tpu.dot_dimension_numbers<[1], [0], [0], [1], [0, 0, 1, 1], [], []>} : vector<8x128xf32>, vector<128x128xf32>, vector<8x128xf32> -> vector<8x128xf32>
    %c0_19 = arith.constant 0 : index
    %c5 = arith.constant 5 : index
    %36 = vector.load %arg1[%c0_19, %c5] : memref<8x8xi32, #tpu.memory_space<vmem>>, vector<8x1xi32>
    %37 = vector.broadcast %36 : vector<8x1xi32> to vector<8x128xi32>
    %38 = arith.cmpi eq, %37, %0 : vector<8x128xi32>
    %39 = arith.extui %38 : vector<8x128xi1> to vector<8x128xi32>
    %40 = arith.sitofp %39 : vector<8x128xi32> to vector<8x128xf32>
    %c0_20 = arith.constant 0 : index
    %c0_21 = arith.constant 0 : index
    %41 = vector.load %arg2[%c0_20, %c0_21] : memref<128x128xf32, #tpu.memory_space<vmem>>, vector<128x128xf32>
    %cst_22 = arith.constant dense<0.000000e+00> : vector<8x128xf32>
    %42 = tpu.matmul %40, %41, %cst_22 {dimension_numbers = #tpu.dot_dimension_numbers<[1], [0], [0], [1], [0, 0, 1, 1], [], []>} : vector<8x128xf32>, vector<128x128xf32>, vector<8x128xf32> -> vector<8x128xf32>
    %c0_23 = arith.constant 0 : index
    %c6 = arith.constant 6 : index
    %43 = vector.load %arg1[%c0_23, %c6] : memref<8x8xi32, #tpu.memory_space<vmem>>, vector<8x1xi32>
    %44 = vector.broadcast %43 : vector<8x1xi32> to vector<8x128xi32>
    %45 = arith.cmpi eq, %44, %0 : vector<8x128xi32>
    %46 = arith.extui %45 : vector<8x128xi1> to vector<8x128xi32>
    %47 = arith.sitofp %46 : vector<8x128xi32> to vector<8x128xf32>
    %c0_24 = arith.constant 0 : index
    %c0_25 = arith.constant 0 : index
    %48 = vector.load %arg2[%c0_24, %c0_25] : memref<128x128xf32, #tpu.memory_space<vmem>>, vector<128x128xf32>
    %cst_26 = arith.constant dense<0.000000e+00> : vector<8x128xf32>
    %49 = tpu.matmul %47, %48, %cst_26 {dimension_numbers = #tpu.dot_dimension_numbers<[1], [0], [0], [1], [0, 0, 1, 1], [], []>} : vector<8x128xf32>, vector<128x128xf32>, vector<8x128xf32> -> vector<8x128xf32>
    %c0_27 = arith.constant 0 : index
    %c7 = arith.constant 7 : index
    %50 = vector.load %arg1[%c0_27, %c7] : memref<8x8xi32, #tpu.memory_space<vmem>>, vector<8x1xi32>
    %51 = vector.broadcast %50 : vector<8x1xi32> to vector<8x128xi32>
    %52 = arith.cmpi eq, %51, %0 : vector<8x128xi32>
    %53 = arith.extui %52 : vector<8x128xi1> to vector<8x128xi32>
    %54 = arith.sitofp %53 : vector<8x128xi32> to vector<8x128xf32>
    %c0_28 = arith.constant 0 : index
    %c0_29 = arith.constant 0 : index
    %55 = vector.load %arg2[%c0_28, %c0_29] : memref<128x128xf32, #tpu.memory_space<vmem>>, vector<128x128xf32>
    %cst_30 = arith.constant dense<0.000000e+00> : vector<8x128xf32>
    %56 = tpu.matmul %54, %55, %cst_30 {dimension_numbers = #tpu.dot_dimension_numbers<[1], [0], [0], [1], [0, 0, 1, 1], [], []>} : vector<8x128xf32>, vector<128x128xf32>, vector<8x128xf32> -> vector<8x128xf32>
    %cst_31 = arith.constant 0.000000e+00 : f32
    %57 = vector.broadcast %cst_31 : f32 to vector<8x32xf32>
    %cst_32 = arith.constant 0.000000e+00 : f32
    %58 = vector.broadcast %cst_32 : f32 to vector<8x32xf32>
    %c0_33 = arith.constant 0 : index
    %c0_34 = arith.constant 0 : index
    %59 = vector.load %arg3[%c0_33, %c0_34] : memref<32x128xf32, #tpu.memory_space<vmem>>, vector<32x128xf32>
    %cst_35 = arith.constant dense<0.000000e+00> : vector<8x128xf32>
    %60 = tpu.matmul %57, %59, %cst_35 {dimension_numbers = #tpu.dot_dimension_numbers<[1], [0], [0], [1], [0, 0, 1, 1], [], []>} : vector<8x32xf32>, vector<32x128xf32>, vector<8x128xf32> -> vector<8x128xf32>
    %61 = arith.addf %7, %60 : vector<8x128xf32>
    %c0_36 = arith.constant 0 : index
    %c0_37 = arith.constant 0 : index
    %62 = vector.load %arg4[%c0_36, %c0_37] : memref<1x128xf32, #tpu.memory_space<vmem>>, vector<1x128xf32>
    %63 = vector.broadcast %62 : vector<1x128xf32> to vector<8x128xf32>
    %64 = arith.addf %61, %63 : vector<8x128xf32>
    %65 = vector.extract_strided_slice %64 {offsets = [0, 0], sizes = [8, 96], strides = [1, 1]} : vector<8x128xf32> to vector<8x96xf32>
    %66 = arith.negf %65 : vector<8x96xf32>
    %67 = math.exp %66 : vector<8x96xf32>
    %cst_38 = arith.constant 1.000000e+00 : f32
    %68 = vector.broadcast %cst_38 : f32 to vector<8x96xf32>
    %69 = arith.addf %68, %67 : vector<8x96xf32>
    %70 = arith.divf %68, %69 : vector<8x96xf32>
    %71 = vector.extract_strided_slice %64 {offsets = [0, 96], sizes = [8, 32], strides = [1, 1]} : vector<8x128xf32> to vector<8x32xf32>
    %72 = math.tanh %71 : vector<8x32xf32>
    %73 = vector.extract_strided_slice %70 {offsets = [0, 0], sizes = [8, 32], strides = [1, 1]} : vector<8x96xf32> to vector<8x32xf32>
    %74 = vector.extract_strided_slice %70 {offsets = [0, 32], sizes = [8, 32], strides = [1, 1]} : vector<8x96xf32> to vector<8x32xf32>
    %75 = vector.extract_strided_slice %70 {offsets = [0, 64], sizes = [8, 32], strides = [1, 1]} : vector<8x96xf32> to vector<8x32xf32>
    %76 = arith.mulf %74, %58 : vector<8x32xf32>
    %77 = arith.mulf %73, %72 : vector<8x32xf32>
    %78 = arith.addf %76, %77 : vector<8x32xf32>
    %79 = math.tanh %78 : vector<8x32xf32>
    %80 = arith.mulf %75, %79 : vector<8x32xf32>
    %c0_39 = arith.constant 0 : index
    %c0_40 = arith.constant 0 : index
    %c0_41 = arith.constant 0 : index
    %81 = vector.load %arg10[%c0_39, %c0_40, %c0_41] : memref<8x8x32xf32, #tpu.memory_space<vmem>>, vector<1x8x32xf32>
    %82 = vector.shape_cast %81 : vector<1x8x32xf32> to vector<8x32xf32>
    %83 = vector.shape_cast %80 : vector<8x32xf32> to vector<1x8x32xf32>
    tpu.vector_store %arg10[%c0_39, %c0_40, %c0_41], %83 {strides = array<i32>} : memref<8x8x32xf32, #tpu.memory_space<vmem>>, vector<1x8x32xf32>,
    %c0_42 = arith.constant 0 : index
    %c0_43 = arith.constant 0 : index
    %84 = vector.load %arg3[%c0_42, %c0_43] : memref<32x128xf32, #tpu.memory_space<vmem>>, vector<32x128xf32>
    %cst_44 = arith.constant dense<0.000000e+00> : vector<8x128xf32>
    %85 = tpu.matmul %80, %84, %cst_44 {dimension_numbers = #tpu.dot_dimension_numbers<[1], [0], [0], [1], [0, 0, 1, 1], [], []>} : vector<8x32xf32>, vector<32x128xf32>, vector<8x128xf32> -> vector<8x128xf32>
    %86 = arith.addf %14, %85 : vector<8x128xf32>
    %c0_45 = arith.constant 0 : index
    %c0_46 = arith.constant 0 : index
    %87 = vector.load %arg4[%c0_45, %c0_46] : memref<1x128xf32, #tpu.memory_space<vmem>>, vector<1x128xf32>
    %88 = vector.broadcast %87 : vector<1x128xf32> to vector<8x128xf32>
    %89 = arith.addf %86, %88 : vector<8x128xf32>
    %90 = vector.extract_strided_slice %89 {offsets = [0, 0], sizes = [8, 96], strides = [1, 1]} : vector<8x128xf32> to vector<8x96xf32>
    %91 = arith.negf %90 : vector<8x96xf32>
    %92 = math.exp %91 : vector<8x96xf32>
    %cst_47 = arith.constant 1.000000e+00 : f32
    %93 = vector.broadcast %cst_47 : f32 to vector<8x96xf32>
    %94 = arith.addf %93, %92 : vector<8x96xf32>
    %95 = arith.divf %93, %94 : vector<8x96xf32>
    %96 = vector.extract_strided_slice %89 {offsets = [0, 96], sizes = [8, 32], strides = [1, 1]} : vector<8x128xf32> to vector<8x32xf32>
    %97 = math.tanh %96 : vector<8x32xf32>
    %98 = vector.extract_strided_slice %95 {offsets = [0, 0], sizes = [8, 32], strides = [1, 1]} : vector<8x96xf32> to vector<8x32xf32>
    %99 = vector.extract_strided_slice %95 {offsets = [0, 32], sizes = [8, 32], strides = [1, 1]} : vector<8x96xf32> to vector<8x32xf32>
    %100 = vector.extract_strided_slice %95 {offsets = [0, 64], sizes = [8, 32], strides = [1, 1]} : vector<8x96xf32> to vector<8x32xf32>
    %101 = arith.mulf %99, %78 : vector<8x32xf32>
    %102 = arith.mulf %98, %97 : vector<8x32xf32>
    %103 = arith.addf %101, %102 : vector<8x32xf32>
    %104 = math.tanh %103 : vector<8x32xf32>
    %105 = arith.mulf %100, %104 : vector<8x32xf32>
    %c1_48 = arith.constant 1 : index
    %c0_49 = arith.constant 0 : index
    %c0_50 = arith.constant 0 : index
    %106 = vector.load %arg10[%c1_48, %c0_49, %c0_50] : memref<8x8x32xf32, #tpu.memory_space<vmem>>, vector<1x8x32xf32>
    %107 = vector.shape_cast %106 : vector<1x8x32xf32> to vector<8x32xf32>
    %108 = vector.shape_cast %105 : vector<8x32xf32> to vector<1x8x32xf32>
    tpu.vector_store %arg10[%c1_48, %c0_49, %c0_50], %108 {strides = array<i32>} : memref<8x8x32xf32, #tpu.memory_space<vmem>>, vector<1x8x32xf32>,
    %c0_51 = arith.constant 0 : index
    %c0_52 = arith.constant 0 : index
    %109 = vector.load %arg3[%c0_51, %c0_52] : memref<32x128xf32, #tpu.memory_space<vmem>>, vector<32x128xf32>
    %cst_53 = arith.constant dense<0.000000e+00> : vector<8x128xf32>
    %110 = tpu.matmul %105, %109, %cst_53 {dimension_numbers = #tpu.dot_dimension_numbers<[1], [0], [0], [1], [0, 0, 1, 1], [], []>} : vector<8x32xf32>, vector<32x128xf32>, vector<8x128xf32> -> vector<8x128xf32>
    %111 = arith.addf %21, %110 : vector<8x128xf32>
    %c0_54 = arith.constant 0 : index
    %c0_55 = arith.constant 0 : index
    %112 = vector.load %arg4[%c0_54, %c0_55] : memref<1x128xf32, #tpu.memory_space<vmem>>, vector<1x128xf32>
    %113 = vector.broadcast %112 : vector<1x128xf32> to vector<8x128xf32>
    %114 = arith.addf %111, %113 : vector<8x128xf32>
    %115 = vector.extract_strided_slice %114 {offsets = [0, 0], sizes = [8, 96], strides = [1, 1]} : vector<8x128xf32> to vector<8x96xf32>
    %116 = arith.negf %115 : vector<8x96xf32>
    %117 = math.exp %116 : vector<8x96xf32>
    %cst_56 = arith.constant 1.000000e+00 : f32
    %118 = vector.broadcast %cst_56 : f32 to vector<8x96xf32>
    %119 = arith.addf %118, %117 : vector<8x96xf32>
    %120 = arith.divf %118, %119 : vector<8x96xf32>
    %121 = vector.extract_strided_slice %114 {offsets = [0, 96], sizes = [8, 32], strides = [1, 1]} : vector<8x128xf32> to vector<8x32xf32>
    %122 = math.tanh %121 : vector<8x32xf32>
    %123 = vector.extract_strided_slice %120 {offsets = [0, 0], sizes = [8, 32], strides = [1, 1]} : vector<8x96xf32> to vector<8x32xf32>
    %124 = vector.extract_strided_slice %120 {offsets = [0, 32], sizes = [8, 32], strides = [1, 1]} : vector<8x96xf32> to vector<8x32xf32>
    %125 = vector.extract_strided_slice %120 {offsets = [0, 64], sizes = [8, 32], strides = [1, 1]} : vector<8x96xf32> to vector<8x32xf32>
    %126 = arith.mulf %124, %103 : vector<8x32xf32>
    %127 = arith.mulf %123, %122 : vector<8x32xf32>
    %128 = arith.addf %126, %127 : vector<8x32xf32>
    %129 = math.tanh %128 : vector<8x32xf32>
    %130 = arith.mulf %125, %129 : vector<8x32xf32>
    %c2_57 = arith.constant 2 : index
    %c0_58 = arith.constant 0 : index
    %c0_59 = arith.constant 0 : index
    %131 = vector.load %arg10[%c2_57, %c0_58, %c0_59] : memref<8x8x32xf32, #tpu.memory_space<vmem>>, vector<1x8x32xf32>
    %132 = vector.shape_cast %131 : vector<1x8x32xf32> to vector<8x32xf32>
    %133 = vector.shape_cast %130 : vector<8x32xf32> to vector<1x8x32xf32>
    tpu.vector_store %arg10[%c2_57, %c0_58, %c0_59], %133 {strides = array<i32>} : memref<8x8x32xf32, #tpu.memory_space<vmem>>, vector<1x8x32xf32>,
    %c0_60 = arith.constant 0 : index
    %c0_61 = arith.constant 0 : index
    %134 = vector.load %arg3[%c0_60, %c0_61] : memref<32x128xf32, #tpu.memory_space<vmem>>, vector<32x128xf32>
    %cst_62 = arith.constant dense<0.000000e+00> : vector<8x128xf32>
    %135 = tpu.matmul %130, %134, %cst_62 {dimension_numbers = #tpu.dot_dimension_numbers<[1], [0], [0], [1], [0, 0, 1, 1], [], []>} : vector<8x32xf32>, vector<32x128xf32>, vector<8x128xf32> -> vector<8x128xf32>
    %136 = arith.addf %28, %135 : vector<8x128xf32>
    %c0_63 = arith.constant 0 : index
    %c0_64 = arith.constant 0 : index
    %137 = vector.load %arg4[%c0_63, %c0_64] : memref<1x128xf32, #tpu.memory_space<vmem>>, vector<1x128xf32>
    %138 = vector.broadcast %137 : vector<1x128xf32> to vector<8x128xf32>
    %139 = arith.addf %136, %138 : vector<8x128xf32>
    %140 = vector.extract_strided_slice %139 {offsets = [0, 0], sizes = [8, 96], strides = [1, 1]} : vector<8x128xf32> to vector<8x96xf32>
    %141 = arith.negf %140 : vector<8x96xf32>
    %142 = math.exp %141 : vector<8x96xf32>
    %cst_65 = arith.constant 1.000000e+00 : f32
    %143 = vector.broadcast %cst_65 : f32 to vector<8x96xf32>
    %144 = arith.addf %143, %142 : vector<8x96xf32>
    %145 = arith.divf %143, %144 : vector<8x96xf32>
    %146 = vector.extract_strided_slice %139 {offsets = [0, 96], sizes = [8, 32], strides = [1, 1]} : vector<8x128xf32> to vector<8x32xf32>
    %147 = math.tanh %146 : vector<8x32xf32>
    %148 = vector.extract_strided_slice %145 {offsets = [0, 0], sizes = [8, 32], strides = [1, 1]} : vector<8x96xf32> to vector<8x32xf32>
    %149 = vector.extract_strided_slice %145 {offsets = [0, 32], sizes = [8, 32], strides = [1, 1]} : vector<8x96xf32> to vector<8x32xf32>
    %150 = vector.extract_strided_slice %145 {offsets = [0, 64], sizes = [8, 32], strides = [1, 1]} : vector<8x96xf32> to vector<8x32xf32>
    %151 = arith.mulf %149, %128 : vector<8x32xf32>
    %152 = arith.mulf %148, %147 : vector<8x32xf32>
    %153 = arith.addf %151, %152 : vector<8x32xf32>
    %154 = math.tanh %153 : vector<8x32xf32>
    %155 = arith.mulf %150, %154 : vector<8x32xf32>
    %c3_66 = arith.constant 3 : index
    %c0_67 = arith.constant 0 : index
    %c0_68 = arith.constant 0 : index
    %156 = vector.load %arg10[%c3_66, %c0_67, %c0_68] : memref<8x8x32xf32, #tpu.memory_space<vmem>>, vector<1x8x32xf32>
    %157 = vector.shape_cast %156 : vector<1x8x32xf32> to vector<8x32xf32>
    %158 = vector.shape_cast %155 : vector<8x32xf32> to vector<1x8x32xf32>
    tpu.vector_store %arg10[%c3_66, %c0_67, %c0_68], %158 {strides = array<i32>} : memref<8x8x32xf32, #tpu.memory_space<vmem>>, vector<1x8x32xf32>,
    %c0_69 = arith.constant 0 : index
    %c0_70 = arith.constant 0 : index
    %159 = vector.load %arg3[%c0_69, %c0_70] : memref<32x128xf32, #tpu.memory_space<vmem>>, vector<32x128xf32>
    %cst_71 = arith.constant dense<0.000000e+00> : vector<8x128xf32>
    %160 = tpu.matmul %155, %159, %cst_71 {dimension_numbers = #tpu.dot_dimension_numbers<[1], [0], [0], [1], [0, 0, 1, 1], [], []>} : vector<8x32xf32>, vector<32x128xf32>, vector<8x128xf32> -> vector<8x128xf32>
    %161 = arith.addf %35, %160 : vector<8x128xf32>
    %c0_72 = arith.constant 0 : index
    %c0_73 = arith.constant 0 : index
    %162 = vector.load %arg4[%c0_72, %c0_73] : memref<1x128xf32, #tpu.memory_space<vmem>>, vector<1x128xf32>
    %163 = vector.broadcast %162 : vector<1x128xf32> to vector<8x128xf32>
    %164 = arith.addf %161, %163 : vector<8x128xf32>
    %165 = vector.extract_strided_slice %164 {offsets = [0, 0], sizes = [8, 96], strides = [1, 1]} : vector<8x128xf32> to vector<8x96xf32>
    %166 = arith.negf %165 : vector<8x96xf32>
    %167 = math.exp %166 : vector<8x96xf32>
    %cst_74 = arith.constant 1.000000e+00 : f32
    %168 = vector.broadcast %cst_74 : f32 to vector<8x96xf32>
    %169 = arith.addf %168, %167 : vector<8x96xf32>
    %170 = arith.divf %168, %169 : vector<8x96xf32>
    %171 = vector.extract_strided_slice %164 {offsets = [0, 96], sizes = [8, 32], strides = [1, 1]} : vector<8x128xf32> to vector<8x32xf32>
    %172 = math.tanh %171 : vector<8x32xf32>
    %173 = vector.extract_strided_slice %170 {offsets = [0, 0], sizes = [8, 32], strides = [1, 1]} : vector<8x96xf32> to vector<8x32xf32>
    %174 = vector.extract_strided_slice %170 {offsets = [0, 32], sizes = [8, 32], strides = [1, 1]} : vector<8x96xf32> to vector<8x32xf32>
    %175 = vector.extract_strided_slice %170 {offsets = [0, 64], sizes = [8, 32], strides = [1, 1]} : vector<8x96xf32> to vector<8x32xf32>
    %176 = arith.mulf %174, %153 : vector<8x32xf32>
    %177 = arith.mulf %173, %172 : vector<8x32xf32>
    %178 = arith.addf %176, %177 : vector<8x32xf32>
    %179 = math.tanh %178 : vector<8x32xf32>
    %180 = arith.mulf %175, %179 : vector<8x32xf32>
    %c4_75 = arith.constant 4 : index
    %c0_76 = arith.constant 0 : index
    %c0_77 = arith.constant 0 : index
    %181 = vector.load %arg10[%c4_75, %c0_76, %c0_77] : memref<8x8x32xf32, #tpu.memory_space<vmem>>, vector<1x8x32xf32>
    %182 = vector.shape_cast %181 : vector<1x8x32xf32> to vector<8x32xf32>
    %183 = vector.shape_cast %180 : vector<8x32xf32> to vector<1x8x32xf32>
    tpu.vector_store %arg10[%c4_75, %c0_76, %c0_77], %183 {strides = array<i32>} : memref<8x8x32xf32, #tpu.memory_space<vmem>>, vector<1x8x32xf32>,
    %c0_78 = arith.constant 0 : index
    %c0_79 = arith.constant 0 : index
    %184 = vector.load %arg3[%c0_78, %c0_79] : memref<32x128xf32, #tpu.memory_space<vmem>>, vector<32x128xf32>
    %cst_80 = arith.constant dense<0.000000e+00> : vector<8x128xf32>
    %185 = tpu.matmul %180, %184, %cst_80 {dimension_numbers = #tpu.dot_dimension_numbers<[1], [0], [0], [1], [0, 0, 1, 1], [], []>} : vector<8x32xf32>, vector<32x128xf32>, vector<8x128xf32> -> vector<8x128xf32>
    %186 = arith.addf %42, %185 : vector<8x128xf32>
    %c0_81 = arith.constant 0 : index
    %c0_82 = arith.constant 0 : index
    %187 = vector.load %arg4[%c0_81, %c0_82] : memref<1x128xf32, #tpu.memory_space<vmem>>, vector<1x128xf32>
    %188 = vector.broadcast %187 : vector<1x128xf32> to vector<8x128xf32>
    %189 = arith.addf %186, %188 : vector<8x128xf32>
    %190 = vector.extract_strided_slice %189 {offsets = [0, 0], sizes = [8, 96], strides = [1, 1]} : vector<8x128xf32> to vector<8x96xf32>
    %191 = arith.negf %190 : vector<8x96xf32>
    %192 = math.exp %191 : vector<8x96xf32>
    %cst_83 = arith.constant 1.000000e+00 : f32
    %193 = vector.broadcast %cst_83 : f32 to vector<8x96xf32>
    %194 = arith.addf %193, %192 : vector<8x96xf32>
    %195 = arith.divf %193, %194 : vector<8x96xf32>
    %196 = vector.extract_strided_slice %189 {offsets = [0, 96], sizes = [8, 32], strides = [1, 1]} : vector<8x128xf32> to vector<8x32xf32>
    %197 = math.tanh %196 : vector<8x32xf32>
    %198 = vector.extract_strided_slice %195 {offsets = [0, 0], sizes = [8, 32], strides = [1, 1]} : vector<8x96xf32> to vector<8x32xf32>
    %199 = vector.extract_strided_slice %195 {offsets = [0, 32], sizes = [8, 32], strides = [1, 1]} : vector<8x96xf32> to vector<8x32xf32>
    %200 = vector.extract_strided_slice %195 {offsets = [0, 64], sizes = [8, 32], strides = [1, 1]} : vector<8x96xf32> to vector<8x32xf32>
    %201 = arith.mulf %199, %178 : vector<8x32xf32>
    %202 = arith.mulf %198, %197 : vector<8x32xf32>
    %203 = arith.addf %201, %202 : vector<8x32xf32>
    %204 = math.tanh %203 : vector<8x32xf32>
    %205 = arith.mulf %200, %204 : vector<8x32xf32>
    %c5_84 = arith.constant 5 : index
    %c0_85 = arith.constant 0 : index
    %c0_86 = arith.constant 0 : index
    %206 = vector.load %arg10[%c5_84, %c0_85, %c0_86] : memref<8x8x32xf32, #tpu.memory_space<vmem>>, vector<1x8x32xf32>
    %207 = vector.shape_cast %206 : vector<1x8x32xf32> to vector<8x32xf32>
    %208 = vector.shape_cast %205 : vector<8x32xf32> to vector<1x8x32xf32>
    tpu.vector_store %arg10[%c5_84, %c0_85, %c0_86], %208 {strides = array<i32>} : memref<8x8x32xf32, #tpu.memory_space<vmem>>, vector<1x8x32xf32>,
    %c0_87 = arith.constant 0 : index
    %c0_88 = arith.constant 0 : index
    %209 = vector.load %arg3[%c0_87, %c0_88] : memref<32x128xf32, #tpu.memory_space<vmem>>, vector<32x128xf32>
    %cst_89 = arith.constant dense<0.000000e+00> : vector<8x128xf32>
    %210 = tpu.matmul %205, %209, %cst_89 {dimension_numbers = #tpu.dot_dimension_numbers<[1], [0], [0], [1], [0, 0, 1, 1], [], []>} : vector<8x32xf32>, vector<32x128xf32>, vector<8x128xf32> -> vector<8x128xf32>
    %211 = arith.addf %49, %210 : vector<8x128xf32>
    %c0_90 = arith.constant 0 : index
    %c0_91 = arith.constant 0 : index
    %212 = vector.load %arg4[%c0_90, %c0_91] : memref<1x128xf32, #tpu.memory_space<vmem>>, vector<1x128xf32>
    %213 = vector.broadcast %212 : vector<1x128xf32> to vector<8x128xf32>
    %214 = arith.addf %211, %213 : vector<8x128xf32>
    %215 = vector.extract_strided_slice %214 {offsets = [0, 0], sizes = [8, 96], strides = [1, 1]} : vector<8x128xf32> to vector<8x96xf32>
    %216 = arith.negf %215 : vector<8x96xf32>
    %217 = math.exp %216 : vector<8x96xf32>
    %cst_92 = arith.constant 1.000000e+00 : f32
    %218 = vector.broadcast %cst_92 : f32 to vector<8x96xf32>
    %219 = arith.addf %218, %217 : vector<8x96xf32>
    %220 = arith.divf %218, %219 : vector<8x96xf32>
    %221 = vector.extract_strided_slice %214 {offsets = [0, 96], sizes = [8, 32], strides = [1, 1]} : vector<8x128xf32> to vector<8x32xf32>
    %222 = math.tanh %221 : vector<8x32xf32>
    %223 = vector.extract_strided_slice %220 {offsets = [0, 0], sizes = [8, 32], strides = [1, 1]} : vector<8x96xf32> to vector<8x32xf32>
    %224 = vector.extract_strided_slice %220 {offsets = [0, 32], sizes = [8, 32], strides = [1, 1]} : vector<8x96xf32> to vector<8x32xf32>
    %225 = vector.extract_strided_slice %220 {offsets = [0, 64], sizes = [8, 32], strides = [1, 1]} : vector<8x96xf32> to vector<8x32xf32>
    %226 = arith.mulf %224, %203 : vector<8x32xf32>
    %227 = arith.mulf %223, %222 : vector<8x32xf32>
    %228 = arith.addf %226, %227 : vector<8x32xf32>
    %229 = math.tanh %228 : vector<8x32xf32>
    %230 = arith.mulf %225, %229 : vector<8x32xf32>
    %c6_93 = arith.constant 6 : index
    %c0_94 = arith.constant 0 : index
    %c0_95 = arith.constant 0 : index
    %231 = vector.load %arg10[%c6_93, %c0_94, %c0_95] : memref<8x8x32xf32, #tpu.memory_space<vmem>>, vector<1x8x32xf32>
    %232 = vector.shape_cast %231 : vector<1x8x32xf32> to vector<8x32xf32>
    %233 = vector.shape_cast %230 : vector<8x32xf32> to vector<1x8x32xf32>
    tpu.vector_store %arg10[%c6_93, %c0_94, %c0_95], %233 {strides = array<i32>} : memref<8x8x32xf32, #tpu.memory_space<vmem>>, vector<1x8x32xf32>,
    %c0_96 = arith.constant 0 : index
    %c0_97 = arith.constant 0 : index
    %234 = vector.load %arg3[%c0_96, %c0_97] : memref<32x128xf32, #tpu.memory_space<vmem>>, vector<32x128xf32>
    %cst_98 = arith.constant dense<0.000000e+00> : vector<8x128xf32>
    %235 = tpu.matmul %230, %234, %cst_98 {dimension_numbers = #tpu.dot_dimension_numbers<[1], [0], [0], [1], [0, 0, 1, 1], [], []>} : vector<8x32xf32>, vector<32x128xf32>, vector<8x128xf32> -> vector<8x128xf32>
    %236 = arith.addf %56, %235 : vector<8x128xf32>
    %c0_99 = arith.constant 0 : index
    %c0_100 = arith.constant 0 : index
    %237 = vector.load %arg4[%c0_99, %c0_100] : memref<1x128xf32, #tpu.memory_space<vmem>>, vector<1x128xf32>
    %238 = vector.broadcast %237 : vector<1x128xf32> to vector<8x128xf32>
    %239 = arith.addf %236, %238 : vector<8x128xf32>
    %240 = vector.extract_strided_slice %239 {offsets = [0, 0], sizes = [8, 96], strides = [1, 1]} : vector<8x128xf32> to vector<8x96xf32>
    %241 = arith.negf %240 : vector<8x96xf32>
    %242 = math.exp %241 : vector<8x96xf32>
    %cst_101 = arith.constant 1.000000e+00 : f32
    %243 = vector.broadcast %cst_101 : f32 to vector<8x96xf32>
    %244 = arith.addf %243, %242 : vector<8x96xf32>
    %245 = arith.divf %243, %244 : vector<8x96xf32>
    %246 = vector.extract_strided_slice %239 {offsets = [0, 96], sizes = [8, 32], strides = [1, 1]} : vector<8x128xf32> to vector<8x32xf32>
    %247 = math.tanh %246 : vector<8x32xf32>
    %248 = vector.extract_strided_slice %245 {offsets = [0, 0], sizes = [8, 32], strides = [1, 1]} : vector<8x96xf32> to vector<8x32xf32>
    %249 = vector.extract_strided_slice %245 {offsets = [0, 32], sizes = [8, 32], strides = [1, 1]} : vector<8x96xf32> to vector<8x32xf32>
    %250 = vector.extract_strided_slice %245 {offsets = [0, 64], sizes = [8, 32], strides = [1, 1]} : vector<8x96xf32> to vector<8x32xf32>
    %251 = arith.mulf %249, %228 : vector<8x32xf32>
    %252 = arith.mulf %248, %247 : vector<8x32xf32>
    %253 = arith.addf %251, %252 : vector<8x32xf32>
    %254 = math.tanh %253 : vector<8x32xf32>
    %255 = arith.mulf %250, %254 : vector<8x32xf32>
    %c7_102 = arith.constant 7 : index
    %c0_103 = arith.constant 0 : index
    %c0_104 = arith.constant 0 : index
    %256 = vector.load %arg10[%c7_102, %c0_103, %c0_104] : memref<8x8x32xf32, #tpu.memory_space<vmem>>, vector<1x8x32xf32>
    %257 = vector.shape_cast %256 : vector<1x8x32xf32> to vector<8x32xf32>
    %258 = vector.shape_cast %255 : vector<8x32xf32> to vector<1x8x32xf32>
    tpu.vector_store %arg10[%c7_102, %c0_103, %c0_104], %258 {strides = array<i32>} : memref<8x8x32xf32, #tpu.memory_space<vmem>>, vector<1x8x32xf32>,
    %c1_i32 = arith.constant 1 : i32
    %259 = vector.broadcast %c1_i32 : i32 to vector<8x1xi32>
    %260 = vector.broadcast %259 : vector<8x1xi32> to vector<8x128xi32>
    %261 = arith.cmpi eq, %260, %0 : vector<8x128xi32>
    %262 = arith.extui %261 : vector<8x128xi1> to vector<8x128xi32>
    %263 = arith.sitofp %262 : vector<8x128xi32> to vector<8x128xf32>
    %c0_105 = arith.constant 0 : index
    %c0_106 = arith.constant 0 : index
    %264 = vector.load %arg5[%c0_105, %c0_106] : memref<128x128xf32, #tpu.memory_space<vmem>>, vector<128x128xf32>
    %cst_107 = arith.constant dense<0.000000e+00> : vector<8x128xf32>
    %265 = tpu.matmul %263, %264, %cst_107 {dimension_numbers = #tpu.dot_dimension_numbers<[1], [0], [0], [1], [0, 0, 1, 1], [], []>} : vector<8x128xf32>, vector<128x128xf32>, vector<8x128xf32> -> vector<8x128xf32>
    %c0_108 = arith.constant 0 : index
    %c0_109 = arith.constant 0 : index
    %266 = vector.load %arg6[%c0_108, %c0_109] : memref<32x128xf32, #tpu.memory_space<vmem>>, vector<32x128xf32>
    %cst_110 = arith.constant dense<0.000000e+00> : vector<8x128xf32>
    %267 = tpu.matmul %255, %266, %cst_110 {dimension_numbers = #tpu.dot_dimension_numbers<[1], [0], [0], [1], [0, 0, 1, 1], [], []>} : vector<8x32xf32>, vector<32x128xf32>, vector<8x128xf32> -> vector<8x128xf32>
    %268 = arith.addf %265, %267 : vector<8x128xf32>
    %c0_111 = arith.constant 0 : index
    %c0_112 = arith.constant 0 : index
    %269 = vector.load %arg7[%c0_111, %c0_112] : memref<1x128xf32, #tpu.memory_space<vmem>>, vector<1x128xf32>
    %270 = vector.broadcast %269 : vector<1x128xf32> to vector<8x128xf32>
    %271 = arith.addf %268, %270 : vector<8x128xf32>
    %272 = vector.extract_strided_slice %271 {offsets = [0, 0], sizes = [8, 96], strides = [1, 1]} : vector<8x128xf32> to vector<8x96xf32>
    %273 = arith.negf %272 : vector<8x96xf32>
    %274 = math.exp %273 : vector<8x96xf32>
    %cst_113 = arith.constant 1.000000e+00 : f32
    %275 = vector.broadcast %cst_113 : f32 to vector<8x96xf32>
    %276 = arith.addf %275, %274 : vector<8x96xf32>
    %277 = arith.divf %275, %276 : vector<8x96xf32>
    %278 = vector.extract_strided_slice %271 {offsets = [0, 96], sizes = [8, 32], strides = [1, 1]} : vector<8x128xf32> to vector<8x32xf32>
    %279 = math.tanh %278 : vector<8x32xf32>
    %280 = vector.extract_strided_slice %277 {offsets = [0, 0], sizes = [8, 32], strides = [1, 1]} : vector<8x96xf32> to vector<8x32xf32>
    %281 = vector.extract_strided_slice %277 {offsets = [0, 32], sizes = [8, 32], strides = [1, 1]} : vector<8x96xf32> to vector<8x32xf32>
    %282 = vector.extract_strided_slice %277 {offsets = [0, 64], sizes = [8, 32], strides = [1, 1]} : vector<8x96xf32> to vector<8x32xf32>
    %283 = arith.mulf %281, %253 : vector<8x32xf32>
    %284 = arith.mulf %280, %279 : vector<8x32xf32>
    %285 = arith.addf %283, %284 : vector<8x32xf32>
    %286 = math.tanh %285 : vector<8x32xf32>
    %287 = arith.mulf %282, %286 : vector<8x32xf32>
    %c0_114 = arith.constant 0 : index
    %c0_115 = arith.constant 0 : index
    %288 = vector.load %arg8[%c0_114, %c0_115] : memref<32x128xf32, #tpu.memory_space<vmem>>, vector<32x128xf32>
    %cst_116 = arith.constant dense<0.000000e+00> : vector<8x128xf32>
    %289 = tpu.matmul %287, %288, %cst_116 {dimension_numbers = #tpu.dot_dimension_numbers<[1], [0], [0], [1], [0, 0, 1, 1], [], []>} : vector<8x32xf32>, vector<32x128xf32>, vector<8x128xf32> -> vector<8x128xf32>
    %c0_117 = arith.constant 0 : index
    %c0_118 = arith.constant 0 : index
    %290 = vector.load %arg9[%c0_117, %c0_118] : memref<1x128xf32, #tpu.memory_space<vmem>>, vector<1x128xf32>
    %291 = vector.broadcast %290 : vector<1x128xf32> to vector<8x128xf32>
    %292 = arith.addf %289, %291 : vector<8x128xf32>
    %cst_119 = arith.constant dense<0xFF800000> : vector<8xf32>
    %293 = vector.multi_reduction <maximumf>, %292, %cst_119 [1] : vector<8x128xf32> to vector<8xf32>
    %294 = vector.shape_cast %293 : vector<8xf32> to vector<8x1xf32>
    %295 = vector.broadcast %294 : vector<8x1xf32> to vector<8x128xf32>
    %296 = arith.cmpf oeq, %292, %295 : vector<8x128xf32>
    %c128_i32 = arith.constant 128 : i32
    %297 = vector.broadcast %c128_i32 : i32 to vector<8x128xi32>
    %298 = arith.select %296, %0, %297 : vector<8x128xi1>, vector<8x128xi32>
    %cst_120 = arith.constant dense<2147483647> : vector<8xi32>
    %299 = vector.multi_reduction <minsi>, %298, %cst_120 [1] : vector<8x128xi32> to vector<8xi32>
    %300 = vector.shape_cast %299 : vector<8xi32> to vector<8x1xi32>
    %c0_121 = arith.constant 0 : index
    %c0_122 = arith.constant 0 : index
    %301 = vector.load %arg11[%c0_121, %c0_122] : memref<8x8xi32, #tpu.memory_space<vmem>>, vector<8x1xi32>
    tpu.vector_store %arg11[%c0_121, %c0_122], %300 {strides = array<i32>} : memref<8x8xi32, #tpu.memory_space<vmem>>, vector<8x1xi32>,
    %302 = vector.broadcast %300 : vector<8x1xi32> to vector<8x128xi32>
    %303 = arith.cmpi eq, %302, %0 : vector<8x128xi32>
    %304 = arith.extui %303 : vector<8x128xi1> to vector<8x128xi32>
    %305 = arith.sitofp %304 : vector<8x128xi32> to vector<8x128xf32>
    %c0_123 = arith.constant 0 : index
    %c0_124 = arith.constant 0 : index
    %306 = vector.load %arg5[%c0_123, %c0_124] : memref<128x128xf32, #tpu.memory_space<vmem>>, vector<128x128xf32>
    %cst_125 = arith.constant dense<0.000000e+00> : vector<8x128xf32>
    %307 = tpu.matmul %305, %306, %cst_125 {dimension_numbers = #tpu.dot_dimension_numbers<[1], [0], [0], [1], [0, 0, 1, 1], [], []>} : vector<8x128xf32>, vector<128x128xf32>, vector<8x128xf32> -> vector<8x128xf32>
    %c0_126 = arith.constant 0 : index
    %c0_127 = arith.constant 0 : index
    %308 = vector.load %arg6[%c0_126, %c0_127] : memref<32x128xf32, #tpu.memory_space<vmem>>, vector<32x128xf32>
    %cst_128 = arith.constant dense<0.000000e+00> : vector<8x128xf32>
    %309 = tpu.matmul %287, %308, %cst_128 {dimension_numbers = #tpu.dot_dimension_numbers<[1], [0], [0], [1], [0, 0, 1, 1], [], []>} : vector<8x32xf32>, vector<32x128xf32>, vector<8x128xf32> -> vector<8x128xf32>
    %310 = arith.addf %307, %309 : vector<8x128xf32>
    %c0_129 = arith.constant 0 : index
    %c0_130 = arith.constant 0 : index
    %311 = vector.load %arg7[%c0_129, %c0_130] : memref<1x128xf32, #tpu.memory_space<vmem>>, vector<1x128xf32>
    %312 = vector.broadcast %311 : vector<1x128xf32> to vector<8x128xf32>
    %313 = arith.addf %310, %312 : vector<8x128xf32>
    %314 = vector.extract_strided_slice %313 {offsets = [0, 0], sizes = [8, 96], strides = [1, 1]} : vector<8x128xf32> to vector<8x96xf32>
    %315 = arith.negf %314 : vector<8x96xf32>
    %316 = math.exp %315 : vector<8x96xf32>
    %cst_131 = arith.constant 1.000000e+00 : f32
    %317 = vector.broadcast %cst_131 : f32 to vector<8x96xf32>
    %318 = arith.addf %317, %316 : vector<8x96xf32>
    %319 = arith.divf %317, %318 : vector<8x96xf32>
    %320 = vector.extract_strided_slice %313 {offsets = [0, 96], sizes = [8, 32], strides = [1, 1]} : vector<8x128xf32> to vector<8x32xf32>
    %321 = math.tanh %320 : vector<8x32xf32>
    %322 = vector.extract_strided_slice %319 {offsets = [0, 0], sizes = [8, 32], strides = [1, 1]} : vector<8x96xf32> to vector<8x32xf32>
    %323 = vector.extract_strided_slice %319 {offsets = [0, 32], sizes = [8, 32], strides = [1, 1]} : vector<8x96xf32> to vector<8x32xf32>
    %324 = vector.extract_strided_slice %319 {offsets = [0, 64], sizes = [8, 32], strides = [1, 1]} : vector<8x96xf32> to vector<8x32xf32>
    %325 = arith.mulf %323, %285 : vector<8x32xf32>
    %326 = arith.mulf %322, %321 : vector<8x32xf32>
    %327 = arith.addf %325, %326 : vector<8x32xf32>
    %328 = math.tanh %327 : vector<8x32xf32>
    %329 = arith.mulf %324, %328 : vector<8x32xf32>
    %c0_132 = arith.constant 0 : index
    %c0_133 = arith.constant 0 : index
    %330 = vector.load %arg8[%c0_132, %c0_133] : memref<32x128xf32, #tpu.memory_space<vmem>>, vector<32x128xf32>
    %cst_134 = arith.constant dense<0.000000e+00> : vector<8x128xf32>
    %331 = tpu.matmul %329, %330, %cst_134 {dimension_numbers = #tpu.dot_dimension_numbers<[1], [0], [0], [1], [0, 0, 1, 1], [], []>} : vector<8x32xf32>, vector<32x128xf32>, vector<8x128xf32> -> vector<8x128xf32>
    %c0_135 = arith.constant 0 : index
    %c0_136 = arith.constant 0 : index
    %332 = vector.load %arg9[%c0_135, %c0_136] : memref<1x128xf32, #tpu.memory_space<vmem>>, vector<1x128xf32>
    %333 = vector.broadcast %332 : vector<1x128xf32> to vector<8x128xf32>
    %334 = arith.addf %331, %333 : vector<8x128xf32>
    %cst_137 = arith.constant dense<0xFF800000> : vector<8xf32>
    %335 = vector.multi_reduction <maximumf>, %334, %cst_137 [1] : vector<8x128xf32> to vector<8xf32>
    %336 = vector.shape_cast %335 : vector<8xf32> to vector<8x1xf32>
    %337 = vector.broadcast %336 : vector<8x1xf32> to vector<8x128xf32>
    %338 = arith.cmpf oeq, %334, %337 : vector<8x128xf32>
    %c128_i32_138 = arith.constant 128 : i32
    %339 = vector.broadcast %c128_i32_138 : i32 to vector<8x128xi32>
    %340 = arith.select %338, %0, %339 : vector<8x128xi1>, vector<8x128xi32>
    %cst_139 = arith.constant dense<2147483647> : vector<8xi32>
    %341 = vector.multi_reduction <minsi>, %340, %cst_139 [1] : vector<8x128xi32> to vector<8xi32>
    %342 = vector.shape_cast %341 : vector<8xi32> to vector<8x1xi32>
    %c0_140 = arith.constant 0 : index
    %c1_141 = arith.constant 1 : index
    %343 = vector.load %arg11[%c0_140, %c1_141] : memref<8x8xi32, #tpu.memory_space<vmem>>, vector<8x1xi32>
    tpu.vector_store %arg11[%c0_140, %c1_141], %342 {strides = array<i32>} : memref<8x8xi32, #tpu.memory_space<vmem>>, vector<8x1xi32>,
    %344 = vector.broadcast %342 : vector<8x1xi32> to vector<8x128xi32>
    %345 = arith.cmpi eq, %344, %0 : vector<8x128xi32>
    %346 = arith.extui %345 : vector<8x128xi1> to vector<8x128xi32>
    %347 = arith.sitofp %346 : vector<8x128xi32> to vector<8x128xf32>
    %c0_142 = arith.constant 0 : index
    %c0_143 = arith.constant 0 : index
    %348 = vector.load %arg5[%c0_142, %c0_143] : memref<128x128xf32, #tpu.memory_space<vmem>>, vector<128x128xf32>
    %cst_144 = arith.constant dense<0.000000e+00> : vector<8x128xf32>
    %349 = tpu.matmul %347, %348, %cst_144 {dimension_numbers = #tpu.dot_dimension_numbers<[1], [0], [0], [1], [0, 0, 1, 1], [], []>} : vector<8x128xf32>, vector<128x128xf32>, vector<8x128xf32> -> vector<8x128xf32>
    %c0_145 = arith.constant 0 : index
    %c0_146 = arith.constant 0 : index
    %350 = vector.load %arg6[%c0_145, %c0_146] : memref<32x128xf32, #tpu.memory_space<vmem>>, vector<32x128xf32>
    %cst_147 = arith.constant dense<0.000000e+00> : vector<8x128xf32>
    %351 = tpu.matmul %329, %350, %cst_147 {dimension_numbers = #tpu.dot_dimension_numbers<[1], [0], [0], [1], [0, 0, 1, 1], [], []>} : vector<8x32xf32>, vector<32x128xf32>, vector<8x128xf32> -> vector<8x128xf32>
    %352 = arith.addf %349, %351 : vector<8x128xf32>
    %c0_148 = arith.constant 0 : index
    %c0_149 = arith.constant 0 : index
    %353 = vector.load %arg7[%c0_148, %c0_149] : memref<1x128xf32, #tpu.memory_space<vmem>>, vector<1x128xf32>
    %354 = vector.broadcast %353 : vector<1x128xf32> to vector<8x128xf32>
    %355 = arith.addf %352, %354 : vector<8x128xf32>
    %356 = vector.extract_strided_slice %355 {offsets = [0, 0], sizes = [8, 96], strides = [1, 1]} : vector<8x128xf32> to vector<8x96xf32>
    %357 = arith.negf %356 : vector<8x96xf32>
    %358 = math.exp %357 : vector<8x96xf32>
    %cst_150 = arith.constant 1.000000e+00 : f32
    %359 = vector.broadcast %cst_150 : f32 to vector<8x96xf32>
    %360 = arith.addf %359, %358 : vector<8x96xf32>
    %361 = arith.divf %359, %360 : vector<8x96xf32>
    %362 = vector.extract_strided_slice %355 {offsets = [0, 96], sizes = [8, 32], strides = [1, 1]} : vector<8x128xf32> to vector<8x32xf32>
    %363 = math.tanh %362 : vector<8x32xf32>
    %364 = vector.extract_strided_slice %361 {offsets = [0, 0], sizes = [8, 32], strides = [1, 1]} : vector<8x96xf32> to vector<8x32xf32>
    %365 = vector.extract_strided_slice %361 {offsets = [0, 32], sizes = [8, 32], strides = [1, 1]} : vector<8x96xf32> to vector<8x32xf32>
    %366 = vector.extract_strided_slice %361 {offsets = [0, 64], sizes = [8, 32], strides = [1, 1]} : vector<8x96xf32> to vector<8x32xf32>
    %367 = arith.mulf %365, %327 : vector<8x32xf32>
    %368 = arith.mulf %364, %363 : vector<8x32xf32>
    %369 = arith.addf %367, %368 : vector<8x32xf32>
    %370 = math.tanh %369 : vector<8x32xf32>
    %371 = arith.mulf %366, %370 : vector<8x32xf32>
    %c0_151 = arith.constant 0 : index
    %c0_152 = arith.constant 0 : index
    %372 = vector.load %arg8[%c0_151, %c0_152] : memref<32x128xf32, #tpu.memory_space<vmem>>, vector<32x128xf32>
    %cst_153 = arith.constant dense<0.000000e+00> : vector<8x128xf32>
    %373 = tpu.matmul %371, %372, %cst_153 {dimension_numbers = #tpu.dot_dimension_numbers<[1], [0], [0], [1], [0, 0, 1, 1], [], []>} : vector<8x32xf32>, vector<32x128xf32>, vector<8x128xf32> -> vector<8x128xf32>
    %c0_154 = arith.constant 0 : index
    %c0_155 = arith.constant 0 : index
    %374 = vector.load %arg9[%c0_154, %c0_155] : memref<1x128xf32, #tpu.memory_space<vmem>>, vector<1x128xf32>
    %375 = vector.broadcast %374 : vector<1x128xf32> to vector<8x128xf32>
    %376 = arith.addf %373, %375 : vector<8x128xf32>
    %cst_156 = arith.constant dense<0xFF800000> : vector<8xf32>
    %377 = vector.multi_reduction <maximumf>, %376, %cst_156 [1] : vector<8x128xf32> to vector<8xf32>
    %378 = vector.shape_cast %377 : vector<8xf32> to vector<8x1xf32>
    %379 = vector.broadcast %378 : vector<8x1xf32> to vector<8x128xf32>
    %380 = arith.cmpf oeq, %376, %379 : vector<8x128xf32>
    %c128_i32_157 = arith.constant 128 : i32
    %381 = vector.broadcast %c128_i32_157 : i32 to vector<8x128xi32>
    %382 = arith.select %380, %0, %381 : vector<8x128xi1>, vector<8x128xi32>
    %cst_158 = arith.constant dense<2147483647> : vector<8xi32>
    %383 = vector.multi_reduction <minsi>, %382, %cst_158 [1] : vector<8x128xi32> to vector<8xi32>
    %384 = vector.shape_cast %383 : vector<8xi32> to vector<8x1xi32>
    %c0_159 = arith.constant 0 : index
    %c2_160 = arith.constant 2 : index
    %385 = vector.load %arg11[%c0_159, %c2_160] : memref<8x8xi32, #tpu.memory_space<vmem>>, vector<8x1xi32>
    tpu.vector_store %arg11[%c0_159, %c2_160], %384 {strides = array<i32>} : memref<8x8xi32, #tpu.memory_space<vmem>>, vector<8x1xi32>,
    %386 = vector.broadcast %384 : vector<8x1xi32> to vector<8x128xi32>
    %387 = arith.cmpi eq, %386, %0 : vector<8x128xi32>
    %388 = arith.extui %387 : vector<8x128xi1> to vector<8x128xi32>
    %389 = arith.sitofp %388 : vector<8x128xi32> to vector<8x128xf32>
    %c0_161 = arith.constant 0 : index
    %c0_162 = arith.constant 0 : index
    %390 = vector.load %arg5[%c0_161, %c0_162] : memref<128x128xf32, #tpu.memory_space<vmem>>, vector<128x128xf32>
    %cst_163 = arith.constant dense<0.000000e+00> : vector<8x128xf32>
    %391 = tpu.matmul %389, %390, %cst_163 {dimension_numbers = #tpu.dot_dimension_numbers<[1], [0], [0], [1], [0, 0, 1, 1], [], []>} : vector<8x128xf32>, vector<128x128xf32>, vector<8x128xf32> -> vector<8x128xf32>
    %c0_164 = arith.constant 0 : index
    %c0_165 = arith.constant 0 : index
    %392 = vector.load %arg6[%c0_164, %c0_165] : memref<32x128xf32, #tpu.memory_space<vmem>>, vector<32x128xf32>
    %cst_166 = arith.constant dense<0.000000e+00> : vector<8x128xf32>
    %393 = tpu.matmul %371, %392, %cst_166 {dimension_numbers = #tpu.dot_dimension_numbers<[1], [0], [0], [1], [0, 0, 1, 1], [], []>} : vector<8x32xf32>, vector<32x128xf32>, vector<8x128xf32> -> vector<8x128xf32>
    %394 = arith.addf %391, %393 : vector<8x128xf32>
    %c0_167 = arith.constant 0 : index
    %c0_168 = arith.constant 0 : index
    %395 = vector.load %arg7[%c0_167, %c0_168] : memref<1x128xf32, #tpu.memory_space<vmem>>, vector<1x128xf32>
    %396 = vector.broadcast %395 : vector<1x128xf32> to vector<8x128xf32>
    %397 = arith.addf %394, %396 : vector<8x128xf32>
    %398 = vector.extract_strided_slice %397 {offsets = [0, 0], sizes = [8, 96], strides = [1, 1]} : vector<8x128xf32> to vector<8x96xf32>
    %399 = arith.negf %398 : vector<8x96xf32>
    %400 = math.exp %399 : vector<8x96xf32>
    %cst_169 = arith.constant 1.000000e+00 : f32
    %401 = vector.broadcast %cst_169 : f32 to vector<8x96xf32>
    %402 = arith.addf %401, %400 : vector<8x96xf32>
    %403 = arith.divf %401, %402 : vector<8x96xf32>
    %404 = vector.extract_strided_slice %397 {offsets = [0, 96], sizes = [8, 32], strides = [1, 1]} : vector<8x128xf32> to vector<8x32xf32>
    %405 = math.tanh %404 : vector<8x32xf32>
    %406 = vector.extract_strided_slice %403 {offsets = [0, 0], sizes = [8, 32], strides = [1, 1]} : vector<8x96xf32> to vector<8x32xf32>
    %407 = vector.extract_strided_slice %403 {offsets = [0, 32], sizes = [8, 32], strides = [1, 1]} : vector<8x96xf32> to vector<8x32xf32>
    %408 = vector.extract_strided_slice %403 {offsets = [0, 64], sizes = [8, 32], strides = [1, 1]} : vector<8x96xf32> to vector<8x32xf32>
    %409 = arith.mulf %407, %369 : vector<8x32xf32>
    %410 = arith.mulf %406, %405 : vector<8x32xf32>
    %411 = arith.addf %409, %410 : vector<8x32xf32>
    %412 = math.tanh %411 : vector<8x32xf32>
    %413 = arith.mulf %408, %412 : vector<8x32xf32>
    %c0_170 = arith.constant 0 : index
    %c0_171 = arith.constant 0 : index
    %414 = vector.load %arg8[%c0_170, %c0_171] : memref<32x128xf32, #tpu.memory_space<vmem>>, vector<32x128xf32>
    %cst_172 = arith.constant dense<0.000000e+00> : vector<8x128xf32>
    %415 = tpu.matmul %413, %414, %cst_172 {dimension_numbers = #tpu.dot_dimension_numbers<[1], [0], [0], [1], [0, 0, 1, 1], [], []>} : vector<8x32xf32>, vector<32x128xf32>, vector<8x128xf32> -> vector<8x128xf32>
    %c0_173 = arith.constant 0 : index
    %c0_174 = arith.constant 0 : index
    %416 = vector.load %arg9[%c0_173, %c0_174] : memref<1x128xf32, #tpu.memory_space<vmem>>, vector<1x128xf32>
    %417 = vector.broadcast %416 : vector<1x128xf32> to vector<8x128xf32>
    %418 = arith.addf %415, %417 : vector<8x128xf32>
    %cst_175 = arith.constant dense<0xFF800000> : vector<8xf32>
    %419 = vector.multi_reduction <maximumf>, %418, %cst_175 [1] : vector<8x128xf32> to vector<8xf32>
    %420 = vector.shape_cast %419 : vector<8xf32> to vector<8x1xf32>
    %421 = vector.broadcast %420 : vector<8x1xf32> to vector<8x128xf32>
    %422 = arith.cmpf oeq, %418, %421 : vector<8x128xf32>
    %c128_i32_176 = arith.constant 128 : i32
    %423 = vector.broadcast %c128_i32_176 : i32 to vector<8x128xi32>
    %424 = arith.select %422, %0, %423 : vector<8x128xi1>, vector<8x128xi32>
    %cst_177 = arith.constant dense<2147483647> : vector<8xi32>
    %425 = vector.multi_reduction <minsi>, %424, %cst_177 [1] : vector<8x128xi32> to vector<8xi32>
    %426 = vector.shape_cast %425 : vector<8xi32> to vector<8x1xi32>
    %c0_178 = arith.constant 0 : index
    %c3_179 = arith.constant 3 : index
    %427 = vector.load %arg11[%c0_178, %c3_179] : memref<8x8xi32, #tpu.memory_space<vmem>>, vector<8x1xi32>
    tpu.vector_store %arg11[%c0_178, %c3_179], %426 {strides = array<i32>} : memref<8x8xi32, #tpu.memory_space<vmem>>, vector<8x1xi32>,
    %428 = vector.broadcast %426 : vector<8x1xi32> to vector<8x128xi32>
    %429 = arith.cmpi eq, %428, %0 : vector<8x128xi32>
    %430 = arith.extui %429 : vector<8x128xi1> to vector<8x128xi32>
    %431 = arith.sitofp %430 : vector<8x128xi32> to vector<8x128xf32>
    %c0_180 = arith.constant 0 : index
    %c0_181 = arith.constant 0 : index
    %432 = vector.load %arg5[%c0_180, %c0_181] : memref<128x128xf32, #tpu.memory_space<vmem>>, vector<128x128xf32>
    %cst_182 = arith.constant dense<0.000000e+00> : vector<8x128xf32>
    %433 = tpu.matmul %431, %432, %cst_182 {dimension_numbers = #tpu.dot_dimension_numbers<[1], [0], [0], [1], [0, 0, 1, 1], [], []>} : vector<8x128xf32>, vector<128x128xf32>, vector<8x128xf32> -> vector<8x128xf32>
    %c0_183 = arith.constant 0 : index
    %c0_184 = arith.constant 0 : index
    %434 = vector.load %arg6[%c0_183, %c0_184] : memref<32x128xf32, #tpu.memory_space<vmem>>, vector<32x128xf32>
    %cst_185 = arith.constant dense<0.000000e+00> : vector<8x128xf32>
    %435 = tpu.matmul %413, %434, %cst_185 {dimension_numbers = #tpu.dot_dimension_numbers<[1], [0], [0], [1], [0, 0, 1, 1], [], []>} : vector<8x32xf32>, vector<32x128xf32>, vector<8x128xf32> -> vector<8x128xf32>
    %436 = arith.addf %433, %435 : vector<8x128xf32>
    %c0_186 = arith.constant 0 : index
    %c0_187 = arith.constant 0 : index
    %437 = vector.load %arg7[%c0_186, %c0_187] : memref<1x128xf32, #tpu.memory_space<vmem>>, vector<1x128xf32>
    %438 = vector.broadcast %437 : vector<1x128xf32> to vector<8x128xf32>
    %439 = arith.addf %436, %438 : vector<8x128xf32>
    %440 = vector.extract_strided_slice %439 {offsets = [0, 0], sizes = [8, 96], strides = [1, 1]} : vector<8x128xf32> to vector<8x96xf32>
    %441 = arith.negf %440 : vector<8x96xf32>
    %442 = math.exp %441 : vector<8x96xf32>
    %cst_188 = arith.constant 1.000000e+00 : f32
    %443 = vector.broadcast %cst_188 : f32 to vector<8x96xf32>
    %444 = arith.addf %443, %442 : vector<8x96xf32>
    %445 = arith.divf %443, %444 : vector<8x96xf32>
    %446 = vector.extract_strided_slice %439 {offsets = [0, 96], sizes = [8, 32], strides = [1, 1]} : vector<8x128xf32> to vector<8x32xf32>
    %447 = math.tanh %446 : vector<8x32xf32>
    %448 = vector.extract_strided_slice %445 {offsets = [0, 0], sizes = [8, 32], strides = [1, 1]} : vector<8x96xf32> to vector<8x32xf32>
    %449 = vector.extract_strided_slice %445 {offsets = [0, 32], sizes = [8, 32], strides = [1, 1]} : vector<8x96xf32> to vector<8x32xf32>
    %450 = vector.extract_strided_slice %445 {offsets = [0, 64], sizes = [8, 32], strides = [1, 1]} : vector<8x96xf32> to vector<8x32xf32>
    %451 = arith.mulf %449, %411 : vector<8x32xf32>
    %452 = arith.mulf %448, %447 : vector<8x32xf32>
    %453 = arith.addf %451, %452 : vector<8x32xf32>
    %454 = math.tanh %453 : vector<8x32xf32>
    %455 = arith.mulf %450, %454 : vector<8x32xf32>
    %c0_189 = arith.constant 0 : index
    %c0_190 = arith.constant 0 : index
    %456 = vector.load %arg8[%c0_189, %c0_190] : memref<32x128xf32, #tpu.memory_space<vmem>>, vector<32x128xf32>
    %cst_191 = arith.constant dense<0.000000e+00> : vector<8x128xf32>
    %457 = tpu.matmul %455, %456, %cst_191 {dimension_numbers = #tpu.dot_dimension_numbers<[1], [0], [0], [1], [0, 0, 1, 1], [], []>} : vector<8x32xf32>, vector<32x128xf32>, vector<8x128xf32> -> vector<8x128xf32>
    %c0_192 = arith.constant 0 : index
    %c0_193 = arith.constant 0 : index
    %458 = vector.load %arg9[%c0_192, %c0_193] : memref<1x128xf32, #tpu.memory_space<vmem>>, vector<1x128xf32>
    %459 = vector.broadcast %458 : vector<1x128xf32> to vector<8x128xf32>
    %460 = arith.addf %457, %459 : vector<8x128xf32>
    %cst_194 = arith.constant dense<0xFF800000> : vector<8xf32>
    %461 = vector.multi_reduction <maximumf>, %460, %cst_194 [1] : vector<8x128xf32> to vector<8xf32>
    %462 = vector.shape_cast %461 : vector<8xf32> to vector<8x1xf32>
    %463 = vector.broadcast %462 : vector<8x1xf32> to vector<8x128xf32>
    %464 = arith.cmpf oeq, %460, %463 : vector<8x128xf32>
    %c128_i32_195 = arith.constant 128 : i32
    %465 = vector.broadcast %c128_i32_195 : i32 to vector<8x128xi32>
    %466 = arith.select %464, %0, %465 : vector<8x128xi1>, vector<8x128xi32>
    %cst_196 = arith.constant dense<2147483647> : vector<8xi32>
    %467 = vector.multi_reduction <minsi>, %466, %cst_196 [1] : vector<8x128xi32> to vector<8xi32>
    %468 = vector.shape_cast %467 : vector<8xi32> to vector<8x1xi32>
    %c0_197 = arith.constant 0 : index
    %c4_198 = arith.constant 4 : index
    %469 = vector.load %arg11[%c0_197, %c4_198] : memref<8x8xi32, #tpu.memory_space<vmem>>, vector<8x1xi32>
    tpu.vector_store %arg11[%c0_197, %c4_198], %468 {strides = array<i32>} : memref<8x8xi32, #tpu.memory_space<vmem>>, vector<8x1xi32>,
    %470 = vector.broadcast %468 : vector<8x1xi32> to vector<8x128xi32>
    %471 = arith.cmpi eq, %470, %0 : vector<8x128xi32>
    %472 = arith.extui %471 : vector<8x128xi1> to vector<8x128xi32>
    %473 = arith.sitofp %472 : vector<8x128xi32> to vector<8x128xf32>
    %c0_199 = arith.constant 0 : index
    %c0_200 = arith.constant 0 : index
    %474 = vector.load %arg5[%c0_199, %c0_200] : memref<128x128xf32, #tpu.memory_space<vmem>>, vector<128x128xf32>
    %cst_201 = arith.constant dense<0.000000e+00> : vector<8x128xf32>
    %475 = tpu.matmul %473, %474, %cst_201 {dimension_numbers = #tpu.dot_dimension_numbers<[1], [0], [0], [1], [0, 0, 1, 1], [], []>} : vector<8x128xf32>, vector<128x128xf32>, vector<8x128xf32> -> vector<8x128xf32>
    %c0_202 = arith.constant 0 : index
    %c0_203 = arith.constant 0 : index
    %476 = vector.load %arg6[%c0_202, %c0_203] : memref<32x128xf32, #tpu.memory_space<vmem>>, vector<32x128xf32>
    %cst_204 = arith.constant dense<0.000000e+00> : vector<8x128xf32>
    %477 = tpu.matmul %455, %476, %cst_204 {dimension_numbers = #tpu.dot_dimension_numbers<[1], [0], [0], [1], [0, 0, 1, 1], [], []>} : vector<8x32xf32>, vector<32x128xf32>, vector<8x128xf32> -> vector<8x128xf32>
    %478 = arith.addf %475, %477 : vector<8x128xf32>
    %c0_205 = arith.constant 0 : index
    %c0_206 = arith.constant 0 : index
    %479 = vector.load %arg7[%c0_205, %c0_206] : memref<1x128xf32, #tpu.memory_space<vmem>>, vector<1x128xf32>
    %480 = vector.broadcast %479 : vector<1x128xf32> to vector<8x128xf32>
    %481 = arith.addf %478, %480 : vector<8x128xf32>
    %482 = vector.extract_strided_slice %481 {offsets = [0, 0], sizes = [8, 96], strides = [1, 1]} : vector<8x128xf32> to vector<8x96xf32>
    %483 = arith.negf %482 : vector<8x96xf32>
    %484 = math.exp %483 : vector<8x96xf32>
    %cst_207 = arith.constant 1.000000e+00 : f32
    %485 = vector.broadcast %cst_207 : f32 to vector<8x96xf32>
    %486 = arith.addf %485, %484 : vector<8x96xf32>
    %487 = arith.divf %485, %486 : vector<8x96xf32>
    %488 = vector.extract_strided_slice %481 {offsets = [0, 96], sizes = [8, 32], strides = [1, 1]} : vector<8x128xf32> to vector<8x32xf32>
    %489 = math.tanh %488 : vector<8x32xf32>
    %490 = vector.extract_strided_slice %487 {offsets = [0, 0], sizes = [8, 32], strides = [1, 1]} : vector<8x96xf32> to vector<8x32xf32>
    %491 = vector.extract_strided_slice %487 {offsets = [0, 32], sizes = [8, 32], strides = [1, 1]} : vector<8x96xf32> to vector<8x32xf32>
    %492 = vector.extract_strided_slice %487 {offsets = [0, 64], sizes = [8, 32], strides = [1, 1]} : vector<8x96xf32> to vector<8x32xf32>
    %493 = arith.mulf %491, %453 : vector<8x32xf32>
    %494 = arith.mulf %490, %489 : vector<8x32xf32>
    %495 = arith.addf %493, %494 : vector<8x32xf32>
    %496 = math.tanh %495 : vector<8x32xf32>
    %497 = arith.mulf %492, %496 : vector<8x32xf32>
    %c0_208 = arith.constant 0 : index
    %c0_209 = arith.constant 0 : index
    %498 = vector.load %arg8[%c0_208, %c0_209] : memref<32x128xf32, #tpu.memory_space<vmem>>, vector<32x128xf32>
    %cst_210 = arith.constant dense<0.000000e+00> : vector<8x128xf32>
    %499 = tpu.matmul %497, %498, %cst_210 {dimension_numbers = #tpu.dot_dimension_numbers<[1], [0], [0], [1], [0, 0, 1, 1], [], []>} : vector<8x32xf32>, vector<32x128xf32>, vector<8x128xf32> -> vector<8x128xf32>
    %c0_211 = arith.constant 0 : index
    %c0_212 = arith.constant 0 : index
    %500 = vector.load %arg9[%c0_211, %c0_212] : memref<1x128xf32, #tpu.memory_space<vmem>>, vector<1x128xf32>
    %501 = vector.broadcast %500 : vector<1x128xf32> to vector<8x128xf32>
    %502 = arith.addf %499, %501 : vector<8x128xf32>
    %cst_213 = arith.constant dense<0xFF800000> : vector<8xf32>
    %503 = vector.multi_reduction <maximumf>, %502, %cst_213 [1] : vector<8x128xf32> to vector<8xf32>
    %504 = vector.shape_cast %503 : vector<8xf32> to vector<8x1xf32>
    %505 = vector.broadcast %504 : vector<8x1xf32> to vector<8x128xf32>
    %506 = arith.cmpf oeq, %502, %505 : vector<8x128xf32>
    %c128_i32_214 = arith.constant 128 : i32
    %507 = vector.broadcast %c128_i32_214 : i32 to vector<8x128xi32>
    %508 = arith.select %506, %0, %507 : vector<8x128xi1>, vector<8x128xi32>
    %cst_215 = arith.constant dense<2147483647> : vector<8xi32>
    %509 = vector.multi_reduction <minsi>, %508, %cst_215 [1] : vector<8x128xi32> to vector<8xi32>
    %510 = vector.shape_cast %509 : vector<8xi32> to vector<8x1xi32>
    %c0_216 = arith.constant 0 : index
    %c5_217 = arith.constant 5 : index
    %511 = vector.load %arg11[%c0_216, %c5_217] : memref<8x8xi32, #tpu.memory_space<vmem>>, vector<8x1xi32>
    tpu.vector_store %arg11[%c0_216, %c5_217], %510 {strides = array<i32>} : memref<8x8xi32, #tpu.memory_space<vmem>>, vector<8x1xi32>,
    %512 = vector.broadcast %510 : vector<8x1xi32> to vector<8x128xi32>
    %513 = arith.cmpi eq, %512, %0 : vector<8x128xi32>
    %514 = arith.extui %513 : vector<8x128xi1> to vector<8x128xi32>
    %515 = arith.sitofp %514 : vector<8x128xi32> to vector<8x128xf32>
    %c0_218 = arith.constant 0 : index
    %c0_219 = arith.constant 0 : index
    %516 = vector.load %arg5[%c0_218, %c0_219] : memref<128x128xf32, #tpu.memory_space<vmem>>, vector<128x128xf32>
    %cst_220 = arith.constant dense<0.000000e+00> : vector<8x128xf32>
    %517 = tpu.matmul %515, %516, %cst_220 {dimension_numbers = #tpu.dot_dimension_numbers<[1], [0], [0], [1], [0, 0, 1, 1], [], []>} : vector<8x128xf32>, vector<128x128xf32>, vector<8x128xf32> -> vector<8x128xf32>
    %c0_221 = arith.constant 0 : index
    %c0_222 = arith.constant 0 : index
    %518 = vector.load %arg6[%c0_221, %c0_222] : memref<32x128xf32, #tpu.memory_space<vmem>>, vector<32x128xf32>
    %cst_223 = arith.constant dense<0.000000e+00> : vector<8x128xf32>
    %519 = tpu.matmul %497, %518, %cst_223 {dimension_numbers = #tpu.dot_dimension_numbers<[1], [0], [0], [1], [0, 0, 1, 1], [], []>} : vector<8x32xf32>, vector<32x128xf32>, vector<8x128xf32> -> vector<8x128xf32>
    %520 = arith.addf %517, %519 : vector<8x128xf32>
    %c0_224 = arith.constant 0 : index
    %c0_225 = arith.constant 0 : index
    %521 = vector.load %arg7[%c0_224, %c0_225] : memref<1x128xf32, #tpu.memory_space<vmem>>, vector<1x128xf32>
    %522 = vector.broadcast %521 : vector<1x128xf32> to vector<8x128xf32>
    %523 = arith.addf %520, %522 : vector<8x128xf32>
    %524 = vector.extract_strided_slice %523 {offsets = [0, 0], sizes = [8, 96], strides = [1, 1]} : vector<8x128xf32> to vector<8x96xf32>
    %525 = arith.negf %524 : vector<8x96xf32>
    %526 = math.exp %525 : vector<8x96xf32>
    %cst_226 = arith.constant 1.000000e+00 : f32
    %527 = vector.broadcast %cst_226 : f32 to vector<8x96xf32>
    %528 = arith.addf %527, %526 : vector<8x96xf32>
    %529 = arith.divf %527, %528 : vector<8x96xf32>
    %530 = vector.extract_strided_slice %523 {offsets = [0, 96], sizes = [8, 32], strides = [1, 1]} : vector<8x128xf32> to vector<8x32xf32>
    %531 = math.tanh %530 : vector<8x32xf32>
    %532 = vector.extract_strided_slice %529 {offsets = [0, 0], sizes = [8, 32], strides = [1, 1]} : vector<8x96xf32> to vector<8x32xf32>
    %533 = vector.extract_strided_slice %529 {offsets = [0, 32], sizes = [8, 32], strides = [1, 1]} : vector<8x96xf32> to vector<8x32xf32>
    %534 = vector.extract_strided_slice %529 {offsets = [0, 64], sizes = [8, 32], strides = [1, 1]} : vector<8x96xf32> to vector<8x32xf32>
    %535 = arith.mulf %533, %495 : vector<8x32xf32>
    %536 = arith.mulf %532, %531 : vector<8x32xf32>
    %537 = arith.addf %535, %536 : vector<8x32xf32>
    %538 = math.tanh %537 : vector<8x32xf32>
    %539 = arith.mulf %534, %538 : vector<8x32xf32>
    %c0_227 = arith.constant 0 : index
    %c0_228 = arith.constant 0 : index
    %540 = vector.load %arg8[%c0_227, %c0_228] : memref<32x128xf32, #tpu.memory_space<vmem>>, vector<32x128xf32>
    %cst_229 = arith.constant dense<0.000000e+00> : vector<8x128xf32>
    %541 = tpu.matmul %539, %540, %cst_229 {dimension_numbers = #tpu.dot_dimension_numbers<[1], [0], [0], [1], [0, 0, 1, 1], [], []>} : vector<8x32xf32>, vector<32x128xf32>, vector<8x128xf32> -> vector<8x128xf32>
    %c0_230 = arith.constant 0 : index
    %c0_231 = arith.constant 0 : index
    %542 = vector.load %arg9[%c0_230, %c0_231] : memref<1x128xf32, #tpu.memory_space<vmem>>, vector<1x128xf32>
    %543 = vector.broadcast %542 : vector<1x128xf32> to vector<8x128xf32>
    %544 = arith.addf %541, %543 : vector<8x128xf32>
    %cst_232 = arith.constant dense<0xFF800000> : vector<8xf32>
    %545 = vector.multi_reduction <maximumf>, %544, %cst_232 [1] : vector<8x128xf32> to vector<8xf32>
    %546 = vector.shape_cast %545 : vector<8xf32> to vector<8x1xf32>
    %547 = vector.broadcast %546 : vector<8x1xf32> to vector<8x128xf32>
    %548 = arith.cmpf oeq, %544, %547 : vector<8x128xf32>
    %c128_i32_233 = arith.constant 128 : i32
    %549 = vector.broadcast %c128_i32_233 : i32 to vector<8x128xi32>
    %550 = arith.select %548, %0, %549 : vector<8x128xi1>, vector<8x128xi32>
    %cst_234 = arith.constant dense<2147483647> : vector<8xi32>
    %551 = vector.multi_reduction <minsi>, %550, %cst_234 [1] : vector<8x128xi32> to vector<8xi32>
    %552 = vector.shape_cast %551 : vector<8xi32> to vector<8x1xi32>
    %c0_235 = arith.constant 0 : index
    %c6_236 = arith.constant 6 : index
    %553 = vector.load %arg11[%c0_235, %c6_236] : memref<8x8xi32, #tpu.memory_space<vmem>>, vector<8x1xi32>
    tpu.vector_store %arg11[%c0_235, %c6_236], %552 {strides = array<i32>} : memref<8x8xi32, #tpu.memory_space<vmem>>, vector<8x1xi32>,
    %554 = vector.broadcast %552 : vector<8x1xi32> to vector<8x128xi32>
    %555 = arith.cmpi eq, %554, %0 : vector<8x128xi32>
    %556 = arith.extui %555 : vector<8x128xi1> to vector<8x128xi32>
    %557 = arith.sitofp %556 : vector<8x128xi32> to vector<8x128xf32>
    %c0_237 = arith.constant 0 : index
    %c0_238 = arith.constant 0 : index
    %558 = vector.load %arg5[%c0_237, %c0_238] : memref<128x128xf32, #tpu.memory_space<vmem>>, vector<128x128xf32>
    %cst_239 = arith.constant dense<0.000000e+00> : vector<8x128xf32>
    %559 = tpu.matmul %557, %558, %cst_239 {dimension_numbers = #tpu.dot_dimension_numbers<[1], [0], [0], [1], [0, 0, 1, 1], [], []>} : vector<8x128xf32>, vector<128x128xf32>, vector<8x128xf32> -> vector<8x128xf32>
    %c0_240 = arith.constant 0 : index
    %c0_241 = arith.constant 0 : index
    %560 = vector.load %arg6[%c0_240, %c0_241] : memref<32x128xf32, #tpu.memory_space<vmem>>, vector<32x128xf32>
    %cst_242 = arith.constant dense<0.000000e+00> : vector<8x128xf32>
    %561 = tpu.matmul %539, %560, %cst_242 {dimension_numbers = #tpu.dot_dimension_numbers<[1], [0], [0], [1], [0, 0, 1, 1], [], []>} : vector<8x32xf32>, vector<32x128xf32>, vector<8x128xf32> -> vector<8x128xf32>
    %562 = arith.addf %559, %561 : vector<8x128xf32>
    %c0_243 = arith.constant 0 : index
    %c0_244 = arith.constant 0 : index
    %563 = vector.load %arg7[%c0_243, %c0_244] : memref<1x128xf32, #tpu.memory_space<vmem>>, vector<1x128xf32>
    %564 = vector.broadcast %563 : vector<1x128xf32> to vector<8x128xf32>
    %565 = arith.addf %562, %564 : vector<8x128xf32>
    %566 = vector.extract_strided_slice %565 {offsets = [0, 0], sizes = [8, 96], strides = [1, 1]} : vector<8x128xf32> to vector<8x96xf32>
    %567 = arith.negf %566 : vector<8x96xf32>
    %568 = math.exp %567 : vector<8x96xf32>
    %cst_245 = arith.constant 1.000000e+00 : f32
    %569 = vector.broadcast %cst_245 : f32 to vector<8x96xf32>
    %570 = arith.addf %569, %568 : vector<8x96xf32>
    %571 = arith.divf %569, %570 : vector<8x96xf32>
    %572 = vector.extract_strided_slice %565 {offsets = [0, 96], sizes = [8, 32], strides = [1, 1]} : vector<8x128xf32> to vector<8x32xf32>
    %573 = math.tanh %572 : vector<8x32xf32>
    %574 = vector.extract_strided_slice %571 {offsets = [0, 0], sizes = [8, 32], strides = [1, 1]} : vector<8x96xf32> to vector<8x32xf32>
    %575 = vector.extract_strided_slice %571 {offsets = [0, 32], sizes = [8, 32], strides = [1, 1]} : vector<8x96xf32> to vector<8x32xf32>
    %576 = vector.extract_strided_slice %571 {offsets = [0, 64], sizes = [8, 32], strides = [1, 1]} : vector<8x96xf32> to vector<8x32xf32>
    %577 = arith.mulf %575, %537 : vector<8x32xf32>
    %578 = arith.mulf %574, %573 : vector<8x32xf32>
    %579 = arith.addf %577, %578 : vector<8x32xf32>
    %580 = math.tanh %579 : vector<8x32xf32>
    %581 = arith.mulf %576, %580 : vector<8x32xf32>
    %c0_246 = arith.constant 0 : index
    %c0_247 = arith.constant 0 : index
    %582 = vector.load %arg8[%c0_246, %c0_247] : memref<32x128xf32, #tpu.memory_space<vmem>>, vector<32x128xf32>
    %cst_248 = arith.constant dense<0.000000e+00> : vector<8x128xf32>
    %583 = tpu.matmul %581, %582, %cst_248 {dimension_numbers = #tpu.dot_dimension_numbers<[1], [0], [0], [1], [0, 0, 1, 1], [], []>} : vector<8x32xf32>, vector<32x128xf32>, vector<8x128xf32> -> vector<8x128xf32>
    %c0_249 = arith.constant 0 : index
    %c0_250 = arith.constant 0 : index
    %584 = vector.load %arg9[%c0_249, %c0_250] : memref<1x128xf32, #tpu.memory_space<vmem>>, vector<1x128xf32>
    %585 = vector.broadcast %584 : vector<1x128xf32> to vector<8x128xf32>
    %586 = arith.addf %583, %585 : vector<8x128xf32>
    %cst_251 = arith.constant dense<0xFF800000> : vector<8xf32>
    %587 = vector.multi_reduction <maximumf>, %586, %cst_251 [1] : vector<8x128xf32> to vector<8xf32>
    %588 = vector.shape_cast %587 : vector<8xf32> to vector<8x1xf32>
    %589 = vector.broadcast %588 : vector<8x1xf32> to vector<8x128xf32>
    %590 = arith.cmpf oeq, %586, %589 : vector<8x128xf32>
    %c128_i32_252 = arith.constant 128 : i32
    %591 = vector.broadcast %c128_i32_252 : i32 to vector<8x128xi32>
    %592 = arith.select %590, %0, %591 : vector<8x128xi1>, vector<8x128xi32>
    %cst_253 = arith.constant dense<2147483647> : vector<8xi32>
    %593 = vector.multi_reduction <minsi>, %592, %cst_253 [1] : vector<8x128xi32> to vector<8xi32>
    %594 = vector.shape_cast %593 : vector<8xi32> to vector<8x1xi32>
    %c0_254 = arith.constant 0 : index
    %c7_255 = arith.constant 7 : index
    %595 = vector.load %arg11[%c0_254, %c7_255] : memref<8x8xi32, #tpu.memory_space<vmem>>, vector<8x1xi32>
    tpu.vector_store %arg11[%c0_254, %c7_255], %594 {strides = array<i32>} : memref<8x8xi32, #tpu.memory_space<vmem>>, vector<8x1xi32>,
    return
  }
  func.func @transform_0(%arg0: i32) -> (i32, i32) {
    %c0_i32 = arith.constant 0 : i32
    %c0_i32_0 = arith.constant 0 : i32
    return %arg0, %c0_i32 : i32, i32
  }
  func.func @transform_1(%arg0: i32) -> (i32, i32) {
    %c0_i32 = arith.constant 0 : i32
    %c0_i32_0 = arith.constant 0 : i32
    %c0_i32_1 = arith.constant 0 : i32
    return %c0_i32, %c0_i32_0 : i32, i32
  }
  func.func @transform_2(%arg0: i32) -> (i32, i32) {
    %c0_i32 = arith.constant 0 : i32
    %c0_i32_0 = arith.constant 0 : i32
    %c0_i32_1 = arith.constant 0 : i32
    return %c0_i32, %c0_i32_0 : i32, i32
  }
  func.func @transform_3(%arg0: i32) -> (i32, i32) {
    %c0_i32 = arith.constant 0 : i32
    %c0_i32_0 = arith.constant 0 : i32
    %c0_i32_1 = arith.constant 0 : i32
    return %c0_i32, %c0_i32_0 : i32, i32
  }
  func.func @transform_4(%arg0: i32) -> (i32, i32) {
    %c0_i32 = arith.constant 0 : i32
    %c0_i32_0 = arith.constant 0 : i32
    %c0_i32_1 = arith.constant 0 : i32
    return %c0_i32, %c0_i32_0 : i32, i32
  }
  func.func @transform_5(%arg0: i32) -> (i32, i32) {
    %c0_i32 = arith.constant 0 : i32
    %c0_i32_0 = arith.constant 0 : i32
    %c0_i32_1 = arith.constant 0 : i32
    return %c0_i32, %c0_i32_0 : i32, i32
  }
  func.func @transform_6(%arg0: i32) -> (i32, i32) {
    %c0_i32 = arith.constant 0 : i32
    %c0_i32_0 = arith.constant 0 : i32
    %c0_i32_1 = arith.constant 0 : i32
    return %c0_i32, %c0_i32_0 : i32, i32
  }
  func.func @transform_7(%arg0: i32) -> (i32, i32) {
    %c0_i32 = arith.constant 0 : i32
    %c0_i32_0 = arith.constant 0 : i32
    %c0_i32_1 = arith.constant 0 : i32
    return %c0_i32, %c0_i32_0 : i32, i32
  }
  func.func @transform_8(%arg0: i32) -> (i32, i32) {
    %c0_i32 = arith.constant 0 : i32
    %c0_i32_0 = arith.constant 0 : i32
    %c0_i32_1 = arith.constant 0 : i32
    return %c0_i32, %c0_i32_0 : i32, i32
  }
  func.func @transform_9(%arg0: i32) -> (i32, i32, i32) {
    %c0_i32 = arith.constant 0 : i32
    %c0_i32_0 = arith.constant 0 : i32
    %c0_i32_1 = arith.constant 0 : i32
    return %c0_i32, %arg0, %c0_i32_0 : i32, i32, i32
  }
  func.func @transform_10(%arg0: i32) -> (i32, i32) {
    %c0_i32 = arith.constant 0 : i32
    %c0_i32_0 = arith.constant 0 : i32
    return %arg0, %c0_i32 : i32, i32
  }
}

</mosaic_0001>

<llo_original>
// kernel: tpu_custom_call.1
$region0: #{tpu_custom_call.1}
  #allocation0 [shape = 'u32[]', space=smem, size = 0x4, offset = 0x4, fixed_abs, tag = 'smem constant byte address 0x4 - core index']
  #allocation1 [shape = 'u32[144,128]{1,0:T(1,128)}', space=vmem, size = 0x12000, scoped, tag = 'internal scratch']
  %s0 = inlined_call_operand.vmem [shape: s32[16,8], index: 0, kind: input, shape index: {}]
  %s1 = inlined_call_operand.hbm [shape: f32[128,128], index: 1, kind: input, shape index: {}]
  %s2 = inlined_call_operand.hbm [shape: f32[32,128], index: 2, kind: input, shape index: {}]
  %s3 = inlined_call_operand.vmem [shape: f32[1,128], index: 3, kind: input, shape index: {}]
  %s4 = inlined_call_operand.hbm [shape: f32[128,128], index: 4, kind: input, shape index: {}]
  %s5 = inlined_call_operand.vmem [shape: f32[32,128], index: 5, kind: input, shape index: {}]
  %s6 = inlined_call_operand.vmem [shape: f32[1,128], index: 6, kind: input, shape index: {}]
  %s7 = inlined_call_operand.hbm [shape: f32[32,128], index: 7, kind: input, shape index: {}]
  %s8 = inlined_call_operand.vmem [shape: f32[1,128], index: 8, kind: input, shape index: {}]
  %s9 = inlined_call_operand.hbm [shape: f32[8,16,32], index: 9, kind: output, shape index: {0}]
  %s10 = inlined_call_operand.vmem [shape: s32[16,8], index: 10, kind: output, shape index: {1}]
  %11 = xla_tuple %s9, %s10
  %s12 = sld [smem:[#allocation0]]
  $region93: #{tpu_custom_call.1} parent=0
    _
  %s14 = ssub.s32 1, %s12
  %s15 = scalar_select 0, %s14, %s12
  $region1: #{tpu_custom_call.1} parent=0
    #allocation2 [shape = 'u8[65536]{0}', space=vmem, size = 0x10000, scoped, tag = 'input window, operand 1, single buffered']
    #allocation3 [shape = 's32[2]{0}', space=sflag, size = 0x8, scoped, tag = 'scoped memory for tpu_custom_call.1']
    #allocation4 [shape = 's32[2]{0}', space=sflag, size = 0x8, scoped, tag = 'scoped memory for tpu_custom_call.1']
    #allocation5 [shape = 'u8[16384]{0}', space=vmem, size = 0x4000, scoped, tag = 'input window, operand 2, single buffered']
    #allocation6 [shape = 's32[1]{0}', space=sflag, size = 0x4, scoped, tag = 'scoped memory for tpu_custom_call.1']
    #allocation7 [shape = 'u8[65536]{0}', space=vmem, size = 0x10000, scoped, tag = 'input window, operand 4, single buffered']
    #allocation8 [shape = 'u8[16384]{0}', space=vmem, size = 0x4000, scoped, tag = 'input window, operand 7, single buffered']
    #allocation9 [shape = 's32[1]{0}', space=sflag, size = 0x4, scoped, tag = 'scoped memory for tpu_custom_call.1']
    #allocation10 [shape = 'u8[65536]{0}', space=vmem, size = 0x10000, scoped, tag = 'output window, operand 0']
    %16 = vsyncpa [#allocation3], 0
    %17 = vsyncpa [#allocation6], 0
    %18 = vsyncpa [#allocation9], 0
    %19 = vsyncpa [#allocation4], 0
    %s20 = scalar_lea.sflag [#allocation4], 1
    %21 = vsyncpa %s20, 0
    loop: start=0, step=1, limit=4
    $region2: #{tpu_custom_call.1} parent=1 // loop_pre_header
      _
    $region3: #{tpu_custom_call.1} parent=1 // loop_header
      %s23 = sphi 0, %s27
      %p24 = scmp.ge.s32.totalorder %s23, 4
      %s33 = sphi 0, %s35
      %s36 = sphi 0, %s33
      %s37 = sphi 0, %s36
      %s53 = sphi 0, %s37
      %s57 = sphi 0, %s57
      %s59 = sphi 0, %s57
      %s60 = sphi 0, %s59
      %s74 = sphi 0, %s60
      %s78 = sphi 0, %s78
      %s80 = sphi 0, %s78
      %s81 = sphi 0, %s80
      %s95 = sphi 0, %s81
      %s99 = sphi 0, %s99
      %s101 = sphi 0, %s99
      %s102 = sphi 0, %s101
      %s116 = sphi 0, %s102
      %s120 = sphi 0, %s120
      %s122 = sphi 0, %s120
      %s123 = sphi 0, %s122
      %s137 = sphi 0, %s123
      %s141 = sphi 0, %s141
      %s143 = sphi 0, %s141
      %s144 = sphi 0, %s143
      %s158 = sphi 0, %s144
      %s162 = sphi 0, %s162
      %s164 = sphi 0, %s162
      %s165 = sphi 0, %s164
      %s179 = sphi 0, %s165
      %s183 = sphi 0, %s183
      %s185 = sphi 0, %s183
      %s186 = sphi 0, %s185
      %s200 = sphi 0, %s186
      %s204 = sphi 0, %s204
      %s206 = sphi 0, %s204
      %s207 = sphi 0, %s206
      %s221 = sphi 0, %s207
      %s227 = sphi 0, %s229
      %s230 = sphi 0, %s227
      %s231 = sphi 0, %s230
      %s247 = sphi 0, %s231
      %s253 = sphi 0, %s255
      %s256 = sphi 0, %s253
      %s257 = sphi 0, %s256
      %s273 = sphi 0, %s257
    $region4: #{tpu_custom_call.1} parent=1 // loop_header_branch
      %26 = sbr.rel (%p24) target = $region8
    $region5: #{tpu_custom_call.1} parent=1 // loop_body
      %s28 = ssub.s32 %s23, 1
      %s29 = ssub.s32 %s23, 2
      %s30 = sadd.s32 %s23, 1
      %s31 = ssub.s32 %s23, %s30
      %p32 = scmp.eq.s32.totalorder %s31, 0
      %s34 = sadd.s32 %s33, 1
      %s35 = scalar_select %p32, %s33, %s34
      %p38 = pneg %p32
      %p39 = scmp.eq.s32.totalorder %s23, 1
      %p40 = por %p38, %p39
      %p41 = scmp.ne.s32.totalorder %s33, %s36
      %p42 = scmp.eq.s32.totalorder %s23, 0
      %p43 = por %p41, %p42
      %p44 = scmp.ne.s32.totalorder %s33, %s36
      %p45 = scmp.eq.s32.totalorder %s28, 1
      %p46 = por %p44, %p45
      %p47 = scmp.ne.s32.totalorder %s36, %s37
      %p48 = scmp.eq.s32.totalorder %s28, 0
      %p49 = por %p47, %p48
      %p50 = scmp.ne.s32.totalorder %s36, %s37
      %p51 = scmp.eq.s32.totalorder %s29, 1
      %p52 = por %p50, %p51
      %p54 = scmp.ne.s32.totalorder %s37, %s53
      %p55 = scmp.eq.s32.totalorder %s29, 0
      %p56 = por %p54, %p55
      %s58 = sadd.s32 %s57, 1
      %p61 = scmp.eq.s32.totalorder %s23, 1
      %p62 = scmp.ne.s32.totalorder %s57, %s59
      %p63 = scmp.eq.s32.totalorder %s23, 0
      %p64 = por %p62, %p63
      %p65 = scmp.ne.s32.totalorder %s57, %s59
      %p66 = scmp.eq.s32.totalorder %s28, 1
      %p67 = por %p65, %p66
      %p68 = scmp.ne.s32.totalorder %s59, %s60
      %p69 = scmp.eq.s32.totalorder %s28, 0
      %p70 = por %p68, %p69
      %p71 = scmp.ne.s32.totalorder %s59, %s60
      %p72 = scmp.eq.s32.totalorder %s29, 1
      %p73 = por %p71, %p72
      %p75 = scmp.ne.s32.totalorder %s60, %s74
      %p76 = scmp.eq.s32.totalorder %s29, 0
      %p77 = por %p75, %p76
      %s79 = sadd.s32 %s78, 1
      %p82 = scmp.eq.s32.totalorder %s23, 1
      %p83 = scmp.ne.s32.totalorder %s78, %s80
      %p84 = scmp.eq.s32.totalorder %s23, 0
      %p85 = por %p83, %p84
      %p86 = scmp.ne.s32.totalorder %s78, %s80
      %p87 = scmp.eq.s32.totalorder %s28, 1
      %p88 = por %p86, %p87
      %p89 = scmp.ne.s32.totalorder %s80, %s81
      %p90 = scmp.eq.s32.totalorder %s28, 0
      %p91 = por %p89, %p90
      %p92 = scmp.ne.s32.totalorder %s80, %s81
      %p93 = scmp.eq.s32.totalorder %s29, 1
      %p94 = por %p92, %p93
      %p96 = scmp.ne.s32.totalorder %s81, %s95
      %p97 = scmp.eq.s32.totalorder %s29, 0
      %p98 = por %p96, %p97
      %s100 = sadd.s32 %s99, 1
      %p103 = scmp.eq.s32.totalorder %s23, 1
      %p104 = scmp.ne.s32.totalorder %s99, %s101
      %p105 = scmp.eq.s32.totalorder %s23, 0
      %p106 = por %p104, %p105
      %p107 = scmp.ne.s32.totalorder %s99, %s101
      %p108 = scmp.eq.s32.totalorder %s28, 1
      %p109 = por %p107, %p108
      %p110 = scmp.ne.s32.totalorder %s101, %s102
      %p111 = scmp.eq.s32.totalorder %s28, 0
      %p112 = por %p110, %p111
      %p113 = scmp.ne.s32.totalorder %s101, %s102
      %p114 = scmp.eq.s32.totalorder %s29, 1
      %p115 = por %p113, %p114
      %p117 = scmp.ne.s32.totalorder %s102, %s116
      %p118 = scmp.eq.s32.totalorder %s29, 0
      %p119 = por %p117, %p118
      %s121 = sadd.s32 %s120, 1
      %p124 = scmp.eq.s32.totalorder %s23, 1
      %p125 = scmp.ne.s32.totalorder %s120, %s122
      %p126 = scmp.eq.s32.totalorder %s23, 0
      %p127 = por %p125, %p126
      %p128 = scmp.ne.s32.totalorder %s120, %s122
      %p129 = scmp.eq.s32.totalorder %s28, 1
      %p130 = por %p128, %p129
      %p131 = scmp.ne.s32.totalorder %s122, %s123
      %p132 = scmp.eq.s32.totalorder %s28, 0
      %p133 = por %p131, %p132
      %p134 = scmp.ne.s32.totalorder %s122, %s123
      %p135 = scmp.eq.s32.totalorder %s29, 1
      %p136 = por %p134, %p135
      %p138 = scmp.ne.s32.totalorder %s123, %s137
      %p139 = scmp.eq.s32.totalorder %s29, 0
      %p140 = por %p138, %p139
      %s142 = sadd.s32 %s141, 1
      %p145 = scmp.eq.s32.totalorder %s23, 1
      %p146 = scmp.ne.s32.totalorder %s141, %s143
      %p147 = scmp.eq.s32.totalorder %s23, 0
      %p148 = por %p146, %p147
      %p149 = scmp.ne.s32.totalorder %s141, %s143
      %p150 = scmp.eq.s32.totalorder %s28, 1
      %p151 = por %p149, %p150
      %p152 = scmp.ne.s32.totalorder %s143, %s144
      %p153 = scmp.eq.s32.totalorder %s28, 0
      %p154 = por %p152, %p153
      %p155 = scmp.ne.s32.totalorder %s143, %s144
      %p156 = scmp.eq.s32.totalorder %s29, 1
      %p157 = por %p155, %p156
      %p159 = scmp.ne.s32.totalorder %s144, %s158
      %p160 = scmp.eq.s32.totalorder %s29, 0
      %p161 = por %p159, %p160
      %s163 = sadd.s32 %s162, 1
      %p166 = scmp.eq.s32.totalorder %s23, 1
      %p167 = scmp.ne.s32.totalorder %s162, %s164
      %p168 = scmp.eq.s32.totalorder %s23, 0
      %p169 = por %p167, %p168
      %p170 = scmp.ne.s32.totalorder %s162, %s164
      %p171 = scmp.eq.s32.totalorder %s28, 1
      %p172 = por %p170, %p171
      %p173 = scmp.ne.s32.totalorder %s164, %s165
      %p174 = scmp.eq.s32.totalorder %s28, 0
      %p175 = por %p173, %p174
      %p176 = scmp.ne.s32.totalorder %s164, %s165
      %p177 = scmp.eq.s32.totalorder %s29, 1
      %p178 = por %p176, %p177
      %p180 = scmp.ne.s32.totalorder %s165, %s179
      %p181 = scmp.eq.s32.totalorder %s29, 0
      %p182 = por %p180, %p181
      %s184 = sadd.s32 %s183, 1
      %p187 = scmp.eq.s32.totalorder %s23, 1
      %p188 = scmp.ne.s32.totalorder %s183, %s185
      %p189 = scmp.eq.s32.totalorder %s23, 0
      %p190 = por %p188, %p189
      %p191 = scmp.ne.s32.totalorder %s183, %s185
      %p192 = scmp.eq.s32.totalorder %s28, 1
      %p193 = por %p191, %p192
      %p194 = scmp.ne.s32.totalorder %s185, %s186
      %p195 = scmp.eq.s32.totalorder %s28, 0
      %p196 = por %p194, %p195
      %p197 = scmp.ne.s32.totalorder %s185, %s186
      %p198 = scmp.eq.s32.totalorder %s29, 1
      %p199 = por %p197, %p198
      %p201 = scmp.ne.s32.totalorder %s186, %s200
      %p202 = scmp.eq.s32.totalorder %s29, 0
      %p203 = por %p201, %p202
      %s205 = sadd.s32 %s204, 1
      %p208 = scmp.eq.s32.totalorder %s23, 1
      %p209 = scmp.ne.s32.totalorder %s204, %s206
      %p210 = scmp.eq.s32.totalorder %s23, 0
      %p211 = por %p209, %p210
      %p212 = scmp.ne.s32.totalorder %s204, %s206
      %p213 = scmp.eq.s32.totalorder %s28, 1
      %p214 = por %p212, %p213
      %p215 = scmp.ne.s32.totalorder %s206, %s207
      %p216 = scmp.eq.s32.totalorder %s28, 0
      %p217 = por %p215, %p216
      %p218 = scmp.ne.s32.totalorder %s206, %s207
      %p219 = scmp.eq.s32.totalorder %s29, 1
      %p220 = por %p218, %p219
      %p222 = scmp.ne.s32.totalorder %s207, %s221
      %p223 = scmp.eq.s32.totalorder %s29, 0
      %p224 = por %p222, %p223
      %s225 = ssub.s32 %s23, %s30
      %p226 = scmp.eq.s32.totalorder %s225, 0
      %s228 = sadd.s32 %s227, 1
      %s229 = scalar_select %p226, %s227, %s228
      %p232 = pneg %p226
      %p233 = scmp.eq.s32.totalorder %s23, 1
      %p234 = por %p232, %p233
      %p235 = scmp.ne.s32.totalorder %s227, %s230
      %p236 = scmp.eq.s32.totalorder %s23, 0
      %p237 = por %p235, %p236
      %p238 = scmp.ne.s32.totalorder %s227, %s230
      %p239 = scmp.eq.s32.totalorder %s28, 1
      %p240 = por %p238, %p239
      %p241 = scmp.ne.s32.totalorder %s230, %s231
      %p242 = scmp.eq.s32.totalorder %s28, 0
      %p243 = por %p241, %p242
      %p244 = scmp.ne.s32.totalorder %s230, %s231
      %p245 = scmp.eq.s32.totalorder %s29, 1
      %p246 = por %p244, %p245
      %p248 = scmp.ne.s32.totalorder %s231, %s247
      %p249 = scmp.eq.s32.totalorder %s29, 0
      %p250 = por %p248, %p249
      %s251 = ssub.s32 %s23, %s30
      %p252 = scmp.eq.s32.totalorder %s251, 0
      %s254 = sadd.s32 %s253, 1
      %s255 = scalar_select %p252, %s253, %s254
      %p258 = pneg %p252
      %p259 = scmp.eq.s32.totalorder %s23, 1
      %p260 = por %p258, %p259
      %p261 = scmp.ne.s32.totalorder %s253, %s256
      %p262 = scmp.eq.s32.totalorder %s23, 0
      %p263 = por %p261, %p262
      %p264 = scmp.ne.s32.totalorder %s253, %s256
      %p265 = scmp.eq.s32.totalorder %s28, 1
      %p266 = por %p264, %p265
      %p267 = scmp.ne.s32.totalorder %s256, %s257
      %p268 = scmp.eq.s32.totalorder %s28, 0
      %p269 = por %p267, %p268
      %p270 = scmp.ne.s32.totalorder %s256, %s257
      %p271 = scmp.eq.s32.totalorder %s29, 1
      %p272 = por %p270, %p271
      %p274 = scmp.ne.s32.totalorder %s257, %s273
      %p275 = scmp.eq.s32.totalorder %s29, 0
      %p276 = por %p274, %p275
      %p277 = scmp.le.s32.totalorder 1, %s23
      %p278 = scmp.lt.s32.totalorder %s23, 3
      %p279 = pnand %p277, %p278
      %p280 = pneg %p279
      // Predicated region
      $region9: #{tpu_custom_call.1} parent=5 // pred_check
        _
      $region10: #{tpu_custom_call.1} parent=5 // pred_check_branch
        %282 = sbr.rel (%p279) target = $region12
      $region11: #{tpu_custom_call.1} parent=5 // pred_region
        %s283 = ssub.s32 %s23, 1
        // Predicated region
        $region13: #{tpu_custom_call.1} parent=11 // pred_check
          %p284 = pneg %p70
        $region14: #{tpu_custom_call.1} parent=11 // pred_check_branch
          %286 = sbr.rel (%p284) target = $region16
        $region15: #{tpu_custom_call.1} parent=11 // pred_region
          %s288 = ssub.s32 2048, 2048
          %289 = vsyncadd [#allocation3], %s288
          %s290 = sshll.u32 [#allocation2], 4
          %s291 = int_to_ptr.vmem [resolvable:$true] %s290
          %296 = dma.hbm_to_vmem [thread:$0]  %s1, 2048, %s291, [#allocation3], 128, 128, 8
        $region16: #{tpu_custom_call.1} parent=11 // pred_fallthru
          _
        // Predicated region
        $region17: #{tpu_custom_call.1} parent=11 // pred_check
          %p297 = pneg %p91
        $region18: #{tpu_custom_call.1} parent=11 // pred_check_branch
          %299 = sbr.rel (%p297) target = $region20
        $region19: #{tpu_custom_call.1} parent=11 // pred_region
          %s301 = ssub.s32 512, 512
          %302 = vsyncadd [#allocation6], %s301
          %s303 = sshll.u32 [#allocation5], 4
          %s304 = int_to_ptr.vmem [resolvable:$true] %s303
          %309 = dma.hbm_to_vmem [thread:$0]  %s2, 512, %s304, [#allocation6], 128, 128, 8
        $region20: #{tpu_custom_call.1} parent=11 // pred_fallthru
          _
        // Predicated region
        $region21: #{tpu_custom_call.1} parent=11 // pred_check
          %p310 = pneg %p112
        $region22: #{tpu_custom_call.1} parent=11 // pred_check_branch
          %312 = sbr.rel (%p310) target = $region24
        $region23: #{tpu_custom_call.1} parent=11 // pred_region
          _
        $region24: #{tpu_custom_call.1} parent=11 // pred_fallthru
          _
        // Predicated region
        $region25: #{tpu_custom_call.1} parent=11 // pred_check
          %p313 = pneg %p133
        $region26: #{tpu_custom_call.1} parent=11 // pred_check_branch
          %315 = sbr.rel (%p313) target = $region28
        $region27: #{tpu_custom_call.1} parent=11 // pred_region
          %s317 = ssub.s32 2048, 2048
          %318 = vsyncadd [#allocation6], %s317
          %s319 = sshll.u32 [#allocation7], 4
          %s320 = int_to_ptr.vmem [resolvable:$true] %s319
          %325 = dma.hbm_to_vmem [thread:$0]  %s4, 2048, %s320, [#allocation6], 128, 128, 8
        $region28: #{tpu_custom_call.1} parent=11 // pred_fallthru
          _
        // Predicated region
        $region29: #{tpu_custom_call.1} parent=11 // pred_check
          %p326 = pneg %p154
        $region30: #{tpu_custom_call.1} parent=11 // pred_check_branch
          %328 = sbr.rel (%p326) target = $region32
        $region31: #{tpu_custom_call.1} parent=11 // pred_region
          _
        $region32: #{tpu_custom_call.1} parent=11 // pred_fallthru
          _
        // Predicated region
        $region33: #{tpu_custom_call.1} parent=11 // pred_check
          %p329 = pneg %p175
        $region34: #{tpu_custom_call.1} parent=11 // pred_check_branch
          %331 = sbr.rel (%p329) target = $region36
        $region35: #{tpu_custom_call.1} parent=11 // pred_region
          _
        $region36: #{tpu_custom_call.1} parent=11 // pred_fallthru
          _
        // Predicated region
        $region37: #{tpu_custom_call.1} parent=11 // pred_check
          %p332 = pneg %p196
        $region38: #{tpu_custom_call.1} parent=11 // pred_check_branch
          %334 = sbr.rel (%p332) target = $region40
        $region39: #{tpu_custom_call.1} parent=11 // pred_region
          %s336 = ssub.s32 512, 512
          %337 = vsyncadd [#allocation9], %s336
          %s338 = sshll.u32 [#allocation8], 4
          %s339 = int_to_ptr.vmem [resolvable:$true] %s338
          %344 = dma.hbm_to_vmem [thread:$0]  %s7, 512, %s339, [#allocation9], 128, 128, 8
        $region40: #{tpu_custom_call.1} parent=11 // pred_fallthru
          _
        // Predicated region
        $region41: #{tpu_custom_call.1} parent=11 // pred_check
          %p345 = pneg %p217
        $region42: #{tpu_custom_call.1} parent=11 // pred_check_branch
          %347 = sbr.rel (%p345) target = $region44
        $region43: #{tpu_custom_call.1} parent=11 // pred_region
          _
        $region44: #{tpu_custom_call.1} parent=11 // pred_fallthru
          _
      $region12: #{tpu_custom_call.1} parent=5 // pred_fallthru
        _
      %p348 = scmp.lt.s32.totalorder %s23, 2
      // Predicated region
      $region45: #{tpu_custom_call.1} parent=5 // pred_check
        %p349 = pneg %p348
      $region46: #{tpu_custom_call.1} parent=5 // pred_check_branch
        %351 = sbr.rel (%p349) target = $region48
      $region47: #{tpu_custom_call.1} parent=5 // pred_region
        // Predicated region
        $region49: #{tpu_custom_call.1} parent=47 // pred_check
          %p352 = pneg %p43
        $region50: #{tpu_custom_call.1} parent=47 // pred_check_branch
          %354 = sbr.rel (%p352) target = $region52
        $region51: #{tpu_custom_call.1} parent=47 // pred_region
          %p355 = scmp.lt.s32.totalorder %s23, 1
          %s356 = scalar_select %p355, %s23, 1
          %s357 = smul.addr %s356, 8
          %s358 = scalar_lea.vmem %s0, %s357
        $region52: #{tpu_custom_call.1} parent=47 // pred_fallthru
          _
      $region48: #{tpu_custom_call.1} parent=5 // pred_fallthru
        _
      %p359 = scmp.le.s32.totalorder 1, %s23
      %p360 = scmp.lt.s32.totalorder %s23, 3
      %p361 = pnand %p359, %p360
      %p362 = pneg %p361
      // Predicated region
      $region53: #{tpu_custom_call.1} parent=5 // pred_check
        _
      $region54: #{tpu_custom_call.1} parent=5 // pred_check_branch
        %364 = sbr.rel (%p361) target = $region56
      $region55: #{tpu_custom_call.1} parent=5 // pred_region
        %s365 = ssub.s32 %s23, 1
        // Predicated region
        $region57: #{tpu_custom_call.1} parent=55 // pred_check
          %p366 = pneg %p70
        $region58: #{tpu_custom_call.1} parent=55 // pred_check_branch
          %368 = sbr.rel (%p366) target = $region60
        $region59: #{tpu_custom_call.1} parent=55 // pred_region
          %369 = dma.done [#allocation3], 2048
        $region60: #{tpu_custom_call.1} parent=55 // pred_fallthru
          _
        // Predicated region
        $region61: #{tpu_custom_call.1} parent=55 // pred_check
          %p370 = pneg %p91
        $region62: #{tpu_custom_call.1} parent=55 // pred_check_branch
          %372 = sbr.rel (%p370) target = $region64
        $region63: #{tpu_custom_call.1} parent=55 // pred_region
          %373 = dma.done [#allocation6], 512
        $region64: #{tpu_custom_call.1} parent=55 // pred_fallthru
          _
        // Predicated region
        $region65: #{tpu_custom_call.1} parent=55 // pred_check
          %p374 = pneg %p133
        $region66: #{tpu_custom_call.1} parent=55 // pred_check_branch
          %376 = sbr.rel (%p374) target = $region68
        $region67: #{tpu_custom_call.1} parent=55 // pred_region
          %377 = dma.done [#allocation6], 2048
        $region68: #{tpu_custom_call.1} parent=55 // pred_fallthru
          _
        // Predicated region
        $region69: #{tpu_custom_call.1} parent=55 // pred_check
          %p378 = pneg %p196
        $region70: #{tpu_custom_call.1} parent=55 // pred_check_branch
          %380 = sbr.rel (%p378) target = $region72
        $region71: #{tpu_custom_call.1} parent=55 // pred_region
          %381 = dma.done [#allocation9], 512
        $region72: #{tpu_custom_call.1} parent=55 // pred_fallthru
          _
        %p382 = scmp.lt.s32.totalorder %s28, 1
        %s383 = scalar_select %p382, %s28, 1
        %s384 = smul.addr %s383, 8
        %s385 = scalar_lea.vmem %s0, %s384
        %p386 = pneg %p49
        %p387 = pneg %p46
        %p388 = pneg %p70
        %p389 = pneg %p67
        %p390 = pneg %p91
        %p391 = pneg %p88
        %p392 = pneg %p112
        %p393 = pneg %p109
        %p394 = pneg %p133
        %p395 = pneg %p130
        %p396 = pneg %p154
        %p397 = pneg %p151
        %p398 = pneg %p175
        %p399 = pneg %p172
        %p400 = pneg %p196
        %p401 = pneg %p193
        %p402 = pneg %p217
        %p403 = pneg %p214
        %p404 = pneg %p243
        %p405 = pneg %p240
        %s406 = sand.u32 %s230, 1
        %s407 = scalar_lea.sflag [#allocation4], %s406
        %s408 = sand.u32 %s230, 1
        %s409 = smul.addr %s408, 64
        %s410 = scalar_lea.vmem [#allocation10], %s409
        %p411 = pneg %p269
        %p412 = pneg %p266
        %p413 = scmp.lt.s32.totalorder %s28, 1
        %s414 = scalar_select %p413, %s28, 1
        %s415 = smul.addr %s414, 8
        %s416 = scalar_lea.vmem %s10, %s415
        %p417 = scmp.lt.s32.totalorder %s28, 1
        %s418 = scalar_select %p417, %s28, 1
        %s419 = smul.addr %s418, 8
        %s420 = scalar_lea.vmem %s0, %s419
        %p421 = scmp.lt.s32.totalorder %s28, 1
        %s422 = scalar_select %p421, %s28, 1
        %s423 = smul.addr %s422, 8
        %s424 = scalar_lea.vmem %s10, %s423
        %v425 = vlaneseq
        %v426 = vand.u32 %v425, 127
        %v427 = vld [vmem:[%s420] sm:$0xff]
        %428 = vset.pattern.permute.xlu0 0
        %429 = vperm.xlu0 %428, %v427
        %v430 = vpop.permute.xlu0 %429
        %vm431 = vcmp.eq.s32.totalorder %v430, %v426
        %v432 = vsel %vm431, 1, 0
        %v433 = vcvt.s32.f32 %v432
        %v434 = vld [vmem:[#allocation2] sm:$0xff]
        %v435 = vld [vmem:[#allocation2 + $0x8] sm:$0xff]
        %v436 = vld [vmem:[#allocation2 + $0x10] sm:$0xff]
        %v437 = vld [vmem:[#allocation2 + $0x18] sm:$0xff]
        %v438 = vld [vmem:[#allocation2 + $0x20] sm:$0xff]
        %v439 = vld [vmem:[#allocation2 + $0x28] sm:$0xff]
        %v440 = vld [vmem:[#allocation2 + $0x30] sm:$0xff]
        %v441 = vld [vmem:[#allocation2 + $0x38] sm:$0xff]
        %v442 = vld [vmem:[#allocation2 + $0x40] sm:$0xff]
        %v443 = vld [vmem:[#allocation2 + $0x48] sm:$0xff]
        %v444 = vld [vmem:[#allocation2 + $0x50] sm:$0xff]
        %v445 = vld [vmem:[#allocation2 + $0x58] sm:$0xff]
        %v446 = vld [vmem:[#allocation2 + $0x60] sm:$0xff]
        %v447 = vld [vmem:[#allocation2 + $0x68] sm:$0xff]
        %v448 = vld [vmem:[#allocation2 + $0x70] sm:$0xff]
        %v449 = vld [vmem:[#allocation2 + $0x78] sm:$0xff]
        %450 = vset.pattern.permute.xlu0 1
        %451 = vperm.xlu0 %450, %v427
        %v452 = vpop.permute.xlu0 %451
        %vm453 = vcmp.eq.s32.totalorder %v452, %v426
        %v454 = vsel %vm453, 1, 0
        %v455 = vcvt.s32.f32 %v454
        %456 = vset.pattern.permute.xlu0 2
        %457 = vperm.xlu0 %456, %v427
        %v458 = vpop.permute.xlu0 %457
        %vm459 = vcmp.eq.s32.totalorder %v458, %v426
        %v460 = vsel %vm459, 1, 0
        %v461 = vcvt.s32.f32 %v460
        %462 = vset.pattern.permute.xlu0 3
        %463 = vperm.xlu0 %462, %v427
        %v464 = vpop.permute.xlu0 %463
        %vm465 = vcmp.eq.s32.totalorder %v464, %v426
        %v466 = vsel %vm465, 1, 0
        %v467 = vcvt.s32.f32 %v466
        %468 = vset.pattern.permute.xlu0 4
        %469 = vperm.xlu0 %468, %v427
        %v470 = vpop.permute.xlu0 %469
        %vm471 = vcmp.eq.s32.totalorder %v470, %v426
        %v472 = vsel %vm471, 1, 0
        %v473 = vcvt.s32.f32 %v472
        %474 = vset.pattern.permute.xlu0 5
        %475 = vperm.xlu0 %474, %v427
        %v476 = vpop.permute.xlu0 %475
        %vm477 = vcmp.eq.s32.totalorder %v476, %v426
        %v478 = vsel %vm477, 1, 0
        %v479 = vcvt.s32.f32 %v478
        %480 = vset.pattern.permute.xlu0 6
        %481 = vperm.xlu0 %480, %v427
        %v482 = vpop.permute.xlu0 %481
        %vm483 = vcmp.eq.s32.totalorder %v482, %v426
        %v484 = vsel %vm483, 1, 0
        %v485 = vcvt.s32.f32 %v484
        %486 = vset.pattern.permute.xlu0 7
        %487 = vperm.xlu0 %486, %v427
        %v488 = vpop.permute.xlu0 %487
        %vm489 = vcmp.eq.s32.totalorder %v488, %v426
        %v490 = vsel %vm489, 1, 0
        %v491 = vcvt.s32.f32 %v490
        %v492 = vld [vmem:[#allocation5] sm:$0xff]
        %v493 = vld [vmem:[#allocation5 + $0x8] sm:$0xff]
        %v494 = vld [vmem:[#allocation5 + $0x10] sm:$0xff]
        %v495 = vld [vmem:[#allocation5 + $0x18] sm:$0xff]
        %vm496 = vcmask 261120
        %v498 = vsel %vm496, 0.0, 0
        %500 = vmatprep.subr.mxu0 0.0
        %501 = vmatpush1.msra.mxu0 %v492
        %502 = vmatprep.subr.mxu0 0.0
        %503 = vmatpush1.msra.mxu0 %v493
        %504 = vmatprep.subr.mxu0 0.0
        %505 = vmatpush1.msra.mxu0 %v494
        %506 = vmatprep.subr.mxu0 0.0
        %507 = vmatpush1.msra.mxu0 %v495
        %508 = vmatprep.subr.mxu0 0.0
        %509 = vmatpush1.msra.mxu0 0.0
        %510 = vmatprep.subr.mxu0 0.0
        %511 = vmatpush1.msra.mxu0 0.0
        %512 = vmatprep.subr.mxu0 0.0
        %513 = vmatpush1.msra.mxu0 0.0
        %514 = vmatprep.subr.mxu0 0.0
        %515 = vmatpush1.msra.mxu0 0.0
        %516 = vmatprep.subr.mxu0 0.0
        %517 = vmatpush1.msra.mxu0 0.0
        %518 = vmatprep.subr.mxu0 0.0
        %519 = vmatpush1.msra.mxu0 0.0
        %520 = vmatprep.subr.mxu0 0.0
        %521 = vmatpush1.msra.mxu0 0.0
        %522 = vmatprep.subr.mxu0 0.0
        %523 = vmatpush1.msra.mxu0 0.0
        %524 = vmatprep.subr.mxu0 0.0
        %525 = vmatpush1.msra.mxu0 0.0
        %526 = vmatprep.subr.mxu0 0.0
        %527 = vmatpush1.msra.mxu0 0.0
        %528 = vmatprep.subr.mxu0 0.0
        %529 = vmatpush1.msra.mxu0 0.0
        %530 = vmatprep.subr.mxu0 0.0
        %531 = vmatpush1.msra.mxu0 0.0
        %532 = vmatprep.subr.mxu0 0.0
        %533 = vmatpush1.msra.mxu0 0.0
        %534 = vmatprep.subr.mxu0 0.0
        %535 = vmatpush1.msra.mxu0 0.0
        %536 = vmatprep.subr.mxu0 0.0
        %537 = vmatpush1.msra.mxu0 0.0
        %538 = vmatprep.subr.mxu0 0.0
        %539 = vmatpush1.msra.mxu0 0.0
        %540 = vmatprep.subr.mxu0 0.0
        %541 = vmatpush1.msra.mxu0 0.0
        %542 = vmatprep.subr.mxu0 0.0
        %543 = vmatpush1.msra.mxu0 0.0
        %544 = vmatprep.subr.mxu0 0.0
        %545 = vmatpush1.msra.mxu0 0.0
        %546 = vmatprep.subr.mxu0 0.0
        %547 = vmatpush1.msra.mxu0 0.0
        %548 = vmatprep.subr.mxu0 0.0
        %549 = vmatpush1.msra.mxu0 0.0
        %550 = vmatprep.subr.mxu0 0.0
        %551 = vmatpush1.msra.mxu0 0.0
        %552 = vmatprep.subr.mxu0 0.0
        %553 = vmatpush1.msra.mxu0 0.0
        %554 = vmatprep.subr.mxu0 0.0
        %555 = vmatpush1.msra.mxu0 0.0
        %556 = vmatprep.subr.mxu0 0.0
        %557 = vmatpush1.msra.mxu0 0.0
        %558 = vmatprep.subr.mxu0 0.0
        %559 = vmatpush1.msra.mxu0 0.0
        %560 = vmatprep.subr.mxu0 0.0
        %561 = vmatpush1.msra.mxu0 0.0
        %562 = vmatprep.subr.mxu0 0.0
        %563 = vmatpush1.msra.mxu0 0.0
        %564 = vmatprep.mubr.f32.mxu0 0.0
        %565 = vmatmul.mubr.f32.gmra.mrb[0].mxu0 %v498
        %v566 = vpop.f32.mrb[0].mxu0
        %v567 = vadd.f32 0.0, %v566
        %v568 = vpop.f32.mrb[0].mxu0
        %569 = vdwg.mxu0
        %570 = vmatprep.subr.mxu0 0.0
        %571 = vmatpush1.msra.mxu0 %v434
        %572 = vmatprep.subr.mxu0 0.0
        %573 = vmatpush1.msra.mxu0 %v435
        %574 = vmatprep.subr.mxu0 0.0
        %575 = vmatpush1.msra.mxu0 %v436
        %576 = vmatprep.subr.mxu0 0.0
        %577 = vmatpush1.msra.mxu0 %v437
        %578 = vmatprep.subr.mxu0 0.0
        %579 = vmatpush1.msra.mxu0 %v438
        %580 = vmatprep.subr.mxu0 0.0
        %581 = vmatpush1.msra.mxu0 %v439
        %582 = vmatprep.subr.mxu0 0.0
        %583 = vmatpush1.msra.mxu0 %v440
        %584 = vmatprep.subr.mxu0 0.0
        %585 = vmatpush1.msra.mxu0 %v441
        %586 = vmatprep.subr.mxu0 0.0
        %587 = vmatpush1.msra.mxu0 %v442
        %588 = vmatprep.subr.mxu0 0.0
        %589 = vmatpush1.msra.mxu0 %v443
        %590 = vmatprep.subr.mxu0 0.0
        %591 = vmatpush1.msra.mxu0 %v444
        %592 = vmatprep.subr.mxu0 0.0
        %593 = vmatpush1.msra.mxu0 %v445
        %594 = vmatprep.subr.mxu0 0.0
        %595 = vmatpush1.msra.mxu0 %v446
        %596 = vmatprep.subr.mxu0 0.0
        %597 = vmatpush1.msra.mxu0 %v447
        %598 = vmatprep.subr.mxu0 0.0
        %599 = vmatpush1.msra.mxu0 %v448
        %600 = vmatprep.subr.mxu0 0.0
        %601 = vmatpush1.msra.mxu0 %v449
        %602 = vmatprep.subr.mxu0 0.0
        %603 = vmatpush1.msra.mxu0 0.0
        %604 = vmatprep.subr.mxu0 0.0
        %605 = vmatpush1.msra.mxu0 0.0
        %606 = vmatprep.subr.mxu0 0.0
        %607 = vmatpush1.msra.mxu0 0.0
        %608 = vmatprep.subr.mxu0 0.0
        %609 = vmatpush1.msra.mxu0 0.0
        %610 = vmatprep.subr.mxu0 0.0
        %611 = vmatpush1.msra.mxu0 0.0
        %612 = vmatprep.subr.mxu0 0.0
        %613 = vmatpush1.msra.mxu0 0.0
        %614 = vmatprep.subr.mxu0 0.0
        %615 = vmatpush1.msra.mxu0 0.0
        %616 = vmatprep.subr.mxu0 0.0
        %617 = vmatpush1.msra.mxu0 0.0
        %618 = vmatprep.subr.mxu0 0.0
        %619 = vmatpush1.msra.mxu0 0.0
        %620 = vmatprep.subr.mxu0 0.0
        %621 = vmatpush1.msra.mxu0 0.0
        %622 = vmatprep.subr.mxu0 0.0
        %623 = vmatpush1.msra.mxu0 0.0
        %624 = vmatprep.subr.mxu0 0.0
        %625 = vmatpush1.msra.mxu0 0.0
        %626 = vmatprep.subr.mxu0 0.0
        %627 = vmatpush1.msra.mxu0 0.0
        %628 = vmatprep.subr.mxu0 0.0
        %629 = vmatpush1.msra.mxu0 0.0
        %630 = vmatprep.subr.mxu0 0.0
        %631 = vmatpush1.msra.mxu0 0.0
        %632 = vmatprep.subr.mxu0 0.0
        %633 = vmatpush1.msra.mxu0 0.0
        %634 = vmatprep.mubr.f32.mxu0 0.0
        %635 = vmatmul.mubr.f32.gmra.mrb[0].mxu0 %v433
        %v636 = vpop.f32.mrb[0].mxu0
        %v637 = vadd.f32 %v567, %v636
        %v638 = vpop.f32.mrb[0].mxu0
        %639 = vdwg.mxu0
        %v640 = vld [vmem:[%s3] sm:$0x1]
        %v642 = vlaneseq
        %v643 = vshrl.u32 %v642, 7
        %v644 = vsub.s32 0, %v643
        %v645 = vrot.slane %v640, %v644
        %v647 = vadd.f32 %v637, %v645
        %v648 = vxor.u32 %v647, 2147483648
        %v649 = vmul.f32 %v648, 1.442695
        %v650 = vpow.pop %v649
        %v651 = vadd.f32 %v650, 1.0
        %v652 = vrcp.pop %v651
        %v653 = vmul.f32 1.0, %v652
        %v654 = vtanh.pop %v647
        %v655 = vmul.f32 %v653, 0.0
        %657 = vrot.lane.b32.xlu0 %v654, 32
        %v658 = vpop.permute.xlu0 %657
        %v660 = vmul.f32 %v653, %v658
        %662 = vrot.lane.b32.xlu0 %v660, 32
        %v663 = vpop.permute.xlu0 %662
        %v665 = vadd.f32 %v655, %v663
        %v666 = vtanh.pop %v665
        %668 = vrot.lane.b32.xlu0 %v666, 32
        %v669 = vpop.permute.xlu0 %668
        %v671 = vmul.f32 %v653, %v669
        %673 = vrot.lane.b32.xlu0 %v671, 64
        %v674 = vpop.permute.xlu0 %673
        %676 = vst.msk [vmem:[%s410] sm:$0xff] %vm496, %v674
        %v677 = vld [vmem:[#allocation5] sm:$0xff]
        %v678 = vld [vmem:[#allocation5 + $0x8] sm:$0xff]
        %v679 = vld [vmem:[#allocation5 + $0x10] sm:$0xff]
        %v680 = vld [vmem:[#allocation5 + $0x18] sm:$0xff]
        %v681 = vsel %vm496, %v674, 0
        %683 = vmatprep.subr.mxu0 0.0
        %684 = vmatpush1.msra.mxu0 %v677
        %685 = vmatprep.subr.mxu0 0.0
        %686 = vmatpush1.msra.mxu0 %v678
        %687 = vmatprep.subr.mxu0 0.0
        %688 = vmatpush1.msra.mxu0 %v679
        %689 = vmatprep.subr.mxu0 0.0
        %690 = vmatpush1.msra.mxu0 %v680
        %691 = vmatprep.subr.mxu0 0.0
        %692 = vmatpush1.msra.mxu0 0.0
        %693 = vmatprep.subr.mxu0 0.0
        %694 = vmatpush1.msra.mxu0 0.0
        %695 = vmatprep.subr.mxu0 0.0
        %696 = vmatpush1.msra.mxu0 0.0
        %697 = vmatprep.subr.mxu0 0.0
        %698 = vmatpush1.msra.mxu0 0.0
        %699 = vmatprep.subr.mxu0 0.0
        %700 = vmatpush1.msra.mxu0 0.0
        %701 = vmatprep.subr.mxu0 0.0
        %702 = vmatpush1.msra.mxu0 0.0
        %703 = vmatprep.subr.mxu0 0.0
        %704 = vmatpush1.msra.mxu0 0.0
        %705 = vmatprep.subr.mxu0 0.0
        %706 = vmatpush1.msra.mxu0 0.0
        %707 = vmatprep.subr.mxu0 0.0
        %708 = vmatpush1.msra.mxu0 0.0
        %709 = vmatprep.subr.mxu0 0.0
        %710 = vmatpush1.msra.mxu0 0.0
        %711 = vmatprep.subr.mxu0 0.0
        %712 = vmatpush1.msra.mxu0 0.0
        %713 = vmatprep.subr.mxu0 0.0
        %714 = vmatpush1.msra.mxu0 0.0
        %715 = vmatprep.subr.mxu0 0.0
        %716 = vmatpush1.msra.mxu0 0.0
        %717 = vmatprep.subr.mxu0 0.0
        %718 = vmatpush1.msra.mxu0 0.0
        %719 = vmatprep.subr.mxu0 0.0
        %720 = vmatpush1.msra.mxu0 0.0
        %721 = vmatprep.subr.mxu0 0.0
        %722 = vmatpush1.msra.mxu0 0.0
        %723 = vmatprep.subr.mxu0 0.0
        %724 = vmatpush1.msra.mxu0 0.0
        %725 = vmatprep.subr.mxu0 0.0
        %726 = vmatpush1.msra.mxu0 0.0
        %727 = vmatprep.subr.mxu0 0.0
        %728 = vmatpush1.msra.mxu0 0.0
        %729 = vmatprep.subr.mxu0 0.0
        %730 = vmatpush1.msra.mxu0 0.0
        %731 = vmatprep.subr.mxu0 0.0
        %732 = vmatpush1.msra.mxu0 0.0
        %733 = vmatprep.subr.mxu0 0.0
        %734 = vmatpush1.msra.mxu0 0.0
        %735 = vmatprep.subr.mxu0 0.0
        %736 = vmatpush1.msra.mxu0 0.0
        %737 = vmatprep.subr.mxu0 0.0
        %738 = vmatpush1.msra.mxu0 0.0
        %739 = vmatprep.subr.mxu0 0.0
        %740 = vmatpush1.msra.mxu0 0.0
        %741 = vmatprep.subr.mxu0 0.0
        %742 = vmatpush1.msra.mxu0 0.0
        %743 = vmatprep.subr.mxu0 0.0
        %744 = vmatpush1.msra.mxu0 0.0
        %745 = vmatprep.subr.mxu0 0.0
        %746 = vmatpush1.msra.mxu0 0.0
        %747 = vmatprep.mubr.f32.mxu0 0.0
        %748 = vmatmul.mubr.f32.gmra.mrb[0].mxu0 %v681
        %v749 = vpop.f32.mrb[0].mxu0
        %v750 = vadd.f32 0.0, %v749
        %v751 = vpop.f32.mrb[0].mxu0
        %752 = vdwg.mxu0
        %753 = vmatprep.subr.mxu0 0.0
        %754 = vmatpush1.msra.mxu0 %v434
        %755 = vmatprep.subr.mxu0 0.0
        %756 = vmatpush1.msra.mxu0 %v435
        %757 = vmatprep.subr.mxu0 0.0
        %758 = vmatpush1.msra.mxu0 %v436
        %759 = vmatprep.subr.mxu0 0.0
        %760 = vmatpush1.msra.mxu0 %v437
        %761 = vmatprep.subr.mxu0 0.0
        %762 = vmatpush1.msra.mxu0 %v438
        %763 = vmatprep.subr.mxu0 0.0
        %764 = vmatpush1.msra.mxu0 %v439
        %765 = vmatprep.subr.mxu0 0.0
        %766 = vmatpush1.msra.mxu0 %v440
        %767 = vmatprep.subr.mxu0 0.0
        %768 = vmatpush1.msra.mxu0 %v441
        %769 = vmatprep.subr.mxu0 0.0
        %770 = vmatpush1.msra.mxu0 %v442
        %771 = vmatprep.subr.mxu0 0.0
        %772 = vmatpush1.msra.mxu0 %v443
        %773 = vmatprep.subr.mxu0 0.0
        %774 = vmatpush1.msra.mxu0 %v444
        %775 = vmatprep.subr.mxu0 0.0
        %776 = vmatpush1.msra.mxu0 %v445
        %777 = vmatprep.subr.mxu0 0.0
        %778 = vmatpush1.msra.mxu0 %v446
        %779 = vmatprep.subr.mxu0 0.0
        %780 = vmatpush1.msra.mxu0 %v447
        %781 = vmatprep.subr.mxu0 0.0
        %782 = vmatpush1.msra.mxu0 %v448
        %783 = vmatprep.subr.mxu0 0.0
        %784 = vmatpush1.msra.mxu0 %v449
        %785 = vmatprep.subr.mxu0 0.0
        %786 = vmatpush1.msra.mxu0 0.0
        %787 = vmatprep.subr.mxu0 0.0
        %788 = vmatpush1.msra.mxu0 0.0
        %789 = vmatprep.subr.mxu0 0.0
        %790 = vmatpush1.msra.mxu0 0.0
        %791 = vmatprep.subr.mxu0 0.0
        %792 = vmatpush1.msra.mxu0 0.0
        %793 = vmatprep.subr.mxu0 0.0
        %794 = vmatpush1.msra.mxu0 0.0
        %795 = vmatprep.subr.mxu0 0.0
        %796 = vmatpush1.msra.mxu0 0.0
        %797 = vmatprep.subr.mxu0 0.0
        %798 = vmatpush1.msra.mxu0 0.0
        %799 = vmatprep.subr.mxu0 0.0
        %800 = vmatpush1.msra.mxu0 0.0
        %801 = vmatprep.subr.mxu0 0.0
        %802 = vmatpush1.msra.mxu0 0.0
        %803 = vmatprep.subr.mxu0 0.0
        %804 = vmatpush1.msra.mxu0 0.0
        %805 = vmatprep.subr.mxu0 0.0
        %806 = vmatpush1.msra.mxu0 0.0
        %807 = vmatprep.subr.mxu0 0.0
        %808 = vmatpush1.msra.mxu0 0.0
        %809 = vmatprep.subr.mxu0 0.0
        %810 = vmatpush1.msra.mxu0 0.0
        %811 = vmatprep.subr.mxu0 0.0
        %812 = vmatpush1.msra.mxu0 0.0
        %813 = vmatprep.subr.mxu0 0.0
        %814 = vmatpush1.msra.mxu0 0.0
        %815 = vmatprep.subr.mxu0 0.0
        %816 = vmatpush1.msra.mxu0 0.0
        %817 = vmatprep.mubr.f32.mxu0 0.0
        %818 = vmatmul.mubr.f32.gmra.mrb[0].mxu0 %v455
        %v819 = vpop.f32.mrb[0].mxu0
        %v820 = vadd.f32 %v750, %v819
        %v821 = vpop.f32.mrb[0].mxu0
        %822 = vdwg.mxu0
        %v823 = vld [vmem:[%s3] sm:$0x1]
        %v825 = vlaneseq
        %v826 = vshrl.u32 %v825, 7
        %v827 = vsub.s32 0, %v826
        %v828 = vrot.slane %v823, %v827
        %v830 = vadd.f32 %v820, %v828
        %v831 = vxor.u32 %v830, 2147483648
        %v832 = vmul.f32 %v831, 1.442695
        %v833 = vpow.pop %v832
        %v834 = vadd.f32 %v833, 1.0
        %v835 = vrcp.pop %v834
        %v836 = vmul.f32 1.0, %v835
        %v837 = vtanh.pop %v830
        %v838 = vmul.f32 %v836, %v665
        %840 = vrot.lane.b32.xlu0 %v837, 32
        %v841 = vpop.permute.xlu0 %840
        %v843 = vmul.f32 %v836, %v841
        %845 = vrot.lane.b32.xlu0 %v843, 32
        %v846 = vpop.permute.xlu0 %845
        %v848 = vadd.f32 %v838, %v846
        %v849 = vtanh.pop %v848
        %851 = vrot.lane.b32.xlu0 %v849, 32
        %v852 = vpop.permute.xlu0 %851
        %v854 = vmul.f32 %v836, %v852
        %856 = vrot.lane.b32.xlu0 %v854, 64
        %v857 = vpop.permute.xlu0 %856
        %s859 = scalar_lea.vmem %s410, 8 [#allocation10]
        %860 = vst.msk [vmem:[%s859] sm:$0xff] %vm496, %v857
        %v861 = vld [vmem:[#allocation5] sm:$0xff]
        %v862 = vld [vmem:[#allocation5 + $0x8] sm:$0xff]
        %v863 = vld [vmem:[#allocation5 + $0x10] sm:$0xff]
        %v864 = vld [vmem:[#allocation5 + $0x18] sm:$0xff]
        %v865 = vsel %vm496, %v857, 0
        %867 = vmatprep.subr.mxu0 0.0
        %868 = vmatpush1.msra.mxu0 %v861
        %869 = vmatprep.subr.mxu0 0.0
        %870 = vmatpush1.msra.mxu0 %v862
        %871 = vmatprep.subr.mxu0 0.0
        %872 = vmatpush1.msra.mxu0 %v863
        %873 = vmatprep.subr.mxu0 0.0
        %874 = vmatpush1.msra.mxu0 %v864
        %875 = vmatprep.subr.mxu0 0.0
        %876 = vmatpush1.msra.mxu0 0.0
        %877 = vmatprep.subr.mxu0 0.0
        %878 = vmatpush1.msra.mxu0 0.0
        %879 = vmatprep.subr.mxu0 0.0
        %880 = vmatpush1.msra.mxu0 0.0
        %881 = vmatprep.subr.mxu0 0.0
        %882 = vmatpush1.msra.mxu0 0.0
        %883 = vmatprep.subr.mxu0 0.0
        %884 = vmatpush1.msra.mxu0 0.0
        %885 = vmatprep.subr.mxu0 0.0
        %886 = vmatpush1.msra.mxu0 0.0
        %887 = vmatprep.subr.mxu0 0.0
        %888 = vmatpush1.msra.mxu0 0.0
        %889 = vmatprep.subr.mxu0 0.0
        %890 = vmatpush1.msra.mxu0 0.0
        %891 = vmatprep.subr.mxu0 0.0
        %892 = vmatpush1.msra.mxu0 0.0
        %893 = vmatprep.subr.mxu0 0.0
        %894 = vmatpush1.msra.mxu0 0.0
        %895 = vmatprep.subr.mxu0 0.0
        %896 = vmatpush1.msra.mxu0 0.0
        %897 = vmatprep.subr.mxu0 0.0
        %898 = vmatpush1.msra.mxu0 0.0
        %899 = vmatprep.subr.mxu0 0.0
        %900 = vmatpush1.msra.mxu0 0.0
        %901 = vmatprep.subr.mxu0 0.0
        %902 = vmatpush1.msra.mxu0 0.0
        %903 = vmatprep.subr.mxu0 0.0
        %904 = vmatpush1.msra.mxu0 0.0
        %905 = vmatprep.subr.mxu0 0.0
        %906 = vmatpush1.msra.mxu0 0.0
        %907 = vmatprep.subr.mxu0 0.0
        %908 = vmatpush1.msra.mxu0 0.0
        %909 = vmatprep.subr.mxu0 0.0
        %910 = vmatpush1.msra.mxu0 0.0
        %911 = vmatprep.subr.mxu0 0.0
        %912 = vmatpush1.msra.mxu0 0.0
        %913 = vmatprep.subr.mxu0 0.0
        %914 = vmatpush1.msra.mxu0 0.0
        %915 = vmatprep.subr.mxu0 0.0
        %916 = vmatpush1.msra.mxu0 0.0
        %917 = vmatprep.subr.mxu0 0.0
        %918 = vmatpush1.msra.mxu0 0.0
        %919 = vmatprep.subr.mxu0 0.0
        %920 = vmatpush1.msra.mxu0 0.0
        %921 = vmatprep.subr.mxu0 0.0
        %922 = vmatpush1.msra.mxu0 0.0
        %923 = vmatprep.subr.mxu0 0.0
        %924 = vmatpush1.msra.mxu0 0.0
        %925 = vmatprep.subr.mxu0 0.0
        %926 = vmatpush1.msra.mxu0 0.0
        %927 = vmatprep.subr.mxu0 0.0
        %928 = vmatpush1.msra.mxu0 0.0
        %929 = vmatprep.subr.mxu0 0.0
        %930 = vmatpush1.msra.mxu0 0.0
        %931 = vmatprep.mubr.f32.mxu0 0.0
        %932 = vmatmul.mubr.f32.gmra.mrb[0].mxu0 %v865
        %v933 = vpop.f32.mrb[0].mxu0
        %v934 = vadd.f32 0.0, %v933
        %v935 = vpop.f32.mrb[0].mxu0
        %936 = vdwg.mxu0
        %937 = vmatprep.subr.mxu0 0.0
        %938 = vmatpush1.msra.mxu0 %v434
        %939 = vmatprep.subr.mxu0 0.0
        %940 = vmatpush1.msra.mxu0 %v435
        %941 = vmatprep.subr.mxu0 0.0
        %942 = vmatpush1.msra.mxu0 %v436
        %943 = vmatprep.subr.mxu0 0.0
        %944 = vmatpush1.msra.mxu0 %v437
        %945 = vmatprep.subr.mxu0 0.0
        %946 = vmatpush1.msra.mxu0 %v438
        %947 = vmatprep.subr.mxu0 0.0
        %948 = vmatpush1.msra.mxu0 %v439
        %949 = vmatprep.subr.mxu0 0.0
        %950 = vmatpush1.msra.mxu0 %v440
        %951 = vmatprep.subr.mxu0 0.0
        %952 = vmatpush1.msra.mxu0 %v441
        %953 = vmatprep.subr.mxu0 0.0
        %954 = vmatpush1.msra.mxu0 %v442
        %955 = vmatprep.subr.mxu0 0.0
        %956 = vmatpush1.msra.mxu0 %v443
        %957 = vmatprep.subr.mxu0 0.0
        %958 = vmatpush1.msra.mxu0 %v444
        %959 = vmatprep.subr.mxu0 0.0
        %960 = vmatpush1.msra.mxu0 %v445
        %961 = vmatprep.subr.mxu0 0.0
        %962 = vmatpush1.msra.mxu0 %v446
        %963 = vmatprep.subr.mxu0 0.0
        %964 = vmatpush1.msra.mxu0 %v447
        %965 = vmatprep.subr.mxu0 0.0
        %966 = vmatpush1.msra.mxu0 %v448
        %967 = vmatprep.subr.mxu0 0.0
        %968 = vmatpush1.msra.mxu0 %v449
        %969 = vmatprep.subr.mxu0 0.0
        %970 = vmatpush1.msra.mxu0 0.0
        %971 = vmatprep.subr.mxu0 0.0
        %972 = vmatpush1.msra.mxu0 0.0
        %973 = vmatprep.subr.mxu0 0.0
        %974 = vmatpush1.msra.mxu0 0.0
        %975 = vmatprep.subr.mxu0 0.0
        %976 = vmatpush1.msra.mxu0 0.0
        %977 = vmatprep.subr.mxu0 0.0
        %978 = vmatpush1.msra.mxu0 0.0
        %979 = vmatprep.subr.mxu0 0.0
        %980 = vmatpush1.msra.mxu0 0.0
        %981 = vmatprep.subr.mxu0 0.0
        %982 = vmatpush1.msra.mxu0 0.0
        %983 = vmatprep.subr.mxu0 0.0
        %984 = vmatpush1.msra.mxu0 0.0
        %985 = vmatprep.subr.mxu0 0.0
        %986 = vmatpush1.msra.mxu0 0.0
        %987 = vmatprep.subr.mxu0 0.0
        %988 = vmatpush1.msra.mxu0 0.0
        %989 = vmatprep.subr.mxu0 0.0
        %990 = vmatpush1.msra.mxu0 0.0
        %991 = vmatprep.subr.mxu0 0.0
        %992 = vmatpush1.msra.mxu0 0.0
        %993 = vmatprep.subr.mxu0 0.0
        %994 = vmatpush1.msra.mxu0 0.0
        %995 = vmatprep.subr.mxu0 0.0
        %996 = vmatpush1.msra.mxu0 0.0
        %997 = vmatprep.subr.mxu0 0.0
        %998 = vmatpush1.msra.mxu0 0.0
        %999 = vmatprep.subr.mxu0 0.0
        %1000 = vmatpush1.msra.mxu0 0.0
        %1001 = vmatprep.mubr.f32.mxu0 0.0
        %1002 = vmatmul.mubr.f32.gmra.mrb[0].mxu0 %v461
        %v1003 = vpop.f32.mrb[0].mxu0
        %v1004 = vadd.f32 %v934, %v1003
        %v1005 = vpop.f32.mrb[0].mxu0
        %1006 = vdwg.mxu0
        %v1007 = vld [vmem:[%s3] sm:$0x1]
        %v1009 = vlaneseq
        %v1010 = vshrl.u32 %v1009, 7
        %v1011 = vsub.s32 0, %v1010
        %v1012 = vrot.slane %v1007, %v1011
        %v1014 = vadd.f32 %v1004, %v1012
        %v1015 = vxor.u32 %v1014, 2147483648
        %v1016 = vmul.f32 %v1015, 1.442695
        %v1017 = vpow.pop %v1016
        %v1018 = vadd.f32 %v1017, 1.0
        %v1019 = vrcp.pop %v1018
        %v1020 = vmul.f32 1.0, %v1019
        %v1021 = vtanh.pop %v1014
        %v1022 = vmul.f32 %v1020, %v848
        %1024 = vrot.lane.b32.xlu0 %v1021, 32
        %v1025 = vpop.permute.xlu0 %1024
        %v1027 = vmul.f32 %v1020, %v1025
        %1029 = vrot.lane.b32.xlu0 %v1027, 32
        %v1030 = vpop.permute.xlu0 %1029
        %v1032 = vadd.f32 %v1022, %v1030
        %v1033 = vtanh.pop %v1032
        %1035 = vrot.lane.b32.xlu0 %v1033, 32
        %v1036 = vpop.permute.xlu0 %1035
        %v1038 = vmul.f32 %v1020, %v1036
        %1040 = vrot.lane.b32.xlu0 %v1038, 64
        %v1041 = vpop.permute.xlu0 %1040
        %s1043 = scalar_lea.vmem %s410, 16 [#allocation10]
        %1044 = vst.msk [vmem:[%s1043] sm:$0xff] %vm496, %v1041
        %v1045 = vld [vmem:[#allocation5] sm:$0xff]
        %v1046 = vld [vmem:[#allocation5 + $0x8] sm:$0xff]
        %v1047 = vld [vmem:[#allocation5 + $0x10] sm:$0xff]
        %v1048 = vld [vmem:[#allocation5 + $0x18] sm:$0xff]
        %v1049 = vsel %vm496, %v1041, 0
        %1051 = vmatprep.subr.mxu0 0.0
        %1052 = vmatpush1.msra.mxu0 %v1045
        %1053 = vmatprep.subr.mxu0 0.0
        %1054 = vmatpush1.msra.mxu0 %v1046
        %1055 = vmatprep.subr.mxu0 0.0
        %1056 = vmatpush1.msra.mxu0 %v1047
        %1057 = vmatprep.subr.mxu0 0.0
        %1058 = vmatpush1.msra.mxu0 %v1048
        %1059 = vmatprep.subr.mxu0 0.0
        %1060 = vmatpush1.msra.mxu0 0.0
        %1061 = vmatprep.subr.mxu0 0.0
        %1062 = vmatpush1.msra.mxu0 0.0
        %1063 = vmatprep.subr.mxu0 0.0
        %1064 = vmatpush1.msra.mxu0 0.0
        %1065 = vmatprep.subr.mxu0 0.0
        %1066 = vmatpush1.msra.mxu0 0.0
        %1067 = vmatprep.subr.mxu0 0.0
        %1068 = vmatpush1.msra.mxu0 0.0
        %1069 = vmatprep.subr.mxu0 0.0
        %1070 = vmatpush1.msra.mxu0 0.0
        %1071 = vmatprep.subr.mxu0 0.0
        %1072 = vmatpush1.msra.mxu0 0.0
        %1073 = vmatprep.subr.mxu0 0.0
        %1074 = vmatpush1.msra.mxu0 0.0
        %1075 = vmatprep.subr.mxu0 0.0
        %1076 = vmatpush1.msra.mxu0 0.0
        %1077 = vmatprep.subr.mxu0 0.0
        %1078 = vmatpush1.msra.mxu0 0.0
        %1079 = vmatprep.subr.mxu0 0.0
        %1080 = vmatpush1.msra.mxu0 0.0
        %1081 = vmatprep.subr.mxu0 0.0
        %1082 = vmatpush1.msra.mxu0 0.0
        %1083 = vmatprep.subr.mxu0 0.0
        %1084 = vmatpush1.msra.mxu0 0.0
        %1085 = vmatprep.subr.mxu0 0.0
        %1086 = vmatpush1.msra.mxu0 0.0
        %1087 = vmatprep.subr.mxu0 0.0
        %1088 = vmatpush1.msra.mxu0 0.0
        %1089 = vmatprep.subr.mxu0 0.0
        %1090 = vmatpush1.msra.mxu0 0.0
        %1091 = vmatprep.subr.mxu0 0.0
        %1092 = vmatpush1.msra.mxu0 0.0
        %1093 = vmatprep.subr.mxu0 0.0
        %1094 = vmatpush1.msra.mxu0 0.0
        %1095 = vmatprep.subr.mxu0 0.0
        %1096 = vmatpush1.msra.mxu0 0.0
        %1097 = vmatprep.subr.mxu0 0.0
        %1098 = vmatpush1.msra.mxu0 0.0
        %1099 = vmatprep.subr.mxu0 0.0
        %1100 = vmatpush1.msra.mxu0 0.0
        %1101 = vmatprep.subr.mxu0 0.0
        %1102 = vmatpush1.msra.mxu0 0.0
        %1103 = vmatprep.subr.mxu0 0.0
        %1104 = vmatpush1.msra.mxu0 0.0
        %1105 = vmatprep.subr.mxu0 0.0
        %1106 = vmatpush1.msra.mxu0 0.0
        %1107 = vmatprep.subr.mxu0 0.0
        %1108 = vmatpush1.msra.mxu0 0.0
        %1109 = vmatprep.subr.mxu0 0.0
        %1110 = vmatpush1.msra.mxu0 0.0
        %1111 = vmatprep.subr.mxu0 0.0
        %1112 = vmatpush1.msra.mxu0 0.0
        %1113 = vmatprep.subr.mxu0 0.0
        %1114 = vmatpush1.msra.mxu0 0.0
        %1115 = vmatprep.mubr.f32.mxu0 0.0
        %1116 = vmatmul.mubr.f32.gmra.mrb[0].mxu0 %v1049
        %v1117 = vpop.f32.mrb[0].mxu0
        %v1118 = vadd.f32 0.0, %v1117
        %v1119 = vpop.f32.mrb[0].mxu0
        %1120 = vdwg.mxu0
        %1121 = vmatprep.subr.mxu0 0.0
        %1122 = vmatpush1.msra.mxu0 %v434
        %1123 = vmatprep.subr.mxu0 0.0
        %1124 = vmatpush1.msra.mxu0 %v435
        %1125 = vmatprep.subr.mxu0 0.0
        %1126 = vmatpush1.msra.mxu0 %v436
        %1127 = vmatprep.subr.mxu0 0.0
        %1128 = vmatpush1.msra.mxu0 %v437
        %1129 = vmatprep.subr.mxu0 0.0
        %1130 = vmatpush1.msra.mxu0 %v438
        %1131 = vmatprep.subr.mxu0 0.0
        %1132 = vmatpush1.msra.mxu0 %v439
        %1133 = vmatprep.subr.mxu0 0.0
        %1134 = vmatpush1.msra.mxu0 %v440
        %1135 = vmatprep.subr.mxu0 0.0
        %1136 = vmatpush1.msra.mxu0 %v441
        %1137 = vmatprep.subr.mxu0 0.0
        %1138 = vmatpush1.msra.mxu0 %v442
        %1139 = vmatprep.subr.mxu0 0.0
        %1140 = vmatpush1.msra.mxu0 %v443
        %1141 = vmatprep.subr.mxu0 0.0
        %1142 = vmatpush1.msra.mxu0 %v444
        %1143 = vmatprep.subr.mxu0 0.0
        %1144 = vmatpush1.msra.mxu0 %v445
        %1145 = vmatprep.subr.mxu0 0.0
        %1146 = vmatpush1.msra.mxu0 %v446
        %1147 = vmatprep.subr.mxu0 0.0
        %1148 = vmatpush1.msra.mxu0 %v447
        %1149 = vmatprep.subr.mxu0 0.0
        %1150 = vmatpush1.msra.mxu0 %v448
        %1151 = vmatprep.subr.mxu0 0.0
        %1152 = vmatpush1.msra.mxu0 %v449
        %1153 = vmatprep.subr.mxu0 0.0
        %1154 = vmatpush1.msra.mxu0 0.0
        %1155 = vmatprep.subr.mxu0 0.0
        %1156 = vmatpush1.msra.mxu0 0.0
        %1157 = vmatprep.subr.mxu0 0.0
        %1158 = vmatpush1.msra.mxu0 0.0
        %1159 = vmatprep.subr.mxu0 0.0
        %1160 = vmatpush1.msra.mxu0 0.0
        %1161 = vmatprep.subr.mxu0 0.0
        %1162 = vmatpush1.msra.mxu0 0.0
        %1163 = vmatprep.subr.mxu0 0.0
        %1164 = vmatpush1.msra.mxu0 0.0
        %1165 = vmatprep.subr.mxu0 0.0
        %1166 = vmatpush1.msra.mxu0 0.0
        %1167 = vmatprep.subr.mxu0 0.0
        %1168 = vmatpush1.msra.mxu0 0.0
        %1169 = vmatprep.subr.mxu0 0.0
        %1170 = vmatpush1.msra.mxu0 0.0
        %1171 = vmatprep.subr.mxu0 0.0
        %1172 = vmatpush1.msra.mxu0 0.0
        %1173 = vmatprep.subr.mxu0 0.0
        %1174 = vmatpush1.msra.mxu0 0.0
        %1175 = vmatprep.subr.mxu0 0.0
        %1176 = vmatpush1.msra.mxu0 0.0
        %1177 = vmatprep.subr.mxu0 0.0
        %1178 = vmatpush1.msra.mxu0 0.0
        %1179 = vmatprep.subr.mxu0 0.0
        %1180 = vmatpush1.msra.mxu0 0.0
        %1181 = vmatprep.subr.mxu0 0.0
        %1182 = vmatpush1.msra.mxu0 0.0
        %1183 = vmatprep.subr.mxu0 0.0
        %1184 = vmatpush1.msra.mxu0 0.0
        %1185 = vmatprep.mubr.f32.mxu0 0.0
        %1186 = vmatmul.mubr.f32.gmra.mrb[0].mxu0 %v467
        %v1187 = vpop.f32.mrb[0].mxu0
        %v1188 = vadd.f32 %v1118, %v1187
        %v1189 = vpop.f32.mrb[0].mxu0
        %1190 = vdwg.mxu0
        %v1191 = vld [vmem:[%s3] sm:$0x1]
        %v1193 = vlaneseq
        %v1194 = vshrl.u32 %v1193, 7
        %v1195 = vsub.s32 0, %v1194
        %v1196 = vrot.slane %v1191, %v1195
        %v1198 = vadd.f32 %v1188, %v1196
        %v1199 = vxor.u32 %v1198, 2147483648
        %v1200 = vmul.f32 %v1199, 1.442695
        %v1201 = vpow.pop %v1200
        %v1202 = vadd.f32 %v1201, 1.0
        %v1203 = vrcp.pop %v1202
        %v1204 = vmul.f32 1.0, %v1203
        %v1205 = vtanh.pop %v1198
        %v1206 = vmul.f32 %v1204, %v1032
        %1208 = vrot.lane.b32.xlu0 %v1205, 32
        %v1209 = vpop.permute.xlu0 %1208
        %v1211 = vmul.f32 %v1204, %v1209
        %1213 = vrot.lane.b32.xlu0 %v1211, 32
        %v1214 = vpop.permute.xlu0 %1213
        %v1216 = vadd.f32 %v1206, %v1214
        %v1217 = vtanh.pop %v1216
        %1219 = vrot.lane.b32.xlu0 %v1217, 32
        %v1220 = vpop.permute.xlu0 %1219
        %v1222 = vmul.f32 %v1204, %v1220
        %1224 = vrot.lane.b32.xlu0 %v1222, 64
        %v1225 = vpop.permute.xlu0 %1224
        %s1227 = scalar_lea.vmem %s410, 24 [#allocation10]
        %1228 = vst.msk [vmem:[%s1227] sm:$0xff] %vm496, %v1225
        %v1229 = vld [vmem:[#allocation5] sm:$0xff]
        %v1230 = vld [vmem:[#allocation5 + $0x8] sm:$0xff]
        %v1231 = vld [vmem:[#allocation5 + $0x10] sm:$0xff]
        %v1232 = vld [vmem:[#allocation5 + $0x18] sm:$0xff]
        %v1233 = vsel %vm496, %v1225, 0
        %1235 = vmatprep.subr.mxu0 0.0
        %1236 = vmatpush1.msra.mxu0 %v1229
        %1237 = vmatprep.subr.mxu0 0.0
        %1238 = vmatpush1.msra.mxu0 %v1230
        %1239 = vmatprep.subr.mxu0 0.0
        %1240 = vmatpush1.msra.mxu0 %v1231
        %1241 = vmatprep.subr.mxu0 0.0
        %1242 = vmatpush1.msra.mxu0 %v1232
        %1243 = vmatprep.subr.mxu0 0.0
        %1244 = vmatpush1.msra.mxu0 0.0
        %1245 = vmatprep.subr.mxu0 0.0
        %1246 = vmatpush1.msra.mxu0 0.0
        %1247 = vmatprep.subr.mxu0 0.0
        %1248 = vmatpush1.msra.mxu0 0.0
        %1249 = vmatprep.subr.mxu0 0.0
        %1250 = vmatpush1.msra.mxu0 0.0
        %1251 = vmatprep.subr.mxu0 0.0
        %1252 = vmatpush1.msra.mxu0 0.0
        %1253 = vmatprep.subr.mxu0 0.0
        %1254 = vmatpush1.msra.mxu0 0.0
        %1255 = vmatprep.subr.mxu0 0.0
        %1256 = vmatpush1.msra.mxu0 0.0
        %1257 = vmatprep.subr.mxu0 0.0
        %1258 = vmatpush1.msra.mxu0 0.0
        %1259 = vmatprep.subr.mxu0 0.0
        %1260 = vmatpush1.msra.mxu0 0.0
        %1261 = vmatprep.subr.mxu0 0.0
        %1262 = vmatpush1.msra.mxu0 0.0
        %1263 = vmatprep.subr.mxu0 0.0
        %1264 = vmatpush1.msra.mxu0 0.0
        %1265 = vmatprep.subr.mxu0 0.0
        %1266 = vmatpush1.msra.mxu0 0.0
        %1267 = vmatprep.subr.mxu0 0.0
        %1268 = vmatpush1.msra.mxu0 0.0
        %1269 = vmatprep.subr.mxu0 0.0
        %1270 = vmatpush1.msra.mxu0 0.0
        %1271 = vmatprep.subr.mxu0 0.0
        %1272 = vmatpush1.msra.mxu0 0.0
        %1273 = vmatprep.subr.mxu0 0.0
        %1274 = vmatpush1.msra.mxu0 0.0
        %1275 = vmatprep.subr.mxu0 0.0
        %1276 = vmatpush1.msra.mxu0 0.0
        %1277 = vmatprep.subr.mxu0 0.0
        %1278 = vmatpush1.msra.mxu0 0.0
        %1279 = vmatprep.subr.mxu0 0.0
        %1280 = vmatpush1.msra.mxu0 0.0
        %1281 = vmatprep.subr.mxu0 0.0
        %1282 = vmatpush1.msra.mxu0 0.0
        %1283 = vmatprep.subr.mxu0 0.0
        %1284 = vmatpush1.msra.mxu0 0.0
        %1285 = vmatprep.subr.mxu0 0.0
        %1286 = vmatpush1.msra.mxu0 0.0
        %1287 = vmatprep.subr.mxu0 0.0
        %1288 = vmatpush1.msra.mxu0 0.0
        %1289 = vmatprep.subr.mxu0 0.0
        %1290 = vmatpush1.msra.mxu0 0.0
        %1291 = vmatprep.subr.mxu0 0.0
        %1292 = vmatpush1.msra.mxu0 0.0
        %1293 = vmatprep.subr.mxu0 0.0
        %1294 = vmatpush1.msra.mxu0 0.0
        %1295 = vmatprep.subr.mxu0 0.0
        %1296 = vmatpush1.msra.mxu0 0.0
        %1297 = vmatprep.subr.mxu0 0.0
        %1298 = vmatpush1.msra.mxu0 0.0
        %1299 = vmatprep.mubr.f32.mxu0 0.0
        %1300 = vmatmul.mubr.f32.gmra.mrb[0].mxu0 %v1233
        %v1301 = vpop.f32.mrb[0].mxu0
        %v1302 = vadd.f32 0.0, %v1301
        %v1303 = vpop.f32.mrb[0].mxu0
        %1304 = vdwg.mxu0
        %1305 = vmatprep.subr.mxu0 0.0
        %1306 = vmatpush1.msra.mxu0 %v434
        %1307 = vmatprep.subr.mxu0 0.0
        %1308 = vmatpush1.msra.mxu0 %v435
        %1309 = vmatprep.subr.mxu0 0.0
        %1310 = vmatpush1.msra.mxu0 %v436
        %1311 = vmatprep.subr.mxu0 0.0
        %1312 = vmatpush1.msra.mxu0 %v437
        %1313 = vmatprep.subr.mxu0 0.0
        %1314 = vmatpush1.msra.mxu0 %v438
        %1315 = vmatprep.subr.mxu0 0.0
        %1316 = vmatpush1.msra.mxu0 %v439
        %1317 = vmatprep.subr.mxu0 0.0
        %1318 = vmatpush1.msra.mxu0 %v440
        %1319 = vmatprep.subr.mxu0 0.0
        %1320 = vmatpush1.msra.mxu0 %v441
        %1321 = vmatprep.subr.mxu0 0.0
        %1322 = vmatpush1.msra.mxu0 %v442
        %1323 = vmatprep.subr.mxu0 0.0
        %1324 = vmatpush1.msra.mxu0 %v443
        %1325 = vmatprep.subr.mxu0 0.0
        %1326 = vmatpush1.msra.mxu0 %v444
        %1327 = vmatprep.subr.mxu0 0.0
        %1328 = vmatpush1.msra.mxu0 %v445
        %1329 = vmatprep.subr.mxu0 0.0
        %1330 = vmatpush1.msra.mxu0 %v446
        %1331 = vmatprep.subr.mxu0 0.0
        %1332 = vmatpush1.msra.mxu0 %v447
        %1333 = vmatprep.subr.mxu0 0.0
        %1334 = vmatpush1.msra.mxu0 %v448
        %1335 = vmatprep.subr.mxu0 0.0
        %1336 = vmatpush1.msra.mxu0 %v449
        %1337 = vmatprep.subr.mxu0 0.0
        %1338 = vmatpush1.msra.mxu0 0.0
        %1339 = vmatprep.subr.mxu0 0.0
        %1340 = vmatpush1.msra.mxu0 0.0
        %1341 = vmatprep.subr.mxu0 0.0
        %1342 = vmatpush1.msra.mxu0 0.0
        %1343 = vmatprep.subr.mxu0 0.0
        %1344 = vmatpush1.msra.mxu0 0.0
        %1345 = vmatprep.subr.mxu0 0.0
        %1346 = vmatpush1.msra.mxu0 0.0
        %1347 = vmatprep.subr.mxu0 0.0
        %1348 = vmatpush1.msra.mxu0 0.0
        %1349 = vmatprep.subr.mxu0 0.0
        %1350 = vmatpush1.msra.mxu0 0.0
        %1351 = vmatprep.subr.mxu0 0.0
        %1352 = vmatpush1.msra.mxu0 0.0
        %1353 = vmatprep.subr.mxu0 0.0
        %1354 = vmatpush1.msra.mxu0 0.0
        %1355 = vmatprep.subr.mxu0 0.0
        %1356 = vmatpush1.msra.mxu0 0.0
        %1357 = vmatprep.subr.mxu0 0.0
        %1358 = vmatpush1.msra.mxu0 0.0
        %1359 = vmatprep.subr.mxu0 0.0
        %1360 = vmatpush1.msra.mxu0 0.0
        %1361 = vmatprep.subr.mxu0 0.0
        %1362 = vmatpush1.msra.mxu0 0.0
        %1363 = vmatprep.subr.mxu0 0.0
        %1364 = vmatpush1.msra.mxu0 0.0
        %1365 = vmatprep.subr.mxu0 0.0
        %1366 = vmatpush1.msra.mxu0 0.0
        %1367 = vmatprep.subr.mxu0 0.0
        %1368 = vmatpush1.msra.mxu0 0.0
        %1369 = vmatprep.mubr.f32.mxu0 0.0
        %1370 = vmatmul.mubr.f32.gmra.mrb[0].mxu0 %v473
        %v1371 = vpop.f32.mrb[0].mxu0
        %v1372 = vadd.f32 %v1302, %v1371
        %v1373 = vpop.f32.mrb[0].mxu0
        %1374 = vdwg.mxu0
        %v1375 = vld [vmem:[%s3] sm:$0x1]
        %v1377 = vlaneseq
        %v1378 = vshrl.u32 %v1377, 7
        %v1379 = vsub.s32 0, %v1378
        %v1380 = vrot.slane %v1375, %v1379
        %v1382 = vadd.f32 %v1372, %v1380
        %v1383 = vxor.u32 %v1382, 2147483648
        %v1384 = vmul.f32 %v1383, 1.442695
        %v1385 = vpow.pop %v1384
        %v1386 = vadd.f32 %v1385, 1.0
        %v1387 = vrcp.pop %v1386
        %v1388 = vmul.f32 1.0, %v1387
        %v1389 = vtanh.pop %v1382
        %v1390 = vmul.f32 %v1388, %v1216
        %1392 = vrot.lane.b32.xlu0 %v1389, 32
        %v1393 = vpop.permute.xlu0 %1392
        %v1395 = vmul.f32 %v1388, %v1393
        %1397 = vrot.lane.b32.xlu0 %v1395, 32
        %v1398 = vpop.permute.xlu0 %1397
        %v1400 = vadd.f32 %v1390, %v1398
        %v1401 = vtanh.pop %v1400
        %1403 = vrot.lane.b32.xlu0 %v1401, 32
        %v1404 = vpop.permute.xlu0 %1403
        %v1406 = vmul.f32 %v1388, %v1404
        %1408 = vrot.lane.b32.xlu0 %v1406, 64
        %v1409 = vpop.permute.xlu0 %1408
        %s1411 = scalar_lea.vmem %s410, 32 [#allocation10]
        %1412 = vst.msk [vmem:[%s1411] sm:$0xff] %vm496, %v1409
        %v1413 = vld [vmem:[#allocation5] sm:$0xff]
        %v1414 = vld [vmem:[#allocation5 + $0x8] sm:$0xff]
        %v1415 = vld [vmem:[#allocation5 + $0x10] sm:$0xff]
        %v1416 = vld [vmem:[#allocation5 + $0x18] sm:$0xff]
        %v1417 = vsel %vm496, %v1409, 0
        %1419 = vmatprep.subr.mxu0 0.0
        %1420 = vmatpush1.msra.mxu0 %v1413
        %1421 = vmatprep.subr.mxu0 0.0
        %1422 = vmatpush1.msra.mxu0 %v1414
        %1423 = vmatprep.subr.mxu0 0.0
        %1424 = vmatpush1.msra.mxu0 %v1415
        %1425 = vmatprep.subr.mxu0 0.0
        %1426 = vmatpush1.msra.mxu0 %v1416
        %1427 = vmatprep.subr.mxu0 0.0
        %1428 = vmatpush1.msra.mxu0 0.0
        %1429 = vmatprep.subr.mxu0 0.0
        %1430 = vmatpush1.msra.mxu0 0.0
        %1431 = vmatprep.subr.mxu0 0.0
        %1432 = vmatpush1.msra.mxu0 0.0
        %1433 = vmatprep.subr.mxu0 0.0
        %1434 = vmatpush1.msra.mxu0 0.0
        %1435 = vmatprep.subr.mxu0 0.0
        %1436 = vmatpush1.msra.mxu0 0.0
        %1437 = vmatprep.subr.mxu0 0.0
        %1438 = vmatpush1.msra.mxu0 0.0
        %1439 = vmatprep.subr.mxu0 0.0
        %1440 = vmatpush1.msra.mxu0 0.0
        %1441 = vmatprep.subr.mxu0 0.0
        %1442 = vmatpush1.msra.mxu0 0.0
        %1443 = vmatprep.subr.mxu0 0.0
        %1444 = vmatpush1.msra.mxu0 0.0
        %1445 = vmatprep.subr.mxu0 0.0
        %1446 = vmatpush1.msra.mxu0 0.0
        %1447 = vmatprep.subr.mxu0 0.0
        %1448 = vmatpush1.msra.mxu0 0.0
        %1449 = vmatprep.subr.mxu0 0.0
        %1450 = vmatpush1.msra.mxu0 0.0
        %1451 = vmatprep.subr.mxu0 0.0
        %1452 = vmatpush1.msra.mxu0 0.0
        %1453 = vmatprep.subr.mxu0 0.0
        %1454 = vmatpush1.msra.mxu0 0.0
        %1455 = vmatprep.subr.mxu0 0.0
        %1456 = vmatpush1.msra.mxu0 0.0
        %1457 = vmatprep.subr.mxu0 0.0
        %1458 = vmatpush1.msra.mxu0 0.0
        %1459 = vmatprep.subr.mxu0 0.0
        %1460 = vmatpush1.msra.mxu0 0.0
        %1461 = vmatprep.subr.mxu0 0.0
        %1462 = vmatpush1.msra.mxu0 0.0
        %1463 = vmatprep.subr.mxu0 0.0
        %1464 = vmatpush1.msra.mxu0 0.0
        %1465 = vmatprep.subr.mxu0 0.0
        %1466 = vmatpush1.msra.mxu0 0.0
        %1467 = vmatprep.subr.mxu0 0.0
        %1468 = vmatpush1.msra.mxu0 0.0
        %1469 = vmatprep.subr.mxu0 0.0
        %1470 = vmatpush1.msra.mxu0 0.0
        %1471 = vmatprep.subr.mxu0 0.0
        %1472 = vmatpush1.msra.mxu0 0.0
        %1473 = vmatprep.subr.mxu0 0.0
        %1474 = vmatpush1.msra.mxu0 0.0
        %1475 = vmatprep.subr.mxu0 0.0
        %1476 = vmatpush1.msra.mxu0 0.0
        %1477 = vmatprep.subr.mxu0 0.0
        %1478 = vmatpush1.msra.mxu0 0.0
        %1479 = vmatprep.subr.mxu0 0.0
        %1480 = vmatpush1.msra.mxu0 0.0
        %1481 = vmatprep.subr.mxu0 0.0
        %1482 = vmatpush1.msra.mxu0 0.0
        %1483 = vmatprep.mubr.f32.mxu0 0.0
        %1484 = vmatmul.mubr.f32.gmra.mrb[0].mxu0 %v1417
        %v1485 = vpop.f32.mrb[0].mxu0
        %v1486 = vadd.f32 0.0, %v1485
        %v1487 = vpop.f32.mrb[0].mxu0
        %1488 = vdwg.mxu0
        %1489 = vmatprep.subr.mxu0 0.0
        %1490 = vmatpush1.msra.mxu0 %v434
        %1491 = vmatprep.subr.mxu0 0.0
        %1492 = vmatpush1.msra.mxu0 %v435
        %1493 = vmatprep.subr.mxu0 0.0
        %1494 = vmatpush1.msra.mxu0 %v436
        %1495 = vmatprep.subr.mxu0 0.0
        %1496 = vmatpush1.msra.mxu0 %v437
        %1497 = vmatprep.subr.mxu0 0.0
        %1498 = vmatpush1.msra.mxu0 %v438
        %1499 = vmatprep.subr.mxu0 0.0
        %1500 = vmatpush1.msra.mxu0 %v439
        %1501 = vmatprep.subr.mxu0 0.0
        %1502 = vmatpush1.msra.mxu0 %v440
        %1503 = vmatprep.subr.mxu0 0.0
        %1504 = vmatpush1.msra.mxu0 %v441
        %1505 = vmatprep.subr.mxu0 0.0
        %1506 = vmatpush1.msra.mxu0 %v442
        %1507 = vmatprep.subr.mxu0 0.0
        %1508 = vmatpush1.msra.mxu0 %v443
        %1509 = vmatprep.subr.mxu0 0.0
        %1510 = vmatpush1.msra.mxu0 %v444
        %1511 = vmatprep.subr.mxu0 0.0
        %1512 = vmatpush1.msra.mxu0 %v445
        %1513 = vmatprep.subr.mxu0 0.0
        %1514 = vmatpush1.msra.mxu0 %v446
        %1515 = vmatprep.subr.mxu0 0.0
        %1516 = vmatpush1.msra.mxu0 %v447
        %1517 = vmatprep.subr.mxu0 0.0
        %1518 = vmatpush1.msra.mxu0 %v448
        %1519 = vmatprep.subr.mxu0 0.0
        %1520 = vmatpush1.msra.mxu0 %v449
        %1521 = vmatprep.subr.mxu0 0.0
        %1522 = vmatpush1.msra.mxu0 0.0
        %1523 = vmatprep.subr.mxu0 0.0
        %1524 = vmatpush1.msra.mxu0 0.0
        %1525 = vmatprep.subr.mxu0 0.0
        %1526 = vmatpush1.msra.mxu0 0.0
        %1527 = vmatprep.subr.mxu0 0.0
        %1528 = vmatpush1.msra.mxu0 0.0
        %1529 = vmatprep.subr.mxu0 0.0
        %1530 = vmatpush1.msra.mxu0 0.0
        %1531 = vmatprep.subr.mxu0 0.0
        %1532 = vmatpush1.msra.mxu0 0.0
        %1533 = vmatprep.subr.mxu0 0.0
        %1534 = vmatpush1.msra.mxu0 0.0
        %1535 = vmatprep.subr.mxu0 0.0
        %1536 = vmatpush1.msra.mxu0 0.0
        %1537 = vmatprep.subr.mxu0 0.0
        %1538 = vmatpush1.msra.mxu0 0.0
        %1539 = vmatprep.subr.mxu0 0.0
        %1540 = vmatpush1.msra.mxu0 0.0
        %1541 = vmatprep.subr.mxu0 0.0
        %1542 = vmatpush1.msra.mxu0 0.0
        %1543 = vmatprep.subr.mxu0 0.0
        %1544 = vmatpush1.msra.mxu0 0.0
        %1545 = vmatprep.subr.mxu0 0.0
        %1546 = vmatpush1.msra.mxu0 0.0
        %1547 = vmatprep.subr.mxu0 0.0
        %1548 = vmatpush1.msra.mxu0 0.0
        %1549 = vmatprep.subr.mxu0 0.0
        %1550 = vmatpush1.msra.mxu0 0.0
        %1551 = vmatprep.subr.mxu0 0.0
        %1552 = vmatpush1.msra.mxu0 0.0
        %1553 = vmatprep.mubr.f32.mxu0 0.0
        %1554 = vmatmul.mubr.f32.gmra.mrb[0].mxu0 %v479
        %v1555 = vpop.f32.mrb[0].mxu0
        %v1556 = vadd.f32 %v1486, %v1555
        %v1557 = vpop.f32.mrb[0].mxu0
        %1558 = vdwg.mxu0
        %v1559 = vld [vmem:[%s3] sm:$0x1]
        %v1561 = vlaneseq
        %v1562 = vshrl.u32 %v1561, 7
        %v1563 = vsub.s32 0, %v1562
        %v1564 = vrot.slane %v1559, %v1563
        %v1566 = vadd.f32 %v1556, %v1564
        %v1567 = vxor.u32 %v1566, 2147483648
        %v1568 = vmul.f32 %v1567, 1.442695
        %v1569 = vpow.pop %v1568
        %v1570 = vadd.f32 %v1569, 1.0
        %v1571 = vrcp.pop %v1570
        %v1572 = vmul.f32 1.0, %v1571
        %v1573 = vtanh.pop %v1566
        %v1574 = vmul.f32 %v1572, %v1400
        %1576 = vrot.lane.b32.xlu0 %v1573, 32
        %v1577 = vpop.permute.xlu0 %1576
        %v1579 = vmul.f32 %v1572, %v1577
        %1581 = vrot.lane.b32.xlu0 %v1579, 32
        %v1582 = vpop.permute.xlu0 %1581
        %v1584 = vadd.f32 %v1574, %v1582
        %v1585 = vtanh.pop %v1584
        %1587 = vrot.lane.b32.xlu0 %v1585, 32
        %v1588 = vpop.permute.xlu0 %1587
        %v1590 = vmul.f32 %v1572, %v1588
        %1592 = vrot.lane.b32.xlu0 %v1590, 64
        %v1593 = vpop.permute.xlu0 %1592
        %s1595 = scalar_lea.vmem %s410, 40 [#allocation10]
        %1596 = vst.msk [vmem:[%s1595] sm:$0xff] %vm496, %v1593
        %v1597 = vld [vmem:[#allocation5] sm:$0xff]
        %v1598 = vld [vmem:[#allocation5 + $0x8] sm:$0xff]
        %v1599 = vld [vmem:[#allocation5 + $0x10] sm:$0xff]
        %v1600 = vld [vmem:[#allocation5 + $0x18] sm:$0xff]
        %v1601 = vsel %vm496, %v1593, 0
        %1603 = vmatprep.subr.mxu0 0.0
        %1604 = vmatpush1.msra.mxu0 %v1597
        %1605 = vmatprep.subr.mxu0 0.0
        %1606 = vmatpush1.msra.mxu0 %v1598
        %1607 = vmatprep.subr.mxu0 0.0
        %1608 = vmatpush1.msra.mxu0 %v1599
        %1609 = vmatprep.subr.mxu0 0.0
        %1610 = vmatpush1.msra.mxu0 %v1600
        %1611 = vmatprep.subr.mxu0 0.0
        %1612 = vmatpush1.msra.mxu0 0.0
        %1613 = vmatprep.subr.mxu0 0.0
        %1614 = vmatpush1.msra.mxu0 0.0
        %1615 = vmatprep.subr.mxu0 0.0
        %1616 = vmatpush1.msra.mxu0 0.0
        %1617 = vmatprep.subr.mxu0 0.0
        %1618 = vmatpush1.msra.mxu0 0.0
        %1619 = vmatprep.subr.mxu0 0.0
        %1620 = vmatpush1.msra.mxu0 0.0
        %1621 = vmatprep.subr.mxu0 0.0
        %1622 = vmatpush1.msra.mxu0 0.0
        %1623 = vmatprep.subr.mxu0 0.0
        %1624 = vmatpush1.msra.mxu0 0.0
        %1625 = vmatprep.subr.mxu0 0.0
        %1626 = vmatpush1.msra.mxu0 0.0
        %1627 = vmatprep.subr.mxu0 0.0
        %1628 = vmatpush1.msra.mxu0 0.0
        %1629 = vmatprep.subr.mxu0 0.0
        %1630 = vmatpush1.msra.mxu0 0.0
        %1631 = vmatprep.subr.mxu0 0.0
        %1632 = vmatpush1.msra.mxu0 0.0
        %1633 = vmatprep.subr.mxu0 0.0
        %1634 = vmatpush1.msra.mxu0 0.0
        %1635 = vmatprep.subr.mxu0 0.0
        %1636 = vmatpush1.msra.mxu0 0.0
        %1637 = vmatprep.subr.mxu0 0.0
        %1638 = vmatpush1.msra.mxu0 0.0
        %1639 = vmatprep.subr.mxu0 0.0
        %1640 = vmatpush1.msra.mxu0 0.0
        %1641 = vmatprep.subr.mxu0 0.0
        %1642 = vmatpush1.msra.mxu0 0.0
        %1643 = vmatprep.subr.mxu0 0.0
        %1644 = vmatpush1.msra.mxu0 0.0
        %1645 = vmatprep.subr.mxu0 0.0
        %1646 = vmatpush1.msra.mxu0 0.0
        %1647 = vmatprep.subr.mxu0 0.0
        %1648 = vmatpush1.msra.mxu0 0.0
        %1649 = vmatprep.subr.mxu0 0.0
        %1650 = vmatpush1.msra.mxu0 0.0
        %1651 = vmatprep.subr.mxu0 0.0
        %1652 = vmatpush1.msra.mxu0 0.0
        %1653 = vmatprep.subr.mxu0 0.0
        %1654 = vmatpush1.msra.mxu0 0.0
        %1655 = vmatprep.subr.mxu0 0.0
        %1656 = vmatpush1.msra.mxu0 0.0
        %1657 = vmatprep.subr.mxu0 0.0
        %1658 = vmatpush1.msra.mxu0 0.0
        %1659 = vmatprep.subr.mxu0 0.0
        %1660 = vmatpush1.msra.mxu0 0.0
        %1661 = vmatprep.subr.mxu0 0.0
        %1662 = vmatpush1.msra.mxu0 0.0
        %1663 = vmatprep.subr.mxu0 0.0
        %1664 = vmatpush1.msra.mxu0 0.0
        %1665 = vmatprep.subr.mxu0 0.0
        %1666 = vmatpush1.msra.mxu0 0.0
        %1667 = vmatprep.mubr.f32.mxu0 0.0
        %1668 = vmatmul.mubr.f32.gmra.mrb[0].mxu0 %v1601
        %v1669 = vpop.f32.mrb[0].mxu0
        %v1670 = vadd.f32 0.0, %v1669
        %v1671 = vpop.f32.mrb[0].mxu0
        %1672 = vdwg.mxu0
        %1673 = vmatprep.subr.mxu0 0.0
        %1674 = vmatpush1.msra.mxu0 %v434
        %1675 = vmatprep.subr.mxu0 0.0
        %1676 = vmatpush1.msra.mxu0 %v435
        %1677 = vmatprep.subr.mxu0 0.0
        %1678 = vmatpush1.msra.mxu0 %v436
        %1679 = vmatprep.subr.mxu0 0.0
        %1680 = vmatpush1.msra.mxu0 %v437
        %1681 = vmatprep.subr.mxu0 0.0
        %1682 = vmatpush1.msra.mxu0 %v438
        %1683 = vmatprep.subr.mxu0 0.0
        %1684 = vmatpush1.msra.mxu0 %v439
        %1685 = vmatprep.subr.mxu0 0.0
        %1686 = vmatpush1.msra.mxu0 %v440
        %1687 = vmatprep.subr.mxu0 0.0
        %1688 = vmatpush1.msra.mxu0 %v441
        %1689 = vmatprep.subr.mxu0 0.0
        %1690 = vmatpush1.msra.mxu0 %v442
        %1691 = vmatprep.subr.mxu0 0.0
        %1692 = vmatpush1.msra.mxu0 %v443
        %1693 = vmatprep.subr.mxu0 0.0
        %1694 = vmatpush1.msra.mxu0 %v444
        %1695 = vmatprep.subr.mxu0 0.0
        %1696 = vmatpush1.msra.mxu0 %v445
        %1697 = vmatprep.subr.mxu0 0.0
        %1698 = vmatpush1.msra.mxu0 %v446
        %1699 = vmatprep.subr.mxu0 0.0
        %1700 = vmatpush1.msra.mxu0 %v447
        %1701 = vmatprep.subr.mxu0 0.0
        %1702 = vmatpush1.msra.mxu0 %v448
        %1703 = vmatprep.subr.mxu0 0.0
        %1704 = vmatpush1.msra.mxu0 %v449
        %1705 = vmatprep.subr.mxu0 0.0
        %1706 = vmatpush1.msra.mxu0 0.0
        %1707 = vmatprep.subr.mxu0 0.0
        %1708 = vmatpush1.msra.mxu0 0.0
        %1709 = vmatprep.subr.mxu0 0.0
        %1710 = vmatpush1.msra.mxu0 0.0
        %1711 = vmatprep.subr.mxu0 0.0
        %1712 = vmatpush1.msra.mxu0 0.0
        %1713 = vmatprep.subr.mxu0 0.0
        %1714 = vmatpush1.msra.mxu0 0.0
        %1715 = vmatprep.subr.mxu0 0.0
        %1716 = vmatpush1.msra.mxu0 0.0
        %1717 = vmatprep.subr.mxu0 0.0
        %1718 = vmatpush1.msra.mxu0 0.0
        %1719 = vmatprep.subr.mxu0 0.0
        %1720 = vmatpush1.msra.mxu0 0.0
        %1721 = vmatprep.subr.mxu0 0.0
        %1722 = vmatpush1.msra.mxu0 0.0
        %1723 = vmatprep.subr.mxu0 0.0
        %1724 = vmatpush1.msra.mxu0 0.0
        %1725 = vmatprep.subr.mxu0 0.0
        %1726 = vmatpush1.msra.mxu0 0.0
        %1727 = vmatprep.subr.mxu0 0.0
        %1728 = vmatpush1.msra.mxu0 0.0
        %1729 = vmatprep.subr.mxu0 0.0
        %1730 = vmatpush1.msra.mxu0 0.0
        %1731 = vmatprep.subr.mxu0 0.0
        %1732 = vmatpush1.msra.mxu0 0.0
        %1733 = vmatprep.subr.mxu0 0.0
        %1734 = vmatpush1.msra.mxu0 0.0
        %1735 = vmatprep.subr.mxu0 0.0
        %1736 = vmatpush1.msra.mxu0 0.0
        %1737 = vmatprep.mubr.f32.mxu0 0.0
        %1738 = vmatmul.mubr.f32.gmra.mrb[0].mxu0 %v485
        %v1739 = vpop.f32.mrb[0].mxu0
        %v1740 = vadd.f32 %v1670, %v1739
        %v1741 = vpop.f32.mrb[0].mxu0
        %1742 = vdwg.mxu0
        %v1743 = vld [vmem:[%s3] sm:$0x1]
        %v1745 = vlaneseq
        %v1746 = vshrl.u32 %v1745, 7
        %v1747 = vsub.s32 0, %v1746
        %v1748 = vrot.slane %v1743, %v1747
        %v1750 = vadd.f32 %v1740, %v1748
        %v1751 = vxor.u32 %v1750, 2147483648
        %v1752 = vmul.f32 %v1751, 1.442695
        %v1753 = vpow.pop %v1752
        %v1754 = vadd.f32 %v1753, 1.0
        %v1755 = vrcp.pop %v1754
        %v1756 = vmul.f32 1.0, %v1755
        %v1757 = vtanh.pop %v1750
        %v1758 = vmul.f32 %v1756, %v1584
        %1760 = vrot.lane.b32.xlu0 %v1757, 32
        %v1761 = vpop.permute.xlu0 %1760
        %v1763 = vmul.f32 %v1756, %v1761
        %1765 = vrot.lane.b32.xlu0 %v1763, 32
        %v1766 = vpop.permute.xlu0 %1765
        %v1768 = vadd.f32 %v1758, %v1766
        %v1769 = vtanh.pop %v1768
        %1771 = vrot.lane.b32.xlu0 %v1769, 32
        %v1772 = vpop.permute.xlu0 %1771
        %v1774 = vmul.f32 %v1756, %v1772
        %1776 = vrot.lane.b32.xlu0 %v1774, 64
        %v1777 = vpop.permute.xlu0 %1776
        %s1779 = scalar_lea.vmem %s410, 48 [#allocation10]
        %1780 = vst.msk [vmem:[%s1779] sm:$0xff] %vm496, %v1777
        %v1781 = vld [vmem:[#allocation5] sm:$0xff]
        %v1782 = vld [vmem:[#allocation5 + $0x8] sm:$0xff]
        %v1783 = vld [vmem:[#allocation5 + $0x10] sm:$0xff]
        %v1784 = vld [vmem:[#allocation5 + $0x18] sm:$0xff]
        %v1785 = vsel %vm496, %v1777, 0
        %1787 = vmatprep.subr.mxu0 0.0
        %1788 = vmatpush1.msra.mxu0 %v1781
        %1789 = vmatprep.subr.mxu0 0.0
        %1790 = vmatpush1.msra.mxu0 %v1782
        %1791 = vmatprep.subr.mxu0 0.0
        %1792 = vmatpush1.msra.mxu0 %v1783
        %1793 = vmatprep.subr.mxu0 0.0
        %1794 = vmatpush1.msra.mxu0 %v1784
        %1795 = vmatprep.subr.mxu0 0.0
        %1796 = vmatpush1.msra.mxu0 0.0
        %1797 = vmatprep.subr.mxu0 0.0
        %1798 = vmatpush1.msra.mxu0 0.0
        %1799 = vmatprep.subr.mxu0 0.0
        %1800 = vmatpush1.msra.mxu0 0.0
        %1801 = vmatprep.subr.mxu0 0.0
        %1802 = vmatpush1.msra.mxu0 0.0
        %1803 = vmatprep.subr.mxu0 0.0
        %1804 = vmatpush1.msra.mxu0 0.0
        %1805 = vmatprep.subr.mxu0 0.0
        %1806 = vmatpush1.msra.mxu0 0.0
        %1807 = vmatprep.subr.mxu0 0.0
        %1808 = vmatpush1.msra.mxu0 0.0
        %1809 = vmatprep.subr.mxu0 0.0
        %1810 = vmatpush1.msra.mxu0 0.0
        %1811 = vmatprep.subr.mxu0 0.0
        %1812 = vmatpush1.msra.mxu0 0.0
        %1813 = vmatprep.subr.mxu0 0.0
        %1814 = vmatpush1.msra.mxu0 0.0
        %1815 = vmatprep.subr.mxu0 0.0
        %1816 = vmatpush1.msra.mxu0 0.0
        %1817 = vmatprep.subr.mxu0 0.0
        %1818 = vmatpush1.msra.mxu0 0.0
        %1819 = vmatprep.subr.mxu0 0.0
        %1820 = vmatpush1.msra.mxu0 0.0
        %1821 = vmatprep.subr.mxu0 0.0
        %1822 = vmatpush1.msra.mxu0 0.0
        %1823 = vmatprep.subr.mxu0 0.0
        %1824 = vmatpush1.msra.mxu0 0.0
        %1825 = vmatprep.subr.mxu0 0.0
        %1826 = vmatpush1.msra.mxu0 0.0
        %1827 = vmatprep.subr.mxu0 0.0
        %1828 = vmatpush1.msra.mxu0 0.0
        %1829 = vmatprep.subr.mxu0 0.0
        %1830 = vmatpush1.msra.mxu0 0.0
        %1831 = vmatprep.subr.mxu0 0.0
        %1832 = vmatpush1.msra.mxu0 0.0
        %1833 = vmatprep.subr.mxu0 0.0
        %1834 = vmatpush1.msra.mxu0 0.0
        %1835 = vmatprep.subr.mxu0 0.0
        %1836 = vmatpush1.msra.mxu0 0.0
        %1837 = vmatprep.subr.mxu0 0.0
        %1838 = vmatpush1.msra.mxu0 0.0
        %1839 = vmatprep.subr.mxu0 0.0
        %1840 = vmatpush1.msra.mxu0 0.0
        %1841 = vmatprep.subr.mxu0 0.0
        %1842 = vmatpush1.msra.mxu0 0.0
        %1843 = vmatprep.subr.mxu0 0.0
        %1844 = vmatpush1.msra.mxu0 0.0
        %1845 = vmatprep.subr.mxu0 0.0
        %1846 = vmatpush1.msra.mxu0 0.0
        %1847 = vmatprep.subr.mxu0 0.0
        %1848 = vmatpush1.msra.mxu0 0.0
        %1849 = vmatprep.subr.mxu0 0.0
        %1850 = vmatpush1.msra.mxu0 0.0
        %1851 = vmatprep.mubr.f32.mxu0 0.0
        %1852 = vmatmul.mubr.f32.gmra.mrb[0].mxu0 %v1785
        %v1853 = vpop.f32.mrb[0].mxu0
        %v1854 = vadd.f32 0.0, %v1853
        %v1855 = vpop.f32.mrb[0].mxu0
        %1856 = vdwg.mxu0
        %1857 = vmatprep.subr.mxu0 0.0
        %1858 = vmatpush1.msra.mxu0 %v434
        %1859 = vmatprep.subr.mxu0 0.0
        %1860 = vmatpush1.msra.mxu0 %v435
        %1861 = vmatprep.subr.mxu0 0.0
        %1862 = vmatpush1.msra.mxu0 %v436
        %1863 = vmatprep.subr.mxu0 0.0
        %1864 = vmatpush1.msra.mxu0 %v437
        %1865 = vmatprep.subr.mxu0 0.0
        %1866 = vmatpush1.msra.mxu0 %v438
        %1867 = vmatprep.subr.mxu0 0.0
        %1868 = vmatpush1.msra.mxu0 %v439
        %1869 = vmatprep.subr.mxu0 0.0
        %1870 = vmatpush1.msra.mxu0 %v440
        %1871 = vmatprep.subr.mxu0 0.0
        %1872 = vmatpush1.msra.mxu0 %v441
        %1873 = vmatprep.subr.mxu0 0.0
        %1874 = vmatpush1.msra.mxu0 %v442
        %1875 = vmatprep.subr.mxu0 0.0
        %1876 = vmatpush1.msra.mxu0 %v443
        %1877 = vmatprep.subr.mxu0 0.0
        %1878 = vmatpush1.msra.mxu0 %v444
        %1879 = vmatprep.subr.mxu0 0.0
        %1880 = vmatpush1.msra.mxu0 %v445
        %1881 = vmatprep.subr.mxu0 0.0
        %1882 = vmatpush1.msra.mxu0 %v446
        %1883 = vmatprep.subr.mxu0 0.0
        %1884 = vmatpush1.msra.mxu0 %v447
        %1885 = vmatprep.subr.mxu0 0.0
        %1886 = vmatpush1.msra.mxu0 %v448
        %1887 = vmatprep.subr.mxu0 0.0
        %1888 = vmatpush1.msra.mxu0 %v449
        %1889 = vmatprep.subr.mxu0 0.0
        %1890 = vmatpush1.msra.mxu0 0.0
        %1891 = vmatprep.subr.mxu0 0.0
        %1892 = vmatpush1.msra.mxu0 0.0
        %1893 = vmatprep.subr.mxu0 0.0
        %1894 = vmatpush1.msra.mxu0 0.0
        %1895 = vmatprep.subr.mxu0 0.0
        %1896 = vmatpush1.msra.mxu0 0.0
        %1897 = vmatprep.subr.mxu0 0.0
        %1898 = vmatpush1.msra.mxu0 0.0
        %1899 = vmatprep.subr.mxu0 0.0
        %1900 = vmatpush1.msra.mxu0 0.0
        %1901 = vmatprep.subr.mxu0 0.0
        %1902 = vmatpush1.msra.mxu0 0.0
        %1903 = vmatprep.subr.mxu0 0.0
        %1904 = vmatpush1.msra.mxu0 0.0
        %1905 = vmatprep.subr.mxu0 0.0
        %1906 = vmatpush1.msra.mxu0 0.0
        %1907 = vmatprep.subr.mxu0 0.0
        %1908 = vmatpush1.msra.mxu0 0.0
        %1909 = vmatprep.subr.mxu0 0.0
        %1910 = vmatpush1.msra.mxu0 0.0
        %1911 = vmatprep.subr.mxu0 0.0
        %1912 = vmatpush1.msra.mxu0 0.0
        %1913 = vmatprep.subr.mxu0 0.0
        %1914 = vmatpush1.msra.mxu0 0.0
        %1915 = vmatprep.subr.mxu0 0.0
        %1916 = vmatpush1.msra.mxu0 0.0
        %1917 = vmatprep.subr.mxu0 0.0
        %1918 = vmatpush1.msra.mxu0 0.0
        %1919 = vmatprep.subr.mxu0 0.0
        %1920 = vmatpush1.msra.mxu0 0.0
        %1921 = vmatprep.mubr.f32.mxu0 0.0
        %1922 = vmatmul.mubr.f32.gmra.mrb[0].mxu0 %v491
        %v1923 = vpop.f32.mrb[0].mxu0
        %v1924 = vadd.f32 %v1854, %v1923
        %v1925 = vpop.f32.mrb[0].mxu0
        %1926 = vdwg.mxu0
        %v1927 = vld [vmem:[%s3] sm:$0x1]
        %v1929 = vlaneseq
        %v1930 = vshrl.u32 %v1929, 7
        %v1931 = vsub.s32 0, %v1930
        %v1932 = vrot.slane %v1927, %v1931
        %v1934 = vadd.f32 %v1924, %v1932
        %v1935 = vxor.u32 %v1934, 2147483648
        %v1936 = vmul.f32 %v1935, 1.442695
        %v1937 = vpow.pop %v1936
        %v1938 = vadd.f32 %v1937, 1.0
        %v1939 = vrcp.pop %v1938
        %v1940 = vmul.f32 1.0, %v1939
        %v1941 = vtanh.pop %v1934
        %v1942 = vmul.f32 %v1940, %v1768
        %1944 = vrot.lane.b32.xlu0 %v1941, 32
        %v1945 = vpop.permute.xlu0 %1944
        %v1947 = vmul.f32 %v1940, %v1945
        %1949 = vrot.lane.b32.xlu0 %v1947, 32
        %v1950 = vpop.permute.xlu0 %1949
        %v1952 = vadd.f32 %v1942, %v1950
        %v1953 = vtanh.pop %v1952
        %1955 = vrot.lane.b32.xlu0 %v1953, 32
        %v1956 = vpop.permute.xlu0 %1955
        %v1958 = vmul.f32 %v1940, %v1956
        %1960 = vrot.lane.b32.xlu0 %v1958, 64
        %v1961 = vpop.permute.xlu0 %1960
        %s1963 = scalar_lea.vmem %s410, 56 [#allocation10]
        %1964 = vst.msk [vmem:[%s1963] sm:$0xff] %vm496, %v1961
        %vm1965 = vcmp.eq.s32.totalorder %v426, 1
        %v1966 = vsel %vm1965, 1, 0
        %v1967 = vcvt.s32.f32 %v1966
        %v1968 = vld [vmem:[#allocation7] sm:$0xff]
        %v1969 = vld [vmem:[#allocation7 + $0x8] sm:$0xff]
        %v1970 = vld [vmem:[#allocation7 + $0x10] sm:$0xff]
        %v1971 = vld [vmem:[#allocation7 + $0x18] sm:$0xff]
        %v1972 = vld [vmem:[#allocation7 + $0x20] sm:$0xff]
        %v1973 = vld [vmem:[#allocation7 + $0x28] sm:$0xff]
        %v1974 = vld [vmem:[#allocation7 + $0x30] sm:$0xff]
        %v1975 = vld [vmem:[#allocation7 + $0x38] sm:$0xff]
        %v1976 = vld [vmem:[#allocation7 + $0x40] sm:$0xff]
        %v1977 = vld [vmem:[#allocation7 + $0x48] sm:$0xff]
        %v1978 = vld [vmem:[#allocation7 + $0x50] sm:$0xff]
        %v1979 = vld [vmem:[#allocation7 + $0x58] sm:$0xff]
        %v1980 = vld [vmem:[#allocation7 + $0x60] sm:$0xff]
        %v1981 = vld [vmem:[#allocation7 + $0x68] sm:$0xff]
        %v1982 = vld [vmem:[#allocation7 + $0x70] sm:$0xff]
        %v1983 = vld [vmem:[#allocation7 + $0x78] sm:$0xff]
        %v1984 = vld [vmem:[%s5] sm:$0xff]
        %v1985 = vld [vmem:[%s5 + $0x8] sm:$0xff]
        %v1986 = vld [vmem:[%s5 + $0x10] sm:$0xff]
        %v1987 = vld [vmem:[%s5 + $0x18] sm:$0xff]
        %v1988 = vsel %vm496, %v1961, 0
        %1990 = vmatprep.subr.mxu0 0.0
        %1991 = vmatpush1.msra.mxu0 %v1984
        %1992 = vmatprep.subr.mxu0 0.0
        %1993 = vmatpush1.msra.mxu0 %v1985
        %1994 = vmatprep.subr.mxu0 0.0
        %1995 = vmatpush1.msra.mxu0 %v1986
        %1996 = vmatprep.subr.mxu0 0.0
        %1997 = vmatpush1.msra.mxu0 %v1987
        %1998 = vmatprep.subr.mxu0 0.0
        %1999 = vmatpush1.msra.mxu0 0.0
        %2000 = vmatprep.subr.mxu0 0.0
        %2001 = vmatpush1.msra.mxu0 0.0
        %2002 = vmatprep.subr.mxu0 0.0
        %2003 = vmatpush1.msra.mxu0 0.0
        %2004 = vmatprep.subr.mxu0 0.0
        %2005 = vmatpush1.msra.mxu0 0.0
        %2006 = vmatprep.subr.mxu0 0.0
        %2007 = vmatpush1.msra.mxu0 0.0
        %2008 = vmatprep.subr.mxu0 0.0
        %2009 = vmatpush1.msra.mxu0 0.0
        %2010 = vmatprep.subr.mxu0 0.0
        %2011 = vmatpush1.msra.mxu0 0.0
        %2012 = vmatprep.subr.mxu0 0.0
        %2013 = vmatpush1.msra.mxu0 0.0
        %2014 = vmatprep.subr.mxu0 0.0
        %2015 = vmatpush1.msra.mxu0 0.0
        %2016 = vmatprep.subr.mxu0 0.0
        %2017 = vmatpush1.msra.mxu0 0.0
        %2018 = vmatprep.subr.mxu0 0.0
        %2019 = vmatpush1.msra.mxu0 0.0
        %2020 = vmatprep.subr.mxu0 0.0
        %2021 = vmatpush1.msra.mxu0 0.0
        %2022 = vmatprep.subr.mxu0 0.0
        %2023 = vmatpush1.msra.mxu0 0.0
        %2024 = vmatprep.subr.mxu0 0.0
        %2025 = vmatpush1.msra.mxu0 0.0
        %2026 = vmatprep.subr.mxu0 0.0
        %2027 = vmatpush1.msra.mxu0 0.0
        %2028 = vmatprep.subr.mxu0 0.0
        %2029 = vmatpush1.msra.mxu0 0.0
        %2030 = vmatprep.subr.mxu0 0.0
        %2031 = vmatpush1.msra.mxu0 0.0
        %2032 = vmatprep.subr.mxu0 0.0
        %2033 = vmatpush1.msra.mxu0 0.0
        %2034 = vmatprep.subr.mxu0 0.0
        %2035 = vmatpush1.msra.mxu0 0.0
        %2036 = vmatprep.subr.mxu0 0.0
        %2037 = vmatpush1.msra.mxu0 0.0
        %2038 = vmatprep.subr.mxu0 0.0
        %2039 = vmatpush1.msra.mxu0 0.0
        %2040 = vmatprep.subr.mxu0 0.0
        %2041 = vmatpush1.msra.mxu0 0.0
        %2042 = vmatprep.subr.mxu0 0.0
        %2043 = vmatpush1.msra.mxu0 0.0
        %2044 = vmatprep.subr.mxu0 0.0
        %2045 = vmatpush1.msra.mxu0 0.0
        %2046 = vmatprep.subr.mxu0 0.0
        %2047 = vmatpush1.msra.mxu0 0.0
        %2048 = vmatprep.subr.mxu0 0.0
        %2049 = vmatpush1.msra.mxu0 0.0
        %2050 = vmatprep.subr.mxu0 0.0
        %2051 = vmatpush1.msra.mxu0 0.0
        %2052 = vmatprep.subr.mxu0 0.0
        %2053 = vmatpush1.msra.mxu0 0.0
        %2054 = vmatprep.mubr.f32.mxu0 0.0
        %2055 = vmatmul.mubr.f32.gmra.mrb[0].mxu0 %v1988
        %v2056 = vpop.f32.mrb[0].mxu0
        %v2057 = vadd.f32 0.0, %v2056
        %v2058 = vpop.f32.mrb[0].mxu0
        %2059 = vdwg.mxu0
        %2060 = vmatprep.subr.mxu0 0.0
        %2061 = vmatpush1.msra.mxu0 %v1968
        %2062 = vmatprep.subr.mxu0 0.0
        %2063 = vmatpush1.msra.mxu0 %v1969
        %2064 = vmatprep.subr.mxu0 0.0
        %2065 = vmatpush1.msra.mxu0 %v1970
        %2066 = vmatprep.subr.mxu0 0.0
        %2067 = vmatpush1.msra.mxu0 %v1971
        %2068 = vmatprep.subr.mxu0 0.0
        %2069 = vmatpush1.msra.mxu0 %v1972
        %2070 = vmatprep.subr.mxu0 0.0
        %2071 = vmatpush1.msra.mxu0 %v1973
        %2072 = vmatprep.subr.mxu0 0.0
        %2073 = vmatpush1.msra.mxu0 %v1974
        %2074 = vmatprep.subr.mxu0 0.0
        %2075 = vmatpush1.msra.mxu0 %v1975
        %2076 = vmatprep.subr.mxu0 0.0
        %2077 = vmatpush1.msra.mxu0 %v1976
        %2078 = vmatprep.subr.mxu0 0.0
        %2079 = vmatpush1.msra.mxu0 %v1977
        %2080 = vmatprep.subr.mxu0 0.0
        %2081 = vmatpush1.msra.mxu0 %v1978
        %2082 = vmatprep.subr.mxu0 0.0
        %2083 = vmatpush1.msra.mxu0 %v1979
        %2084 = vmatprep.subr.mxu0 0.0
        %2085 = vmatpush1.msra.mxu0 %v1980
        %2086 = vmatprep.subr.mxu0 0.0
        %2087 = vmatpush1.msra.mxu0 %v1981
        %2088 = vmatprep.subr.mxu0 0.0
        %2089 = vmatpush1.msra.mxu0 %v1982
        %2090 = vmatprep.subr.mxu0 0.0
        %2091 = vmatpush1.msra.mxu0 %v1983
        %2092 = vmatprep.subr.mxu0 0.0
        %2093 = vmatpush1.msra.mxu0 0.0
        %2094 = vmatprep.subr.mxu0 0.0
        %2095 = vmatpush1.msra.mxu0 0.0
        %2096 = vmatprep.subr.mxu0 0.0
        %2097 = vmatpush1.msra.mxu0 0.0
        %2098 = vmatprep.subr.mxu0 0.0
        %2099 = vmatpush1.msra.mxu0 0.0
        %2100 = vmatprep.subr.mxu0 0.0
        %2101 = vmatpush1.msra.mxu0 0.0
        %2102 = vmatprep.subr.mxu0 0.0
        %2103 = vmatpush1.msra.mxu0 0.0
        %2104 = vmatprep.subr.mxu0 0.0
        %2105 = vmatpush1.msra.mxu0 0.0
        %2106 = vmatprep.subr.mxu0 0.0
        %2107 = vmatpush1.msra.mxu0 0.0
        %2108 = vmatprep.subr.mxu0 0.0
        %2109 = vmatpush1.msra.mxu0 0.0
        %2110 = vmatprep.subr.mxu0 0.0
        %2111 = vmatpush1.msra.mxu0 0.0
        %2112 = vmatprep.subr.mxu0 0.0
        %2113 = vmatpush1.msra.mxu0 0.0
        %2114 = vmatprep.subr.mxu0 0.0
        %2115 = vmatpush1.msra.mxu0 0.0
        %2116 = vmatprep.subr.mxu0 0.0
        %2117 = vmatpush1.msra.mxu0 0.0
        %2118 = vmatprep.subr.mxu0 0.0
        %2119 = vmatpush1.msra.mxu0 0.0
        %2120 = vmatprep.subr.mxu0 0.0
        %2121 = vmatpush1.msra.mxu0 0.0
        %2122 = vmatprep.subr.mxu0 0.0
        %2123 = vmatpush1.msra.mxu0 0.0
        %2124 = vmatprep.mubr.f32.mxu0 0.0
        %2125 = vmatmul.mubr.f32.gmra.mrb[0].mxu0 %v1967
        %v2126 = vpop.f32.mrb[0].mxu0
        %v2127 = vadd.f32 %v2057, %v2126
        %v2128 = vpop.f32.mrb[0].mxu0
        %2129 = vdwg.mxu0
        %v2130 = vld [vmem:[%s6] sm:$0x1]
        %v2132 = vlaneseq
        %v2133 = vshrl.u32 %v2132, 7
        %v2134 = vsub.s32 0, %v2133
        %v2135 = vrot.slane %v2130, %v2134
        %v2137 = vadd.f32 %v2127, %v2135
        %v2138 = vxor.u32 %v2137, 2147483648
        %v2139 = vmul.f32 %v2138, 1.442695
        %v2140 = vpow.pop %v2139
        %v2141 = vadd.f32 %v2140, 1.0
        %v2142 = vrcp.pop %v2141
        %v2143 = vmul.f32 1.0, %v2142
        %v2144 = vtanh.pop %v2137
        %v2145 = vmul.f32 %v2143, %v1952
        %2147 = vrot.lane.b32.xlu0 %v2144, 32
        %v2148 = vpop.permute.xlu0 %2147
        %v2150 = vmul.f32 %v2143, %v2148
        %2152 = vrot.lane.b32.xlu0 %v2150, 32
        %v2153 = vpop.permute.xlu0 %2152
        %v2155 = vadd.f32 %v2145, %v2153
        %v2156 = vtanh.pop %v2155
        %2158 = vrot.lane.b32.xlu0 %v2156, 32
        %v2159 = vpop.permute.xlu0 %2158
        %v2161 = vmul.f32 %v2143, %v2159
        %v2162 = vld [vmem:[#allocation8] sm:$0xff]
        %v2163 = vld [vmem:[#allocation8 + $0x8] sm:$0xff]
        %v2164 = vld [vmem:[#allocation8 + $0x10] sm:$0xff]
        %v2165 = vld [vmem:[#allocation8 + $0x18] sm:$0xff]
        %v2166 = vld [vmem:[%s8] sm:$0x1]
        %v2168 = vlaneseq
        %v2169 = vshrl.u32 %v2168, 7
        %v2170 = vsub.s32 0, %v2169
        %v2171 = vrot.slane %v2166, %v2170
        %2174 = vrot.lane.b32.xlu0 %v2161, 64
        %v2175 = vpop.permute.xlu0 %2174
        %v2176 = vsel %vm496, %v2175, 0
        %2178 = vmatprep.subr.mxu0 0.0
        %2179 = vmatpush1.msra.mxu0 %v2162
        %2180 = vmatprep.subr.mxu0 0.0
        %2181 = vmatpush1.msra.mxu0 %v2163
        %2182 = vmatprep.subr.mxu0 0.0
        %2183 = vmatpush1.msra.mxu0 %v2164
        %2184 = vmatprep.subr.mxu0 0.0
        %2185 = vmatpush1.msra.mxu0 %v2165
        %2186 = vmatprep.subr.mxu0 0.0
        %2187 = vmatpush1.msra.mxu0 0.0
        %2188 = vmatprep.subr.mxu0 0.0
        %2189 = vmatpush1.msra.mxu0 0.0
        %2190 = vmatprep.subr.mxu0 0.0
        %2191 = vmatpush1.msra.mxu0 0.0
        %2192 = vmatprep.subr.mxu0 0.0
        %2193 = vmatpush1.msra.mxu0 0.0
        %2194 = vmatprep.subr.mxu0 0.0
        %2195 = vmatpush1.msra.mxu0 0.0
        %2196 = vmatprep.subr.mxu0 0.0
        %2197 = vmatpush1.msra.mxu0 0.0
        %2198 = vmatprep.subr.mxu0 0.0
        %2199 = vmatpush1.msra.mxu0 0.0
        %2200 = vmatprep.subr.mxu0 0.0
        %2201 = vmatpush1.msra.mxu0 0.0
        %2202 = vmatprep.subr.mxu0 0.0
        %2203 = vmatpush1.msra.mxu0 0.0
        %2204 = vmatprep.subr.mxu0 0.0
        %2205 = vmatpush1.msra.mxu0 0.0
        %2206 = vmatprep.subr.mxu0 0.0
        %2207 = vmatpush1.msra.mxu0 0.0
        %2208 = vmatprep.subr.mxu0 0.0
        %2209 = vmatpush1.msra.mxu0 0.0
        %2210 = vmatprep.subr.mxu0 0.0
        %2211 = vmatpush1.msra.mxu0 0.0
        %2212 = vmatprep.subr.mxu0 0.0
        %2213 = vmatpush1.msra.mxu0 0.0
        %2214 = vmatprep.subr.mxu0 0.0
        %2215 = vmatpush1.msra.mxu0 0.0
        %2216 = vmatprep.subr.mxu0 0.0
        %2217 = vmatpush1.msra.mxu0 0.0
        %2218 = vmatprep.subr.mxu0 0.0
        %2219 = vmatpush1.msra.mxu0 0.0
        %2220 = vmatprep.subr.mxu0 0.0
        %2221 = vmatpush1.msra.mxu0 0.0
        %2222 = vmatprep.subr.mxu0 0.0
        %2223 = vmatpush1.msra.mxu0 0.0
        %2224 = vmatprep.subr.mxu0 0.0
        %2225 = vmatpush1.msra.mxu0 0.0
        %2226 = vmatprep.subr.mxu0 0.0
        %2227 = vmatpush1.msra.mxu0 0.0
        %2228 = vmatprep.subr.mxu0 0.0
        %2229 = vmatpush1.msra.mxu0 0.0
        %2230 = vmatprep.subr.mxu0 0.0
        %2231 = vmatpush1.msra.mxu0 0.0
        %2232 = vmatprep.subr.mxu0 0.0
        %2233 = vmatpush1.msra.mxu0 0.0
        %2234 = vmatprep.subr.mxu0 0.0
        %2235 = vmatpush1.msra.mxu0 0.0
        %2236 = vmatprep.subr.mxu0 0.0
        %2237 = vmatpush1.msra.mxu0 0.0
        %2238 = vmatprep.subr.mxu0 0.0
        %2239 = vmatpush1.msra.mxu0 0.0
        %2240 = vmatprep.subr.mxu0 0.0
        %2241 = vmatpush1.msra.mxu0 0.0
        %2242 = vmatprep.mubr.f32.mxu0 0.0
        %2243 = vmatmul.mubr.f32.gmra.mrb[0].mxu0 %v2176
        %v2244 = vpop.f32.mrb[0].mxu0
        %v2245 = vadd.f32 %v2171, %v2244
        %v2246 = vpop.f32.mrb[0].mxu0
        %2247 = vdwg.mxu0
        %2248 = vmax.xlane.f32.xlu0 %v2245
        %v2249 = vpop.xlane.xlu0 %2248
        %vm2250 = vcmp.eq.f32.partialorder %v2245, %v2249
        %v2251 = vsel %vm2250, %v426, 128
        %v2252 = vand.u32 %v2251, 65535
        %v2253 = vshra.s32 %v2251, 16
        %v2254 = vcvt.s32.f32 %v2252
        %v2255 = vcvt.s32.f32 %v2253
        %2256 = vmin.xlane.f32.xlu0 %v2255
        %v2257 = vpop.xlane.xlu0 %2256
        %vm2258 = vcmp.eq.f32.partialorder %v2255, %v2257
        %v2259 = vsel %vm2258, %v2254, inf
        %2260 = vmin.xlane.f32.xlu0 %v2259
        %v2261 = vpop.xlane.xlu0 %2260
        %v2262 = vcvt.f32.s32 %v2261
        %v2263 = vcvt.f32.s32 %v2257
        %v2264 = vshll.u32 %v2263, 16
        %v2265 = vadd.s32 %v2264, %v2262
        %vm2266 = vcmask 7168
        %2267 = vst.msk [vmem:[%s424] sm:$0xff] %vm2266, %v2265
        %vm2268 = vcmp.eq.s32.totalorder %v2265, %v426
        %v2269 = vsel %vm2268, 1, 0
        %v2270 = vcvt.s32.f32 %v2269
        %v2271 = vld [vmem:[#allocation7] sm:$0xff]
        %v2272 = vld [vmem:[#allocation7 + $0x8] sm:$0xff]
        %v2273 = vld [vmem:[#allocation7 + $0x10] sm:$0xff]
        %v2274 = vld [vmem:[#allocation7 + $0x18] sm:$0xff]
        %v2275 = vld [vmem:[#allocation7 + $0x20] sm:$0xff]
        %v2276 = vld [vmem:[#allocation7 + $0x28] sm:$0xff]
        %v2277 = vld [vmem:[#allocation7 + $0x30] sm:$0xff]
        %v2278 = vld [vmem:[#allocation7 + $0x38] sm:$0xff]
        %v2279 = vld [vmem:[#allocation7 + $0x40] sm:$0xff]
        %v2280 = vld [vmem:[#allocation7 + $0x48] sm:$0xff]
        %v2281 = vld [vmem:[#allocation7 + $0x50] sm:$0xff]
        %v2282 = vld [vmem:[#allocation7 + $0x58] sm:$0xff]
        %v2283 = vld [vmem:[#allocation7 + $0x60] sm:$0xff]
        %v2284 = vld [vmem:[#allocation7 + $0x68] sm:$0xff]
        %v2285 = vld [vmem:[#allocation7 + $0x70] sm:$0xff]
        %v2286 = vld [vmem:[#allocation7 + $0x78] sm:$0xff]
        %v2287 = vld [vmem:[%s5] sm:$0xff]
        %v2288 = vld [vmem:[%s5 + $0x8] sm:$0xff]
        %v2289 = vld [vmem:[%s5 + $0x10] sm:$0xff]
        %v2290 = vld [vmem:[%s5 + $0x18] sm:$0xff]
        %2291 = vmatprep.subr.mxu0 0.0
        %2292 = vmatpush1.msra.mxu0 %v2287
        %2293 = vmatprep.subr.mxu0 0.0
        %2294 = vmatpush1.msra.mxu0 %v2288
        %2295 = vmatprep.subr.mxu0 0.0
        %2296 = vmatpush1.msra.mxu0 %v2289
        %2297 = vmatprep.subr.mxu0 0.0
        %2298 = vmatpush1.msra.mxu0 %v2290
        %2299 = vmatprep.subr.mxu0 0.0
        %2300 = vmatpush1.msra.mxu0 0.0
        %2301 = vmatprep.subr.mxu0 0.0
        %2302 = vmatpush1.msra.mxu0 0.0
        %2303 = vmatprep.subr.mxu0 0.0
        %2304 = vmatpush1.msra.mxu0 0.0
        %2305 = vmatprep.subr.mxu0 0.0
        %2306 = vmatpush1.msra.mxu0 0.0
        %2307 = vmatprep.subr.mxu0 0.0
        %2308 = vmatpush1.msra.mxu0 0.0
        %2309 = vmatprep.subr.mxu0 0.0
        %2310 = vmatpush1.msra.mxu0 0.0
        %2311 = vmatprep.subr.mxu0 0.0
        %2312 = vmatpush1.msra.mxu0 0.0
        %2313 = vmatprep.subr.mxu0 0.0
        %2314 = vmatpush1.msra.mxu0 0.0
        %2315 = vmatprep.subr.mxu0 0.0
        %2316 = vmatpush1.msra.mxu0 0.0
        %2317 = vmatprep.subr.mxu0 0.0
        %2318 = vmatpush1.msra.mxu0 0.0
        %2319 = vmatprep.subr.mxu0 0.0
        %2320 = vmatpush1.msra.mxu0 0.0
        %2321 = vmatprep.subr.mxu0 0.0
        %2322 = vmatpush1.msra.mxu0 0.0
        %2323 = vmatprep.subr.mxu0 0.0
        %2324 = vmatpush1.msra.mxu0 0.0
        %2325 = vmatprep.subr.mxu0 0.0
        %2326 = vmatpush1.msra.mxu0 0.0
        %2327 = vmatprep.subr.mxu0 0.0
        %2328 = vmatpush1.msra.mxu0 0.0
        %2329 = vmatprep.subr.mxu0 0.0
        %2330 = vmatpush1.msra.mxu0 0.0
        %2331 = vmatprep.subr.mxu0 0.0
        %2332 = vmatpush1.msra.mxu0 0.0
        %2333 = vmatprep.subr.mxu0 0.0
        %2334 = vmatpush1.msra.mxu0 0.0
        %2335 = vmatprep.subr.mxu0 0.0
        %2336 = vmatpush1.msra.mxu0 0.0
        %2337 = vmatprep.subr.mxu0 0.0
        %2338 = vmatpush1.msra.mxu0 0.0
        %2339 = vmatprep.subr.mxu0 0.0
        %2340 = vmatpush1.msra.mxu0 0.0
        %2341 = vmatprep.subr.mxu0 0.0
        %2342 = vmatpush1.msra.mxu0 0.0
        %2343 = vmatprep.subr.mxu0 0.0
        %2344 = vmatpush1.msra.mxu0 0.0
        %2345 = vmatprep.subr.mxu0 0.0
        %2346 = vmatpush1.msra.mxu0 0.0
        %2347 = vmatprep.subr.mxu0 0.0
        %2348 = vmatpush1.msra.mxu0 0.0
        %2349 = vmatprep.subr.mxu0 0.0
        %2350 = vmatpush1.msra.mxu0 0.0
        %2351 = vmatprep.subr.mxu0 0.0
        %2352 = vmatpush1.msra.mxu0 0.0
        %2353 = vmatprep.subr.mxu0 0.0
        %2354 = vmatpush1.msra.mxu0 0.0
        %2355 = vmatprep.mubr.f32.mxu0 0.0
        %2356 = vmatmul.mubr.f32.gmra.mrb[0].mxu0 %v2176
        %v2357 = vpop.f32.mrb[0].mxu0
        %v2358 = vadd.f32 0.0, %v2357
        %v2359 = vpop.f32.mrb[0].mxu0
        %2360 = vdwg.mxu0
        %2361 = vmatprep.subr.mxu0 0.0
        %2362 = vmatpush1.msra.mxu0 %v2271
        %2363 = vmatprep.subr.mxu0 0.0
        %2364 = vmatpush1.msra.mxu0 %v2272
        %2365 = vmatprep.subr.mxu0 0.0
        %2366 = vmatpush1.msra.mxu0 %v2273
        %2367 = vmatprep.subr.mxu0 0.0
        %2368 = vmatpush1.msra.mxu0 %v2274
        %2369 = vmatprep.subr.mxu0 0.0
        %2370 = vmatpush1.msra.mxu0 %v2275
        %2371 = vmatprep.subr.mxu0 0.0
        %2372 = vmatpush1.msra.mxu0 %v2276
        %2373 = vmatprep.subr.mxu0 0.0
        %2374 = vmatpush1.msra.mxu0 %v2277
        %2375 = vmatprep.subr.mxu0 0.0
        %2376 = vmatpush1.msra.mxu0 %v2278
        %2377 = vmatprep.subr.mxu0 0.0
        %2378 = vmatpush1.msra.mxu0 %v2279
        %2379 = vmatprep.subr.mxu0 0.0
        %2380 = vmatpush1.msra.mxu0 %v2280
        %2381 = vmatprep.subr.mxu0 0.0
        %2382 = vmatpush1.msra.mxu0 %v2281
        %2383 = vmatprep.subr.mxu0 0.0
        %2384 = vmatpush1.msra.mxu0 %v2282
        %2385 = vmatprep.subr.mxu0 0.0
        %2386 = vmatpush1.msra.mxu0 %v2283
        %2387 = vmatprep.subr.mxu0 0.0
        %2388 = vmatpush1.msra.mxu0 %v2284
        %2389 = vmatprep.subr.mxu0 0.0
        %2390 = vmatpush1.msra.mxu0 %v2285
        %2391 = vmatprep.subr.mxu0 0.0
        %2392 = vmatpush1.msra.mxu0 %v2286
        %2393 = vmatprep.subr.mxu0 0.0
        %2394 = vmatpush1.msra.mxu0 0.0
        %2395 = vmatprep.subr.mxu0 0.0
        %2396 = vmatpush1.msra.mxu0 0.0
        %2397 = vmatprep.subr.mxu0 0.0
        %2398 = vmatpush1.msra.mxu0 0.0
        %2399 = vmatprep.subr.mxu0 0.0
        %2400 = vmatpush1.msra.mxu0 0.0
        %2401 = vmatprep.subr.mxu0 0.0
        %2402 = vmatpush1.msra.mxu0 0.0
        %2403 = vmatprep.subr.mxu0 0.0
        %2404 = vmatpush1.msra.mxu0 0.0
        %2405 = vmatprep.subr.mxu0 0.0
        %2406 = vmatpush1.msra.mxu0 0.0
        %2407 = vmatprep.subr.mxu0 0.0
        %2408 = vmatpush1.msra.mxu0 0.0
        %2409 = vmatprep.subr.mxu0 0.0
        %2410 = vmatpush1.msra.mxu0 0.0
        %2411 = vmatprep.subr.mxu0 0.0
        %2412 = vmatpush1.msra.mxu0 0.0
        %2413 = vmatprep.subr.mxu0 0.0
        %2414 = vmatpush1.msra.mxu0 0.0
        %2415 = vmatprep.subr.mxu0 0.0
        %2416 = vmatpush1.msra.mxu0 0.0
        %2417 = vmatprep.subr.mxu0 0.0
        %2418 = vmatpush1.msra.mxu0 0.0
        %2419 = vmatprep.subr.mxu0 0.0
        %2420 = vmatpush1.msra.mxu0 0.0
        %2421 = vmatprep.subr.mxu0 0.0
        %2422 = vmatpush1.msra.mxu0 0.0
        %2423 = vmatprep.subr.mxu0 0.0
        %2424 = vmatpush1.msra.mxu0 0.0
        %2425 = vmatprep.mubr.f32.mxu0 0.0
        %2426 = vmatmul.mubr.f32.gmra.mrb[0].mxu0 %v2270
        %v2427 = vpop.f32.mrb[0].mxu0
        %v2428 = vadd.f32 %v2358, %v2427
        %v2429 = vpop.f32.mrb[0].mxu0
        %2430 = vdwg.mxu0
        %v2431 = vld [vmem:[%s6] sm:$0x1]
        %v2433 = vlaneseq
        %v2434 = vshrl.u32 %v2433, 7
        %v2435 = vsub.s32 0, %v2434
        %v2436 = vrot.slane %v2431, %v2435
        %v2438 = vadd.f32 %v2428, %v2436
        %v2439 = vxor.u32 %v2438, 2147483648
        %v2440 = vmul.f32 %v2439, 1.442695
        %v2441 = vpow.pop %v2440
        %v2442 = vadd.f32 %v2441, 1.0
        %v2443 = vrcp.pop %v2442
        %v2444 = vmul.f32 1.0, %v2443
        %v2445 = vtanh.pop %v2438
        %v2446 = vmul.f32 %v2444, %v2155
        %2448 = vrot.lane.b32.xlu0 %v2445, 32
        %v2449 = vpop.permute.xlu0 %2448
        %v2451 = vmul.f32 %v2444, %v2449
        %2453 = vrot.lane.b32.xlu0 %v2451, 32
        %v2454 = vpop.permute.xlu0 %2453
        %v2456 = vadd.f32 %v2446, %v2454
        %v2457 = vtanh.pop %v2456
        %2459 = vrot.lane.b32.xlu0 %v2457, 32
        %v2460 = vpop.permute.xlu0 %2459
        %v2462 = vmul.f32 %v2444, %v2460
        %v2463 = vld [vmem:[#allocation8] sm:$0xff]
        %v2464 = vld [vmem:[#allocation8 + $0x8] sm:$0xff]
        %v2465 = vld [vmem:[#allocation8 + $0x10] sm:$0xff]
        %v2466 = vld [vmem:[#allocation8 + $0x18] sm:$0xff]
        %v2467 = vld [vmem:[%s8] sm:$0x1]
        %v2469 = vlaneseq
        %v2470 = vshrl.u32 %v2469, 7
        %v2471 = vsub.s32 0, %v2470
        %v2472 = vrot.slane %v2467, %v2471
        %2475 = vrot.lane.b32.xlu0 %v2462, 64
        %v2476 = vpop.permute.xlu0 %2475
        %v2477 = vsel %vm496, %v2476, 0
        %2479 = vmatprep.subr.mxu0 0.0
        %2480 = vmatpush1.msra.mxu0 %v2463
        %2481 = vmatprep.subr.mxu0 0.0
        %2482 = vmatpush1.msra.mxu0 %v2464
        %2483 = vmatprep.subr.mxu0 0.0
        %2484 = vmatpush1.msra.mxu0 %v2465
        %2485 = vmatprep.subr.mxu0 0.0
        %2486 = vmatpush1.msra.mxu0 %v2466
        %2487 = vmatprep.subr.mxu0 0.0
        %2488 = vmatpush1.msra.mxu0 0.0
        %2489 = vmatprep.subr.mxu0 0.0
        %2490 = vmatpush1.msra.mxu0 0.0
        %2491 = vmatprep.subr.mxu0 0.0
        %2492 = vmatpush1.msra.mxu0 0.0
        %2493 = vmatprep.subr.mxu0 0.0
        %2494 = vmatpush1.msra.mxu0 0.0
        %2495 = vmatprep.subr.mxu0 0.0
        %2496 = vmatpush1.msra.mxu0 0.0
        %2497 = vmatprep.subr.mxu0 0.0
        %2498 = vmatpush1.msra.mxu0 0.0
        %2499 = vmatprep.subr.mxu0 0.0
        %2500 = vmatpush1.msra.mxu0 0.0
        %2501 = vmatprep.subr.mxu0 0.0
        %2502 = vmatpush1.msra.mxu0 0.0
        %2503 = vmatprep.subr.mxu0 0.0
        %2504 = vmatpush1.msra.mxu0 0.0
        %2505 = vmatprep.subr.mxu0 0.0
        %2506 = vmatpush1.msra.mxu0 0.0
        %2507 = vmatprep.subr.mxu0 0.0
        %2508 = vmatpush1.msra.mxu0 0.0
        %2509 = vmatprep.subr.mxu0 0.0
        %2510 = vmatpush1.msra.mxu0 0.0
        %2511 = vmatprep.subr.mxu0 0.0
        %2512 = vmatpush1.msra.mxu0 0.0
        %2513 = vmatprep.subr.mxu0 0.0
        %2514 = vmatpush1.msra.mxu0 0.0
        %2515 = vmatprep.subr.mxu0 0.0
        %2516 = vmatpush1.msra.mxu0 0.0
        %2517 = vmatprep.subr.mxu0 0.0
        %2518 = vmatpush1.msra.mxu0 0.0
        %2519 = vmatprep.subr.mxu0 0.0
        %2520 = vmatpush1.msra.mxu0 0.0
        %2521 = vmatprep.subr.mxu0 0.0
        %2522 = vmatpush1.msra.mxu0 0.0
        %2523 = vmatprep.subr.mxu0 0.0
        %2524 = vmatpush1.msra.mxu0 0.0
        %2525 = vmatprep.subr.mxu0 0.0
        %2526 = vmatpush1.msra.mxu0 0.0
        %2527 = vmatprep.subr.mxu0 0.0
        %2528 = vmatpush1.msra.mxu0 0.0
        %2529 = vmatprep.subr.mxu0 0.0
        %2530 = vmatpush1.msra.mxu0 0.0
        %2531 = vmatprep.subr.mxu0 0.0
        %2532 = vmatpush1.msra.mxu0 0.0
        %2533 = vmatprep.subr.mxu0 0.0
        %2534 = vmatpush1.msra.mxu0 0.0
        %2535 = vmatprep.subr.mxu0 0.0
        %2536 = vmatpush1.msra.mxu0 0.0
        %2537 = vmatprep.subr.mxu0 0.0
        %2538 = vmatpush1.msra.mxu0 0.0
        %2539 = vmatprep.subr.mxu0 0.0
        %2540 = vmatpush1.msra.mxu0 0.0
        %2541 = vmatprep.subr.mxu0 0.0
        %2542 = vmatpush1.msra.mxu0 0.0
        %2543 = vmatprep.mubr.f32.mxu0 0.0
        %2544 = vmatmul.mubr.f32.gmra.mrb[0].mxu0 %v2477
        %v2545 = vpop.f32.mrb[0].mxu0
        %v2546 = vadd.f32 %v2472, %v2545
        %v2547 = vpop.f32.mrb[0].mxu0
        %2548 = vdwg.mxu0
        %2549 = vmax.xlane.f32.xlu0 %v2546
        %v2550 = vpop.xlane.xlu0 %2549
        %vm2551 = vcmp.eq.f32.partialorder %v2546, %v2550
        %v2552 = vsel %vm2551, %v426, 128
        %v2553 = vand.u32 %v2552, 65535
        %v2554 = vshra.s32 %v2552, 16
        %v2555 = vcvt.s32.f32 %v2553
        %v2556 = vcvt.s32.f32 %v2554
        %2557 = vmin.xlane.f32.xlu0 %v2556
        %v2558 = vpop.xlane.xlu0 %2557
        %vm2559 = vcmp.eq.f32.partialorder %v2556, %v2558
        %v2560 = vsel %vm2559, %v2555, inf
        %2561 = vmin.xlane.f32.xlu0 %v2560
        %v2562 = vpop.xlane.xlu0 %2561
        %v2563 = vcvt.f32.s32 %v2562
        %v2564 = vcvt.f32.s32 %v2558
        %v2565 = vshll.u32 %v2564, 16
        %v2566 = vadd.s32 %v2565, %v2563
        %vm2567 = vcmask 15368
        %2568 = vst.msk [vmem:[%s424] sm:$0xff] %vm2567, %v2566
        %vm2569 = vcmp.eq.s32.totalorder %v2566, %v426
        %v2570 = vsel %vm2569, 1, 0
        %v2571 = vcvt.s32.f32 %v2570
        %v2572 = vld [vmem:[#allocation7] sm:$0xff]
        %v2573 = vld [vmem:[#allocation7 + $0x8] sm:$0xff]
        %v2574 = vld [vmem:[#allocation7 + $0x10] sm:$0xff]
        %v2575 = vld [vmem:[#allocation7 + $0x18] sm:$0xff]
        %v2576 = vld [vmem:[#allocation7 + $0x20] sm:$0xff]
        %v2577 = vld [vmem:[#allocation7 + $0x28] sm:$0xff]
        %v2578 = vld [vmem:[#allocation7 + $0x30] sm:$0xff]
        %v2579 = vld [vmem:[#allocation7 + $0x38] sm:$0xff]
        %v2580 = vld [vmem:[#allocation7 + $0x40] sm:$0xff]
        %v2581 = vld [vmem:[#allocation7 + $0x48] sm:$0xff]
        %v2582 = vld [vmem:[#allocation7 + $0x50] sm:$0xff]
        %v2583 = vld [vmem:[#allocation7 + $0x58] sm:$0xff]
        %v2584 = vld [vmem:[#allocation7 + $0x60] sm:$0xff]
        %v2585 = vld [vmem:[#allocation7 + $0x68] sm:$0xff]
        %v2586 = vld [vmem:[#allocation7 + $0x70] sm:$0xff]
        %v2587 = vld [vmem:[#allocation7 + $0x78] sm:$0xff]
        %v2588 = vld [vmem:[%s5] sm:$0xff]
        %v2589 = vld [vmem:[%s5 + $0x8] sm:$0xff]
        %v2590 = vld [vmem:[%s5 + $0x10] sm:$0xff]
        %v2591 = vld [vmem:[%s5 + $0x18] sm:$0xff]
        %2592 = vmatprep.subr.mxu0 0.0
        %2593 = vmatpush1.msra.mxu0 %v2588
        %2594 = vmatprep.subr.mxu0 0.0
        %2595 = vmatpush1.msra.mxu0 %v2589
        %2596 = vmatprep.subr.mxu0 0.0
        %2597 = vmatpush1.msra.mxu0 %v2590
        %2598 = vmatprep.subr.mxu0 0.0
        %2599 = vmatpush1.msra.mxu0 %v2591
        %2600 = vmatprep.subr.mxu0 0.0
        %2601 = vmatpush1.msra.mxu0 0.0
        %2602 = vmatprep.subr.mxu0 0.0
        %2603 = vmatpush1.msra.mxu0 0.0
        %2604 = vmatprep.subr.mxu0 0.0
        %2605 = vmatpush1.msra.mxu0 0.0
        %2606 = vmatprep.subr.mxu0 0.0
        %2607 = vmatpush1.msra.mxu0 0.0
        %2608 = vmatprep.subr.mxu0 0.0
        %2609 = vmatpush1.msra.mxu0 0.0
        %2610 = vmatprep.subr.mxu0 0.0
        %2611 = vmatpush1.msra.mxu0 0.0
        %2612 = vmatprep.subr.mxu0 0.0
        %2613 = vmatpush1.msra.mxu0 0.0
        %2614 = vmatprep.subr.mxu0 0.0
        %2615 = vmatpush1.msra.mxu0 0.0
        %2616 = vmatprep.subr.mxu0 0.0
        %2617 = vmatpush1.msra.mxu0 0.0
        %2618 = vmatprep.subr.mxu0 0.0
        %2619 = vmatpush1.msra.mxu0 0.0
        %2620 = vmatprep.subr.mxu0 0.0
        %2621 = vmatpush1.msra.mxu0 0.0
        %2622 = vmatprep.subr.mxu0 0.0
        %2623 = vmatpush1.msra.mxu0 0.0
        %2624 = vmatprep.subr.mxu0 0.0
        %2625 = vmatpush1.msra.mxu0 0.0
        %2626 = vmatprep.subr.mxu0 0.0
        %2627 = vmatpush1.msra.mxu0 0.0
        %2628 = vmatprep.subr.mxu0 0.0
        %2629 = vmatpush1.msra.mxu0 0.0
        %2630 = vmatprep.subr.mxu0 0.0
        %2631 = vmatpush1.msra.mxu0 0.0
        %2632 = vmatprep.subr.mxu0 0.0
        %2633 = vmatpush1.msra.mxu0 0.0
        %2634 = vmatprep.subr.mxu0 0.0
        %2635 = vmatpush1.msra.mxu0 0.0
        %2636 = vmatprep.subr.mxu0 0.0
        %2637 = vmatpush1.msra.mxu0 0.0
        %2638 = vmatprep.subr.mxu0 0.0
        %2639 = vmatpush1.msra.mxu0 0.0
        %2640 = vmatprep.subr.mxu0 0.0
        %2641 = vmatpush1.msra.mxu0 0.0
        %2642 = vmatprep.subr.mxu0 0.0
        %2643 = vmatpush1.msra.mxu0 0.0
        %2644 = vmatprep.subr.mxu0 0.0
        %2645 = vmatpush1.msra.mxu0 0.0
        %2646 = vmatprep.subr.mxu0 0.0
        %2647 = vmatpush1.msra.mxu0 0.0
        %2648 = vmatprep.subr.mxu0 0.0
        %2649 = vmatpush1.msra.mxu0 0.0
        %2650 = vmatprep.subr.mxu0 0.0
        %2651 = vmatpush1.msra.mxu0 0.0
        %2652 = vmatprep.subr.mxu0 0.0
        %2653 = vmatpush1.msra.mxu0 0.0
        %2654 = vmatprep.subr.mxu0 0.0
        %2655 = vmatpush1.msra.mxu0 0.0
        %2656 = vmatprep.mubr.f32.mxu0 0.0
        %2657 = vmatmul.mubr.f32.gmra.mrb[0].mxu0 %v2477
        %v2658 = vpop.f32.mrb[0].mxu0
        %v2659 = vadd.f32 0.0, %v2658
        %v2660 = vpop.f32.mrb[0].mxu0
        %2661 = vdwg.mxu0
        %2662 = vmatprep.subr.mxu0 0.0
        %2663 = vmatpush1.msra.mxu0 %v2572
        %2664 = vmatprep.subr.mxu0 0.0
        %2665 = vmatpush1.msra.mxu0 %v2573
        %2666 = vmatprep.subr.mxu0 0.0
        %2667 = vmatpush1.msra.mxu0 %v2574
        %2668 = vmatprep.subr.mxu0 0.0
        %2669 = vmatpush1.msra.mxu0 %v2575
        %2670 = vmatprep.subr.mxu0 0.0
        %2671 = vmatpush1.msra.mxu0 %v2576
        %2672 = vmatprep.subr.mxu0 0.0
        %2673 = vmatpush1.msra.mxu0 %v2577
        %2674 = vmatprep.subr.mxu0 0.0
        %2675 = vmatpush1.msra.mxu0 %v2578
        %2676 = vmatprep.subr.mxu0 0.0
        %2677 = vmatpush1.msra.mxu0 %v2579
        %2678 = vmatprep.subr.mxu0 0.0
        %2679 = vmatpush1.msra.mxu0 %v2580
        %2680 = vmatprep.subr.mxu0 0.0
        %2681 = vmatpush1.msra.mxu0 %v2581
        %2682 = vmatprep.subr.mxu0 0.0
        %2683 = vmatpush1.msra.mxu0 %v2582
        %2684 = vmatprep.subr.mxu0 0.0
        %2685 = vmatpush1.msra.mxu0 %v2583
        %2686 = vmatprep.subr.mxu0 0.0
        %2687 = vmatpush1.msra.mxu0 %v2584
        %2688 = vmatprep.subr.mxu0 0.0
        %2689 = vmatpush1.msra.mxu0 %v2585
        %2690 = vmatprep.subr.mxu0 0.0
        %2691 = vmatpush1.msra.mxu0 %v2586
        %2692 = vmatprep.subr.mxu0 0.0
        %2693 = vmatpush1.msra.mxu0 %v2587
        %2694 = vmatprep.subr.mxu0 0.0
        %2695 = vmatpush1.msra.mxu0 0.0
        %2696 = vmatprep.subr.mxu0 0.0
        %2697 = vmatpush1.msra.mxu0 0.0
        %2698 = vmatprep.subr.mxu0 0.0
        %2699 = vmatpush1.msra.mxu0 0.0
        %2700 = vmatprep.subr.mxu0 0.0
        %2701 = vmatpush1.msra.mxu0 0.0
        %2702 = vmatprep.subr.mxu0 0.0
        %2703 = vmatpush1.msra.mxu0 0.0
        %2704 = vmatprep.subr.mxu0 0.0
        %2705 = vmatpush1.msra.mxu0 0.0
        %2706 = vmatprep.subr.mxu0 0.0
        %2707 = vmatpush1.msra.mxu0 0.0
        %2708 = vmatprep.subr.mxu0 0.0
        %2709 = vmatpush1.msra.mxu0 0.0
        %2710 = vmatprep.subr.mxu0 0.0
        %2711 = vmatpush1.msra.mxu0 0.0
        %2712 = vmatprep.subr.mxu0 0.0
        %2713 = vmatpush1.msra.mxu0 0.0
        %2714 = vmatprep.subr.mxu0 0.0
        %2715 = vmatpush1.msra.mxu0 0.0
        %2716 = vmatprep.subr.mxu0 0.0
        %2717 = vmatpush1.msra.mxu0 0.0
        %2718 = vmatprep.subr.mxu0 0.0
        %2719 = vmatpush1.msra.mxu0 0.0
        %2720 = vmatprep.subr.mxu0 0.0
        %2721 = vmatpush1.msra.mxu0 0.0
        %2722 = vmatprep.subr.mxu0 0.0
        %2723 = vmatpush1.msra.mxu0 0.0
        %2724 = vmatprep.subr.mxu0 0.0
        %2725 = vmatpush1.msra.mxu0 0.0
        %2726 = vmatprep.mubr.f32.mxu0 0.0
        %2727 = vmatmul.mubr.f32.gmra.mrb[0].mxu0 %v2571
        %v2728 = vpop.f32.mrb[0].mxu0
        %v2729 = vadd.f32 %v2659, %v2728
        %v2730 = vpop.f32.mrb[0].mxu0
        %2731 = vdwg.mxu0
        %v2732 = vld [vmem:[%s6] sm:$0x1]
        %v2734 = vlaneseq
        %v2735 = vshrl.u32 %v2734, 7
        %v2736 = vsub.s32 0, %v2735
        %v2737 = vrot.slane %v2732, %v2736
        %v2739 = vadd.f32 %v2729, %v2737
        %v2740 = vxor.u32 %v2739, 2147483648
        %v2741 = vmul.f32 %v2740, 1.442695
        %v2742 = vpow.pop %v2741
        %v2743 = vadd.f32 %v2742, 1.0
        %v2744 = vrcp.pop %v2743
        %v2745 = vmul.f32 1.0, %v2744
        %v2746 = vtanh.pop %v2739
        %v2747 = vmul.f32 %v2745, %v2456
        %2749 = vrot.lane.b32.xlu0 %v2746, 32
        %v2750 = vpop.permute.xlu0 %2749
        %v2752 = vmul.f32 %v2745, %v2750
        %2754 = vrot.lane.b32.xlu0 %v2752, 32
        %v2755 = vpop.permute.xlu0 %2754
        %v2757 = vadd.f32 %v2747, %v2755
        %v2758 = vtanh.pop %v2757
        %2760 = vrot.lane.b32.xlu0 %v2758, 32
        %v2761 = vpop.permute.xlu0 %2760
        %v2763 = vmul.f32 %v2745, %v2761
        %v2764 = vld [vmem:[#allocation8] sm:$0xff]
        %v2765 = vld [vmem:[#allocation8 + $0x8] sm:$0xff]
        %v2766 = vld [vmem:[#allocation8 + $0x10] sm:$0xff]
        %v2767 = vld [vmem:[#allocation8 + $0x18] sm:$0xff]
        %v2768 = vld [vmem:[%s8] sm:$0x1]
        %v2770 = vlaneseq
        %v2771 = vshrl.u32 %v2770, 7
        %v2772 = vsub.s32 0, %v2771
        %v2773 = vrot.slane %v2768, %v2772
        %2776 = vrot.lane.b32.xlu0 %v2763, 64
        %v2777 = vpop.permute.xlu0 %2776
        %v2778 = vsel %vm496, %v2777, 0
        %2780 = vmatprep.subr.mxu0 0.0
        %2781 = vmatpush1.msra.mxu0 %v2764
        %2782 = vmatprep.subr.mxu0 0.0
        %2783 = vmatpush1.msra.mxu0 %v2765
        %2784 = vmatprep.subr.mxu0 0.0
        %2785 = vmatpush1.msra.mxu0 %v2766
        %2786 = vmatprep.subr.mxu0 0.0
        %2787 = vmatpush1.msra.mxu0 %v2767
        %2788 = vmatprep.subr.mxu0 0.0
        %2789 = vmatpush1.msra.mxu0 0.0
        %2790 = vmatprep.subr.mxu0 0.0
        %2791 = vmatpush1.msra.mxu0 0.0
        %2792 = vmatprep.subr.mxu0 0.0
        %2793 = vmatpush1.msra.mxu0 0.0
        %2794 = vmatprep.subr.mxu0 0.0
        %2795 = vmatpush1.msra.mxu0 0.0
        %2796 = vmatprep.subr.mxu0 0.0
        %2797 = vmatpush1.msra.mxu0 0.0
        %2798 = vmatprep.subr.mxu0 0.0
        %2799 = vmatpush1.msra.mxu0 0.0
        %2800 = vmatprep.subr.mxu0 0.0
        %2801 = vmatpush1.msra.mxu0 0.0
        %2802 = vmatprep.subr.mxu0 0.0
        %2803 = vmatpush1.msra.mxu0 0.0
        %2804 = vmatprep.subr.mxu0 0.0
        %2805 = vmatpush1.msra.mxu0 0.0
        %2806 = vmatprep.subr.mxu0 0.0
        %2807 = vmatpush1.msra.mxu0 0.0
        %2808 = vmatprep.subr.mxu0 0.0
        %2809 = vmatpush1.msra.mxu0 0.0
        %2810 = vmatprep.subr.mxu0 0.0
        %2811 = vmatpush1.msra.mxu0 0.0
        %2812 = vmatprep.subr.mxu0 0.0
        %2813 = vmatpush1.msra.mxu0 0.0
        %2814 = vmatprep.subr.mxu0 0.0
        %2815 = vmatpush1.msra.mxu0 0.0
        %2816 = vmatprep.subr.mxu0 0.0
        %2817 = vmatpush1.msra.mxu0 0.0
        %2818 = vmatprep.subr.mxu0 0.0
        %2819 = vmatpush1.msra.mxu0 0.0
        %2820 = vmatprep.subr.mxu0 0.0
        %2821 = vmatpush1.msra.mxu0 0.0
        %2822 = vmatprep.subr.mxu0 0.0
        %2823 = vmatpush1.msra.mxu0 0.0
        %2824 = vmatprep.subr.mxu0 0.0
        %2825 = vmatpush1.msra.mxu0 0.0
        %2826 = vmatprep.subr.mxu0 0.0
        %2827 = vmatpush1.msra.mxu0 0.0
        %2828 = vmatprep.subr.mxu0 0.0
        %2829 = vmatpush1.msra.mxu0 0.0
        %2830 = vmatprep.subr.mxu0 0.0
        %2831 = vmatpush1.msra.mxu0 0.0
        %2832 = vmatprep.subr.mxu0 0.0
        %2833 = vmatpush1.msra.mxu0 0.0
        %2834 = vmatprep.subr.mxu0 0.0
        %2835 = vmatpush1.msra.mxu0 0.0
        %2836 = vmatprep.subr.mxu0 0.0
        %2837 = vmatpush1.msra.mxu0 0.0
        %2838 = vmatprep.subr.mxu0 0.0
        %2839 = vmatpush1.msra.mxu0 0.0
        %2840 = vmatprep.subr.mxu0 0.0
        %2841 = vmatpush1.msra.mxu0 0.0
        %2842 = vmatprep.subr.mxu0 0.0
        %2843 = vmatpush1.msra.mxu0 0.0
        %2844 = vmatprep.mubr.f32.mxu0 0.0
        %2845 = vmatmul.mubr.f32.gmra.mrb[0].mxu0 %v2778
        %v2846 = vpop.f32.mrb[0].mxu0
        %v2847 = vadd.f32 %v2773, %v2846
        %v2848 = vpop.f32.mrb[0].mxu0
        %2849 = vdwg.mxu0
        %2850 = vmax.xlane.f32.xlu0 %v2847
        %v2851 = vpop.xlane.xlu0 %2850
        %vm2852 = vcmp.eq.f32.partialorder %v2847, %v2851
        %v2853 = vsel %vm2852, %v426, 128
        %v2854 = vand.u32 %v2853, 65535
        %v2855 = vshra.s32 %v2853, 16
        %v2856 = vcvt.s32.f32 %v2854
        %v2857 = vcvt.s32.f32 %v2855
        %2858 = vmin.xlane.f32.xlu0 %v2857
        %v2859 = vpop.xlane.xlu0 %2858
        %vm2860 = vcmp.eq.f32.partialorder %v2857, %v2859
        %v2861 = vsel %vm2860, %v2856, inf
        %2862 = vmin.xlane.f32.xlu0 %v2861
        %v2863 = vpop.xlane.xlu0 %2862
        %v2864 = vcvt.f32.s32 %v2863
        %v2865 = vcvt.f32.s32 %v2859
        %v2866 = vshll.u32 %v2865, 16
        %v2867 = vadd.s32 %v2866, %v2864
        %vm2868 = vcmask 23568
        %2869 = vst.msk [vmem:[%s424] sm:$0xff] %vm2868, %v2867
        %vm2870 = vcmp.eq.s32.totalorder %v2867, %v426
        %v2871 = vsel %vm2870, 1, 0
        %v2872 = vcvt.s32.f32 %v2871
        %v2873 = vld [vmem:[#allocation7] sm:$0xff]
        %v2874 = vld [vmem:[#allocation7 + $0x8] sm:$0xff]
        %v2875 = vld [vmem:[#allocation7 + $0x10] sm:$0xff]
        %v2876 = vld [vmem:[#allocation7 + $0x18] sm:$0xff]
        %v2877 = vld [vmem:[#allocation7 + $0x20] sm:$0xff]
        %v2878 = vld [vmem:[#allocation7 + $0x28] sm:$0xff]
        %v2879 = vld [vmem:[#allocation7 + $0x30] sm:$0xff]
        %v2880 = vld [vmem:[#allocation7 + $0x38] sm:$0xff]
        %v2881 = vld [vmem:[#allocation7 + $0x40] sm:$0xff]
        %v2882 = vld [vmem:[#allocation7 + $0x48] sm:$0xff]
        %v2883 = vld [vmem:[#allocation7 + $0x50] sm:$0xff]
        %v2884 = vld [vmem:[#allocation7 + $0x58] sm:$0xff]
        %v2885 = vld [vmem:[#allocation7 + $0x60] sm:$0xff]
        %v2886 = vld [vmem:[#allocation7 + $0x68] sm:$0xff]
        %v2887 = vld [vmem:[#allocation7 + $0x70] sm:$0xff]
        %v2888 = vld [vmem:[#allocation7 + $0x78] sm:$0xff]
        %v2889 = vld [vmem:[%s5] sm:$0xff]
        %v2890 = vld [vmem:[%s5 + $0x8] sm:$0xff]
        %v2891 = vld [vmem:[%s5 + $0x10] sm:$0xff]
        %v2892 = vld [vmem:[%s5 + $0x18] sm:$0xff]
        %2893 = vmatprep.subr.mxu0 0.0
        %2894 = vmatpush1.msra.mxu0 %v2889
        %2895 = vmatprep.subr.mxu0 0.0
        %2896 = vmatpush1.msra.mxu0 %v2890
        %2897 = vmatprep.subr.mxu0 0.0
        %2898 = vmatpush1.msra.mxu0 %v2891
        %2899 = vmatprep.subr.mxu0 0.0
        %2900 = vmatpush1.msra.mxu0 %v2892
        %2901 = vmatprep.subr.mxu0 0.0
        %2902 = vmatpush1.msra.mxu0 0.0
        %2903 = vmatprep.subr.mxu0 0.0
        %2904 = vmatpush1.msra.mxu0 0.0
        %2905 = vmatprep.subr.mxu0 0.0
        %2906 = vmatpush1.msra.mxu0 0.0
        %2907 = vmatprep.subr.mxu0 0.0
        %2908 = vmatpush1.msra.mxu0 0.0
        %2909 = vmatprep.subr.mxu0 0.0
        %2910 = vmatpush1.msra.mxu0 0.0
        %2911 = vmatprep.subr.mxu0 0.0
        %2912 = vmatpush1.msra.mxu0 0.0
        %2913 = vmatprep.subr.mxu0 0.0
        %2914 = vmatpush1.msra.mxu0 0.0
        %2915 = vmatprep.subr.mxu0 0.0
        %2916 = vmatpush1.msra.mxu0 0.0
        %2917 = vmatprep.subr.mxu0 0.0
        %2918 = vmatpush1.msra.mxu0 0.0
        %2919 = vmatprep.subr.mxu0 0.0
        %2920 = vmatpush1.msra.mxu0 0.0
        %2921 = vmatprep.subr.mxu0 0.0
        %2922 = vmatpush1.msra.mxu0 0.0
        %2923 = vmatprep.subr.mxu0 0.0
        %2924 = vmatpush1.msra.mxu0 0.0
        %2925 = vmatprep.subr.mxu0 0.0
        %2926 = vmatpush1.msra.mxu0 0.0
        %2927 = vmatprep.subr.mxu0 0.0
        %2928 = vmatpush1.msra.mxu0 0.0
        %2929 = vmatprep.subr.mxu0 0.0
        %2930 = vmatpush1.msra.mxu0 0.0
        %2931 = vmatprep.subr.mxu0 0.0
        %2932 = vmatpush1.msra.mxu0 0.0
        %2933 = vmatprep.subr.mxu0 0.0
        %2934 = vmatpush1.msra.mxu0 0.0
        %2935 = vmatprep.subr.mxu0 0.0
        %2936 = vmatpush1.msra.mxu0 0.0
        %2937 = vmatprep.subr.mxu0 0.0
        %2938 = vmatpush1.msra.mxu0 0.0
        %2939 = vmatprep.subr.mxu0 0.0
        %2940 = vmatpush1.msra.mxu0 0.0
        %2941 = vmatprep.subr.mxu0 0.0
        %2942 = vmatpush1.msra.mxu0 0.0
        %2943 = vmatprep.subr.mxu0 0.0
        %2944 = vmatpush1.msra.mxu0 0.0
        %2945 = vmatprep.subr.mxu0 0.0
        %2946 = vmatpush1.msra.mxu0 0.0
        %2947 = vmatprep.subr.mxu0 0.0
        %2948 = vmatpush1.msra.mxu0 0.0
        %2949 = vmatprep.subr.mxu0 0.0
        %2950 = vmatpush1.msra.mxu0 0.0
        %2951 = vmatprep.subr.mxu0 0.0
        %2952 = vmatpush1.msra.mxu0 0.0
        %2953 = vmatprep.subr.mxu0 0.0
        %2954 = vmatpush1.msra.mxu0 0.0
        %2955 = vmatprep.subr.mxu0 0.0
        %2956 = vmatpush1.msra.mxu0 0.0
        %2957 = vmatprep.mubr.f32.mxu0 0.0
        %2958 = vmatmul.mubr.f32.gmra.mrb[0].mxu0 %v2778
        %v2959 = vpop.f32.mrb[0].mxu0
        %v2960 = vadd.f32 0.0, %v2959
        %v2961 = vpop.f32.mrb[0].mxu0
        %2962 = vdwg.mxu0
        %2963 = vmatprep.subr.mxu0 0.0
        %2964 = vmatpush1.msra.mxu0 %v2873
        %2965 = vmatprep.subr.mxu0 0.0
        %2966 = vmatpush1.msra.mxu0 %v2874
        %2967 = vmatprep.subr.mxu0 0.0
        %2968 = vmatpush1.msra.mxu0 %v2875
        %2969 = vmatprep.subr.mxu0 0.0
        %2970 = vmatpush1.msra.mxu0 %v2876
        %2971 = vmatprep.subr.mxu0 0.0
        %2972 = vmatpush1.msra.mxu0 %v2877
        %2973 = vmatprep.subr.mxu0 0.0
        %2974 = vmatpush1.msra.mxu0 %v2878
        %2975 = vmatprep.subr.mxu0 0.0
        %2976 = vmatpush1.msra.mxu0 %v2879
        %2977 = vmatprep.subr.mxu0 0.0
        %2978 = vmatpush1.msra.mxu0 %v2880
        %2979 = vmatprep.subr.mxu0 0.0
        %2980 = vmatpush1.msra.mxu0 %v2881
        %2981 = vmatprep.subr.mxu0 0.0
        %2982 = vmatpush1.msra.mxu0 %v2882
        %2983 = vmatprep.subr.mxu0 0.0
        %2984 = vmatpush1.msra.mxu0 %v2883
        %2985 = vmatprep.subr.mxu0 0.0
        %2986 = vmatpush1.msra.mxu0 %v2884
        %2987 = vmatprep.subr.mxu0 0.0
        %2988 = vmatpush1.msra.mxu0 %v2885
        %2989 = vmatprep.subr.mxu0 0.0
        %2990 = vmatpush1.msra.mxu0 %v2886
        %2991 = vmatprep.subr.mxu0 0.0
        %2992 = vmatpush1.msra.mxu0 %v2887
        %2993 = vmatprep.subr.mxu0 0.0
        %2994 = vmatpush1.msra.mxu0 %v2888
        %2995 = vmatprep.subr.mxu0 0.0
        %2996 = vmatpush1.msra.mxu0 0.0
        %2997 = vmatprep.subr.mxu0 0.0
        %2998 = vmatpush1.msra.mxu0 0.0
        %2999 = vmatprep.subr.mxu0 0.0
        %3000 = vmatpush1.msra.mxu0 0.0
        %3001 = vmatprep.subr.mxu0 0.0
        %3002 = vmatpush1.msra.mxu0 0.0
        %3003 = vmatprep.subr.mxu0 0.0
        %3004 = vmatpush1.msra.mxu0 0.0
        %3005 = vmatprep.subr.mxu0 0.0
        %3006 = vmatpush1.msra.mxu0 0.0
        %3007 = vmatprep.subr.mxu0 0.0
        %3008 = vmatpush1.msra.mxu0 0.0
        %3009 = vmatprep.subr.mxu0 0.0
        %3010 = vmatpush1.msra.mxu0 0.0
        %3011 = vmatprep.subr.mxu0 0.0
        %3012 = vmatpush1.msra.mxu0 0.0
        %3013 = vmatprep.subr.mxu0 0.0
        %3014 = vmatpush1.msra.mxu0 0.0
        %3015 = vmatprep.subr.mxu0 0.0
        %3016 = vmatpush1.msra.mxu0 0.0
        %3017 = vmatprep.subr.mxu0 0.0
        %3018 = vmatpush1.msra.mxu0 0.0
        %3019 = vmatprep.subr.mxu0 0.0
        %3020 = vmatpush1.msra.mxu0 0.0
        %3021 = vmatprep.subr.mxu0 0.0
        %3022 = vmatpush1.msra.mxu0 0.0
        %3023 = vmatprep.subr.mxu0 0.0
        %3024 = vmatpush1.msra.mxu0 0.0
        %3025 = vmatprep.subr.mxu0 0.0
        %3026 = vmatpush1.msra.mxu0 0.0
        %3027 = vmatprep.mubr.f32.mxu0 0.0
        %3028 = vmatmul.mubr.f32.gmra.mrb[0].mxu0 %v2872
        %v3029 = vpop.f32.mrb[0].mxu0
        %v3030 = vadd.f32 %v2960, %v3029
        %v3031 = vpop.f32.mrb[0].mxu0
        %3032 = vdwg.mxu0
        %v3033 = vld [vmem:[%s6] sm:$0x1]
        %v3035 = vlaneseq
        %v3036 = vshrl.u32 %v3035, 7
        %v3037 = vsub.s32 0, %v3036
        %v3038 = vrot.slane %v3033, %v3037
        %v3040 = vadd.f32 %v3030, %v3038
        %v3041 = vxor.u32 %v3040, 2147483648
        %v3042 = vmul.f32 %v3041, 1.442695
        %v3043 = vpow.pop %v3042
        %v3044 = vadd.f32 %v3043, 1.0
        %v3045 = vrcp.pop %v3044
        %v3046 = vmul.f32 1.0, %v3045
        %v3047 = vtanh.pop %v3040
        %v3048 = vmul.f32 %v3046, %v2757
        %3050 = vrot.lane.b32.xlu0 %v3047, 32
        %v3051 = vpop.permute.xlu0 %3050
        %v3053 = vmul.f32 %v3046, %v3051
        %3055 = vrot.lane.b32.xlu0 %v3053, 32
        %v3056 = vpop.permute.xlu0 %3055
        %v3058 = vadd.f32 %v3048, %v3056
        %v3059 = vtanh.pop %v3058
        %3061 = vrot.lane.b32.xlu0 %v3059, 32
        %v3062 = vpop.permute.xlu0 %3061
        %v3064 = vmul.f32 %v3046, %v3062
        %v3065 = vld [vmem:[#allocation8] sm:$0xff]
        %v3066 = vld [vmem:[#allocation8 + $0x8] sm:$0xff]
        %v3067 = vld [vmem:[#allocation8 + $0x10] sm:$0xff]
        %v3068 = vld [vmem:[#allocation8 + $0x18] sm:$0xff]
        %v3069 = vld [vmem:[%s8] sm:$0x1]
        %v3071 = vlaneseq
        %v3072 = vshrl.u32 %v3071, 7
        %v3073 = vsub.s32 0, %v3072
        %v3074 = vrot.slane %v3069, %v3073
        %3077 = vrot.lane.b32.xlu0 %v3064, 64
        %v3078 = vpop.permute.xlu0 %3077
        %v3079 = vsel %vm496, %v3078, 0
        %3081 = vmatprep.subr.mxu0 0.0
        %3082 = vmatpush1.msra.mxu0 %v3065
        %3083 = vmatprep.subr.mxu0 0.0
        %3084 = vmatpush1.msra.mxu0 %v3066
        %3085 = vmatprep.subr.mxu0 0.0
        %3086 = vmatpush1.msra.mxu0 %v3067
        %3087 = vmatprep.subr.mxu0 0.0
        %3088 = vmatpush1.msra.mxu0 %v3068
        %3089 = vmatprep.subr.mxu0 0.0
        %3090 = vmatpush1.msra.mxu0 0.0
        %3091 = vmatprep.subr.mxu0 0.0
        %3092 = vmatpush1.msra.mxu0 0.0
        %3093 = vmatprep.subr.mxu0 0.0
        %3094 = vmatpush1.msra.mxu0 0.0
        %3095 = vmatprep.subr.mxu0 0.0
        %3096 = vmatpush1.msra.mxu0 0.0
        %3097 = vmatprep.subr.mxu0 0.0
        %3098 = vmatpush1.msra.mxu0 0.0
        %3099 = vmatprep.subr.mxu0 0.0
        %3100 = vmatpush1.msra.mxu0 0.0
        %3101 = vmatprep.subr.mxu0 0.0
        %3102 = vmatpush1.msra.mxu0 0.0
        %3103 = vmatprep.subr.mxu0 0.0
        %3104 = vmatpush1.msra.mxu0 0.0
        %3105 = vmatprep.subr.mxu0 0.0
        %3106 = vmatpush1.msra.mxu0 0.0
        %3107 = vmatprep.subr.mxu0 0.0
        %3108 = vmatpush1.msra.mxu0 0.0
        %3109 = vmatprep.subr.mxu0 0.0
        %3110 = vmatpush1.msra.mxu0 0.0
        %3111 = vmatprep.subr.mxu0 0.0
        %3112 = vmatpush1.msra.mxu0 0.0
        %3113 = vmatprep.subr.mxu0 0.0
        %3114 = vmatpush1.msra.mxu0 0.0
        %3115 = vmatprep.subr.mxu0 0.0
        %3116 = vmatpush1.msra.mxu0 0.0
        %3117 = vmatprep.subr.mxu0 0.0
        %3118 = vmatpush1.msra.mxu0 0.0
        %3119 = vmatprep.subr.mxu0 0.0
        %3120 = vmatpush1.msra.mxu0 0.0
        %3121 = vmatprep.subr.mxu0 0.0
        %3122 = vmatpush1.msra.mxu0 0.0
        %3123 = vmatprep.subr.mxu0 0.0
        %3124 = vmatpush1.msra.mxu0 0.0
        %3125 = vmatprep.subr.mxu0 0.0
        %3126 = vmatpush1.msra.mxu0 0.0
        %3127 = vmatprep.subr.mxu0 0.0
        %3128 = vmatpush1.msra.mxu0 0.0
        %3129 = vmatprep.subr.mxu0 0.0
        %3130 = vmatpush1.msra.mxu0 0.0
        %3131 = vmatprep.subr.mxu0 0.0
        %3132 = vmatpush1.msra.mxu0 0.0
        %3133 = vmatprep.subr.mxu0 0.0
        %3134 = vmatpush1.msra.mxu0 0.0
        %3135 = vmatprep.subr.mxu0 0.0
        %3136 = vmatpush1.msra.mxu0 0.0
        %3137 = vmatprep.subr.mxu0 0.0
        %3138 = vmatpush1.msra.mxu0 0.0
        %3139 = vmatprep.subr.mxu0 0.0
        %3140 = vmatpush1.msra.mxu0 0.0
        %3141 = vmatprep.subr.mxu0 0.0
        %3142 = vmatpush1.msra.mxu0 0.0
        %3143 = vmatprep.subr.mxu0 0.0
        %3144 = vmatpush1.msra.mxu0 0.0
        %3145 = vmatprep.mubr.f32.mxu0 0.0
        %3146 = vmatmul.mubr.f32.gmra.mrb[0].mxu0 %v3079
        %v3147 = vpop.f32.mrb[0].mxu0
        %v3148 = vadd.f32 %v3074, %v3147
        %v3149 = vpop.f32.mrb[0].mxu0
        %3150 = vdwg.mxu0
        %3151 = vmax.xlane.f32.xlu0 %v3148
        %v3152 = vpop.xlane.xlu0 %3151
        %vm3153 = vcmp.eq.f32.partialorder %v3148, %v3152
        %v3154 = vsel %vm3153, %v426, 128
        %v3155 = vand.u32 %v3154, 65535
        %v3156 = vshra.s32 %v3154, 16
        %v3157 = vcvt.s32.f32 %v3155
        %v3158 = vcvt.s32.f32 %v3156
        %3159 = vmin.xlane.f32.xlu0 %v3158
        %v3160 = vpop.xlane.xlu0 %3159
        %vm3161 = vcmp.eq.f32.partialorder %v3158, %v3160
        %v3162 = vsel %vm3161, %v3157, inf
        %3163 = vmin.xlane.f32.xlu0 %v3162
        %v3164 = vpop.xlane.xlu0 %3163
        %v3165 = vcvt.f32.s32 %v3164
        %v3166 = vcvt.f32.s32 %v3160
        %v3167 = vshll.u32 %v3166, 16
        %v3168 = vadd.s32 %v3167, %v3165
        %vm3169 = vcmask 31768
        %3170 = vst.msk [vmem:[%s424] sm:$0xff] %vm3169, %v3168
        %vm3171 = vcmp.eq.s32.totalorder %v3168, %v426
        %v3172 = vsel %vm3171, 1, 0
        %v3173 = vcvt.s32.f32 %v3172
        %v3174 = vld [vmem:[#allocation7] sm:$0xff]
        %v3175 = vld [vmem:[#allocation7 + $0x8] sm:$0xff]
        %v3176 = vld [vmem:[#allocation7 + $0x10] sm:$0xff]
        %v3177 = vld [vmem:[#allocation7 + $0x18] sm:$0xff]
        %v3178 = vld [vmem:[#allocation7 + $0x20] sm:$0xff]
        %v3179 = vld [vmem:[#allocation7 + $0x28] sm:$0xff]
        %v3180 = vld [vmem:[#allocation7 + $0x30] sm:$0xff]
        %v3181 = vld [vmem:[#allocation7 + $0x38] sm:$0xff]
        %v3182 = vld [vmem:[#allocation7 + $0x40] sm:$0xff]
        %v3183 = vld [vmem:[#allocation7 + $0x48] sm:$0xff]
        %v3184 = vld [vmem:[#allocation7 + $0x50] sm:$0xff]
        %v3185 = vld [vmem:[#allocation7 + $0x58] sm:$0xff]
        %v3186 = vld [vmem:[#allocation7 + $0x60] sm:$0xff]
        %v3187 = vld [vmem:[#allocation7 + $0x68] sm:$0xff]
        %v3188 = vld [vmem:[#allocation7 + $0x70] sm:$0xff]
        %v3189 = vld [vmem:[#allocation7 + $0x78] sm:$0xff]
        %v3190 = vld [vmem:[%s5] sm:$0xff]
        %v3191 = vld [vmem:[%s5 + $0x8] sm:$0xff]
        %v3192 = vld [vmem:[%s5 + $0x10] sm:$0xff]
        %v3193 = vld [vmem:[%s5 + $0x18] sm:$0xff]
        %3194 = vmatprep.subr.mxu0 0.0
        %3195 = vmatpush1.msra.mxu0 %v3190
        %3196 = vmatprep.subr.mxu0 0.0
        %3197 = vmatpush1.msra.mxu0 %v3191
        %3198 = vmatprep.subr.mxu0 0.0
        %3199 = vmatpush1.msra.mxu0 %v3192
        %3200 = vmatprep.subr.mxu0 0.0
        %3201 = vmatpush1.msra.mxu0 %v3193
        %3202 = vmatprep.subr.mxu0 0.0
        %3203 = vmatpush1.msra.mxu0 0.0
        %3204 = vmatprep.subr.mxu0 0.0
        %3205 = vmatpush1.msra.mxu0 0.0
        %3206 = vmatprep.subr.mxu0 0.0
        %3207 = vmatpush1.msra.mxu0 0.0
        %3208 = vmatprep.subr.mxu0 0.0
        %3209 = vmatpush1.msra.mxu0 0.0
        %3210 = vmatprep.subr.mxu0 0.0
        %3211 = vmatpush1.msra.mxu0 0.0
        %3212 = vmatprep.subr.mxu0 0.0
        %3213 = vmatpush1.msra.mxu0 0.0
        %3214 = vmatprep.subr.mxu0 0.0
        %3215 = vmatpush1.msra.mxu0 0.0
        %3216 = vmatprep.subr.mxu0 0.0
        %3217 = vmatpush1.msra.mxu0 0.0
        %3218 = vmatprep.subr.mxu0 0.0
        %3219 = vmatpush1.msra.mxu0 0.0
        %3220 = vmatprep.subr.mxu0 0.0
        %3221 = vmatpush1.msra.mxu0 0.0
        %3222 = vmatprep.subr.mxu0 0.0
        %3223 = vmatpush1.msra.mxu0 0.0
        %3224 = vmatprep.subr.mxu0 0.0
        %3225 = vmatpush1.msra.mxu0 0.0
        %3226 = vmatprep.subr.mxu0 0.0
        %3227 = vmatpush1.msra.mxu0 0.0
        %3228 = vmatprep.subr.mxu0 0.0
        %3229 = vmatpush1.msra.mxu0 0.0
        %3230 = vmatprep.subr.mxu0 0.0
        %3231 = vmatpush1.msra.mxu0 0.0
        %3232 = vmatprep.subr.mxu0 0.0
        %3233 = vmatpush1.msra.mxu0 0.0
        %3234 = vmatprep.subr.mxu0 0.0
        %3235 = vmatpush1.msra.mxu0 0.0
        %3236 = vmatprep.subr.mxu0 0.0
        %3237 = vmatpush1.msra.mxu0 0.0
        %3238 = vmatprep.subr.mxu0 0.0
        %3239 = vmatpush1.msra.mxu0 0.0
        %3240 = vmatprep.subr.mxu0 0.0
        %3241 = vmatpush1.msra.mxu0 0.0
        %3242 = vmatprep.subr.mxu0 0.0
        %3243 = vmatpush1.msra.mxu0 0.0
        %3244 = vmatprep.subr.mxu0 0.0
        %3245 = vmatpush1.msra.mxu0 0.0
        %3246 = vmatprep.subr.mxu0 0.0
        %3247 = vmatpush1.msra.mxu0 0.0
        %3248 = vmatprep.subr.mxu0 0.0
        %3249 = vmatpush1.msra.mxu0 0.0
        %3250 = vmatprep.subr.mxu0 0.0
        %3251 = vmatpush1.msra.mxu0 0.0
        %3252 = vmatprep.subr.mxu0 0.0
        %3253 = vmatpush1.msra.mxu0 0.0
        %3254 = vmatprep.subr.mxu0 0.0
        %3255 = vmatpush1.msra.mxu0 0.0
        %3256 = vmatprep.subr.mxu0 0.0
        %3257 = vmatpush1.msra.mxu0 0.0
        %3258 = vmatprep.mubr.f32.mxu0 0.0
        %3259 = vmatmul.mubr.f32.gmra.mrb[0].mxu0 %v3079
        %v3260 = vpop.f32.mrb[0].mxu0
        %v3261 = vadd.f32 0.0, %v3260
        %v3262 = vpop.f32.mrb[0].mxu0
        %3263 = vdwg.mxu0
        %3264 = vmatprep.subr.mxu0 0.0
        %3265 = vmatpush1.msra.mxu0 %v3174
        %3266 = vmatprep.subr.mxu0 0.0
        %3267 = vmatpush1.msra.mxu0 %v3175
        %3268 = vmatprep.subr.mxu0 0.0
        %3269 = vmatpush1.msra.mxu0 %v3176
        %3270 = vmatprep.subr.mxu0 0.0
        %3271 = vmatpush1.msra.mxu0 %v3177
        %3272 = vmatprep.subr.mxu0 0.0
        %3273 = vmatpush1.msra.mxu0 %v3178
        %3274 = vmatprep.subr.mxu0 0.0
        %3275 = vmatpush1.msra.mxu0 %v3179
        %3276 = vmatprep.subr.mxu0 0.0
        %3277 = vmatpush1.msra.mxu0 %v3180
        %3278 = vmatprep.subr.mxu0 0.0
        %3279 = vmatpush1.msra.mxu0 %v3181
        %3280 = vmatprep.subr.mxu0 0.0
        %3281 = vmatpush1.msra.mxu0 %v3182
        %3282 = vmatprep.subr.mxu0 0.0
        %3283 = vmatpush1.msra.mxu0 %v3183
        %3284 = vmatprep.subr.mxu0 0.0
        %3285 = vmatpush1.msra.mxu0 %v3184
        %3286 = vmatprep.subr.mxu0 0.0
        %3287 = vmatpush1.msra.mxu0 %v3185
        %3288 = vmatprep.subr.mxu0 0.0
        %3289 = vmatpush1.msra.mxu0 %v3186
        %3290 = vmatprep.subr.mxu0 0.0
        %3291 = vmatpush1.msra.mxu0 %v3187
        %3292 = vmatprep.subr.mxu0 0.0
        %3293 = vmatpush1.msra.mxu0 %v3188
        %3294 = vmatprep.subr.mxu0 0.0
        %3295 = vmatpush1.msra.mxu0 %v3189
        %3296 = vmatprep.subr.mxu0 0.0
        %3297 = vmatpush1.msra.mxu0 0.0
        %3298 = vmatprep.subr.mxu0 0.0
        %3299 = vmatpush1.msra.mxu0 0.0
        %3300 = vmatprep.subr.mxu0 0.0
        %3301 = vmatpush1.msra.mxu0 0.0
        %3302 = vmatprep.subr.mxu0 0.0
        %3303 = vmatpush1.msra.mxu0 0.0
        %3304 = vmatprep.subr.mxu0 0.0
        %3305 = vmatpush1.msra.mxu0 0.0
        %3306 = vmatprep.subr.mxu0 0.0
        %3307 = vmatpush1.msra.mxu0 0.0
        %3308 = vmatprep.subr.mxu0 0.0
        %3309 = vmatpush1.msra.mxu0 0.0
        %3310 = vmatprep.subr.mxu0 0.0
        %3311 = vmatpush1.msra.mxu0 0.0
        %3312 = vmatprep.subr.mxu0 0.0
        %3313 = vmatpush1.msra.mxu0 0.0
        %3314 = vmatprep.subr.mxu0 0.0
        %3315 = vmatpush1.msra.mxu0 0.0
        %3316 = vmatprep.subr.mxu0 0.0
        %3317 = vmatpush1.msra.mxu0 0.0
        %3318 = vmatprep.subr.mxu0 0.0
        %3319 = vmatpush1.msra.mxu0 0.0
        %3320 = vmatprep.subr.mxu0 0.0
        %3321 = vmatpush1.msra.mxu0 0.0
        %3322 = vmatprep.subr.mxu0 0.0
        %3323 = vmatpush1.msra.mxu0 0.0
        %3324 = vmatprep.subr.mxu0 0.0
        %3325 = vmatpush1.msra.mxu0 0.0
        %3326 = vmatprep.subr.mxu0 0.0
        %3327 = vmatpush1.msra.mxu0 0.0
        %3328 = vmatprep.mubr.f32.mxu0 0.0
        %3329 = vmatmul.mubr.f32.gmra.mrb[0].mxu0 %v3173
        %v3330 = vpop.f32.mrb[0].mxu0
        %v3331 = vadd.f32 %v3261, %v3330
        %v3332 = vpop.f32.mrb[0].mxu0
        %3333 = vdwg.mxu0
        %v3334 = vld [vmem:[%s6] sm:$0x1]
        %v3336 = vlaneseq
        %v3337 = vshrl.u32 %v3336, 7
        %v3338 = vsub.s32 0, %v3337
        %v3339 = vrot.slane %v3334, %v3338
        %v3341 = vadd.f32 %v3331, %v3339
        %v3342 = vxor.u32 %v3341, 2147483648
        %v3343 = vmul.f32 %v3342, 1.442695
        %v3344 = vpow.pop %v3343
        %v3345 = vadd.f32 %v3344, 1.0
        %v3346 = vrcp.pop %v3345
        %v3347 = vmul.f32 1.0, %v3346
        %v3348 = vtanh.pop %v3341
        %v3349 = vmul.f32 %v3347, %v3058
        %3351 = vrot.lane.b32.xlu0 %v3348, 32
        %v3352 = vpop.permute.xlu0 %3351
        %v3354 = vmul.f32 %v3347, %v3352
        %3356 = vrot.lane.b32.xlu0 %v3354, 32
        %v3357 = vpop.permute.xlu0 %3356
        %v3359 = vadd.f32 %v3349, %v3357
        %v3360 = vtanh.pop %v3359
        %3362 = vrot.lane.b32.xlu0 %v3360, 32
        %v3363 = vpop.permute.xlu0 %3362
        %v3365 = vmul.f32 %v3347, %v3363
        %v3366 = vld [vmem:[#allocation8] sm:$0xff]
        %v3367 = vld [vmem:[#allocation8 + $0x8] sm:$0xff]
        %v3368 = vld [vmem:[#allocation8 + $0x10] sm:$0xff]
        %v3369 = vld [vmem:[#allocation8 + $0x18] sm:$0xff]
        %v3370 = vld [vmem:[%s8] sm:$0x1]
        %v3372 = vlaneseq
        %v3373 = vshrl.u32 %v3372, 7
        %v3374 = vsub.s32 0, %v3373
        %v3375 = vrot.slane %v3370, %v3374
        %3378 = vrot.lane.b32.xlu0 %v3365, 64
        %v3379 = vpop.permute.xlu0 %3378
        %v3380 = vsel %vm496, %v3379, 0
        %3382 = vmatprep.subr.mxu0 0.0
        %3383 = vmatpush1.msra.mxu0 %v3366
        %3384 = vmatprep.subr.mxu0 0.0
        %3385 = vmatpush1.msra.mxu0 %v3367
        %3386 = vmatprep.subr.mxu0 0.0
        %3387 = vmatpush1.msra.mxu0 %v3368
        %3388 = vmatprep.subr.mxu0 0.0
        %3389 = vmatpush1.msra.mxu0 %v3369
        %3390 = vmatprep.subr.mxu0 0.0
        %3391 = vmatpush1.msra.mxu0 0.0
        %3392 = vmatprep.subr.mxu0 0.0
        %3393 = vmatpush1.msra.mxu0 0.0
        %3394 = vmatprep.subr.mxu0 0.0
        %3395 = vmatpush1.msra.mxu0 0.0
        %3396 = vmatprep.subr.mxu0 0.0
        %3397 = vmatpush1.msra.mxu0 0.0
        %3398 = vmatprep.subr.mxu0 0.0
        %3399 = vmatpush1.msra.mxu0 0.0
        %3400 = vmatprep.subr.mxu0 0.0
        %3401 = vmatpush1.msra.mxu0 0.0
        %3402 = vmatprep.subr.mxu0 0.0
        %3403 = vmatpush1.msra.mxu0 0.0
        %3404 = vmatprep.subr.mxu0 0.0
        %3405 = vmatpush1.msra.mxu0 0.0
        %3406 = vmatprep.subr.mxu0 0.0
        %3407 = vmatpush1.msra.mxu0 0.0
        %3408 = vmatprep.subr.mxu0 0.0
        %3409 = vmatpush1.msra.mxu0 0.0
        %3410 = vmatprep.subr.mxu0 0.0
        %3411 = vmatpush1.msra.mxu0 0.0
        %3412 = vmatprep.subr.mxu0 0.0
        %3413 = vmatpush1.msra.mxu0 0.0
        %3414 = vmatprep.subr.mxu0 0.0
        %3415 = vmatpush1.msra.mxu0 0.0
        %3416 = vmatprep.subr.mxu0 0.0
        %3417 = vmatpush1.msra.mxu0 0.0
        %3418 = vmatprep.subr.mxu0 0.0
        %3419 = vmatpush1.msra.mxu0 0.0
        %3420 = vmatprep.subr.mxu0 0.0
        %3421 = vmatpush1.msra.mxu0 0.0
        %3422 = vmatprep.subr.mxu0 0.0
        %3423 = vmatpush1.msra.mxu0 0.0
        %3424 = vmatprep.subr.mxu0 0.0
        %3425 = vmatpush1.msra.mxu0 0.0
        %3426 = vmatprep.subr.mxu0 0.0
        %3427 = vmatpush1.msra.mxu0 0.0
        %3428 = vmatprep.subr.mxu0 0.0
        %3429 = vmatpush1.msra.mxu0 0.0
        %3430 = vmatprep.subr.mxu0 0.0
        %3431 = vmatpush1.msra.mxu0 0.0
        %3432 = vmatprep.subr.mxu0 0.0
        %3433 = vmatpush1.msra.mxu0 0.0
        %3434 = vmatprep.subr.mxu0 0.0
        %3435 = vmatpush1.msra.mxu0 0.0
        %3436 = vmatprep.subr.mxu0 0.0
        %3437 = vmatpush1.msra.mxu0 0.0
        %3438 = vmatprep.subr.mxu0 0.0
        %3439 = vmatpush1.msra.mxu0 0.0
        %3440 = vmatprep.subr.mxu0 0.0
        %3441 = vmatpush1.msra.mxu0 0.0
        %3442 = vmatprep.subr.mxu0 0.0
        %3443 = vmatpush1.msra.mxu0 0.0
        %3444 = vmatprep.subr.mxu0 0.0
        %3445 = vmatpush1.msra.mxu0 0.0
        %3446 = vmatprep.mubr.f32.mxu0 0.0
        %3447 = vmatmul.mubr.f32.gmra.mrb[0].mxu0 %v3380
        %v3448 = vpop.f32.mrb[0].mxu0
        %v3449 = vadd.f32 %v3375, %v3448
        %v3450 = vpop.f32.mrb[0].mxu0
        %3451 = vdwg.mxu0
        %3452 = vmax.xlane.f32.xlu0 %v3449
        %v3453 = vpop.xlane.xlu0 %3452
        %vm3454 = vcmp.eq.f32.partialorder %v3449, %v3453
        %v3455 = vsel %vm3454, %v426, 128
        %v3456 = vand.u32 %v3455, 65535
        %v3457 = vshra.s32 %v3455, 16
        %v3458 = vcvt.s32.f32 %v3456
        %v3459 = vcvt.s32.f32 %v3457
        %3460 = vmin.xlane.f32.xlu0 %v3459
        %v3461 = vpop.xlane.xlu0 %3460
        %vm3462 = vcmp.eq.f32.partialorder %v3459, %v3461
        %v3463 = vsel %vm3462, %v3458, inf
        %3464 = vmin.xlane.f32.xlu0 %v3463
        %v3465 = vpop.xlane.xlu0 %3464
        %v3466 = vcvt.f32.s32 %v3465
        %v3467 = vcvt.f32.s32 %v3461
        %v3468 = vshll.u32 %v3467, 16
        %v3469 = vadd.s32 %v3468, %v3466
        %vm3470 = vcmask 39968
        %3471 = vst.msk [vmem:[%s424] sm:$0xff] %vm3470, %v3469
        %vm3472 = vcmp.eq.s32.totalorder %v3469, %v426
        %v3473 = vsel %vm3472, 1, 0
        %v3474 = vcvt.s32.f32 %v3473
        %v3475 = vld [vmem:[#allocation7] sm:$0xff]
        %v3476 = vld [vmem:[#allocation7 + $0x8] sm:$0xff]
        %v3477 = vld [vmem:[#allocation7 + $0x10] sm:$0xff]
        %v3478 = vld [vmem:[#allocation7 + $0x18] sm:$0xff]
        %v3479 = vld [vmem:[#allocation7 + $0x20] sm:$0xff]
        %v3480 = vld [vmem:[#allocation7 + $0x28] sm:$0xff]
        %v3481 = vld [vmem:[#allocation7 + $0x30] sm:$0xff]
        %v3482 = vld [vmem:[#allocation7 + $0x38] sm:$0xff]
        %v3483 = vld [vmem:[#allocation7 + $0x40] sm:$0xff]
        %v3484 = vld [vmem:[#allocation7 + $0x48] sm:$0xff]
        %v3485 = vld [vmem:[#allocation7 + $0x50] sm:$0xff]
        %v3486 = vld [vmem:[#allocation7 + $0x58] sm:$0xff]
        %v3487 = vld [vmem:[#allocation7 + $0x60] sm:$0xff]
        %v3488 = vld [vmem:[#allocation7 + $0x68] sm:$0xff]
        %v3489 = vld [vmem:[#allocation7 + $0x70] sm:$0xff]
        %v3490 = vld [vmem:[#allocation7 + $0x78] sm:$0xff]
        %v3491 = vld [vmem:[%s5] sm:$0xff]
        %v3492 = vld [vmem:[%s5 + $0x8] sm:$0xff]
        %v3493 = vld [vmem:[%s5 + $0x10] sm:$0xff]
        %v3494 = vld [vmem:[%s5 + $0x18] sm:$0xff]
        %3495 = vmatprep.subr.mxu0 0.0
        %3496 = vmatpush1.msra.mxu0 %v3491
        %3497 = vmatprep.subr.mxu0 0.0
        %3498 = vmatpush1.msra.mxu0 %v3492
        %3499 = vmatprep.subr.mxu0 0.0
        %3500 = vmatpush1.msra.mxu0 %v3493
        %3501 = vmatprep.subr.mxu0 0.0
        %3502 = vmatpush1.msra.mxu0 %v3494
        %3503 = vmatprep.subr.mxu0 0.0
        %3504 = vmatpush1.msra.mxu0 0.0
        %3505 = vmatprep.subr.mxu0 0.0
        %3506 = vmatpush1.msra.mxu0 0.0
        %3507 = vmatprep.subr.mxu0 0.0
        %3508 = vmatpush1.msra.mxu0 0.0
        %3509 = vmatprep.subr.mxu0 0.0
        %3510 = vmatpush1.msra.mxu0 0.0
        %3511 = vmatprep.subr.mxu0 0.0
        %3512 = vmatpush1.msra.mxu0 0.0
        %3513 = vmatprep.subr.mxu0 0.0
        %3514 = vmatpush1.msra.mxu0 0.0
        %3515 = vmatprep.subr.mxu0 0.0
        %3516 = vmatpush1.msra.mxu0 0.0
        %3517 = vmatprep.subr.mxu0 0.0
        %3518 = vmatpush1.msra.mxu0 0.0
        %3519 = vmatprep.subr.mxu0 0.0
        %3520 = vmatpush1.msra.mxu0 0.0
        %3521 = vmatprep.subr.mxu0 0.0
        %3522 = vmatpush1.msra.mxu0 0.0
        %3523 = vmatprep.subr.mxu0 0.0
        %3524 = vmatpush1.msra.mxu0 0.0
        %3525 = vmatprep.subr.mxu0 0.0
        %3526 = vmatpush1.msra.mxu0 0.0
        %3527 = vmatprep.subr.mxu0 0.0
        %3528 = vmatpush1.msra.mxu0 0.0
        %3529 = vmatprep.subr.mxu0 0.0
        %3530 = vmatpush1.msra.mxu0 0.0
        %3531 = vmatprep.subr.mxu0 0.0
        %3532 = vmatpush1.msra.mxu0 0.0
        %3533 = vmatprep.subr.mxu0 0.0
        %3534 = vmatpush1.msra.mxu0 0.0
        %3535 = vmatprep.subr.mxu0 0.0
        %3536 = vmatpush1.msra.mxu0 0.0
        %3537 = vmatprep.subr.mxu0 0.0
        %3538 = vmatpush1.msra.mxu0 0.0
        %3539 = vmatprep.subr.mxu0 0.0
        %3540 = vmatpush1.msra.mxu0 0.0
        %3541 = vmatprep.subr.mxu0 0.0
        %3542 = vmatpush1.msra.mxu0 0.0
        %3543 = vmatprep.subr.mxu0 0.0
        %3544 = vmatpush1.msra.mxu0 0.0
        %3545 = vmatprep.subr.mxu0 0.0
        %3546 = vmatpush1.msra.mxu0 0.0
        %3547 = vmatprep.subr.mxu0 0.0
        %3548 = vmatpush1.msra.mxu0 0.0
        %3549 = vmatprep.subr.mxu0 0.0
        %3550 = vmatpush1.msra.mxu0 0.0
        %3551 = vmatprep.subr.mxu0 0.0
        %3552 = vmatpush1.msra.mxu0 0.0
        %3553 = vmatprep.subr.mxu0 0.0
        %3554 = vmatpush1.msra.mxu0 0.0
        %3555 = vmatprep.subr.mxu0 0.0
        %3556 = vmatpush1.msra.mxu0 0.0
        %3557 = vmatprep.subr.mxu0 0.0
        %3558 = vmatpush1.msra.mxu0 0.0
        %3559 = vmatprep.mubr.f32.mxu0 0.0
        %3560 = vmatmul.mubr.f32.gmra.mrb[0].mxu0 %v3380
        %v3561 = vpop.f32.mrb[0].mxu0
        %v3562 = vadd.f32 0.0, %v3561
        %v3563 = vpop.f32.mrb[0].mxu0
        %3564 = vdwg.mxu0
        %3565 = vmatprep.subr.mxu0 0.0
        %3566 = vmatpush1.msra.mxu0 %v3475
        %3567 = vmatprep.subr.mxu0 0.0
        %3568 = vmatpush1.msra.mxu0 %v3476
        %3569 = vmatprep.subr.mxu0 0.0
        %3570 = vmatpush1.msra.mxu0 %v3477
        %3571 = vmatprep.subr.mxu0 0.0
        %3572 = vmatpush1.msra.mxu0 %v3478
        %3573 = vmatprep.subr.mxu0 0.0
        %3574 = vmatpush1.msra.mxu0 %v3479
        %3575 = vmatprep.subr.mxu0 0.0
        %3576 = vmatpush1.msra.mxu0 %v3480
        %3577 = vmatprep.subr.mxu0 0.0
        %3578 = vmatpush1.msra.mxu0 %v3481
        %3579 = vmatprep.subr.mxu0 0.0
        %3580 = vmatpush1.msra.mxu0 %v3482
        %3581 = vmatprep.subr.mxu0 0.0
        %3582 = vmatpush1.msra.mxu0 %v3483
        %3583 = vmatprep.subr.mxu0 0.0
        %3584 = vmatpush1.msra.mxu0 %v3484
        %3585 = vmatprep.subr.mxu0 0.0
        %3586 = vmatpush1.msra.mxu0 %v3485
        %3587 = vmatprep.subr.mxu0 0.0
        %3588 = vmatpush1.msra.mxu0 %v3486
        %3589 = vmatprep.subr.mxu0 0.0
        %3590 = vmatpush1.msra.mxu0 %v3487
        %3591 = vmatprep.subr.mxu0 0.0
        %3592 = vmatpush1.msra.mxu0 %v3488
        %3593 = vmatprep.subr.mxu0 0.0
        %3594 = vmatpush1.msra.mxu0 %v3489
        %3595 = vmatprep.subr.mxu0 0.0
        %3596 = vmatpush1.msra.mxu0 %v3490
        %3597 = vmatprep.subr.mxu0 0.0
        %3598 = vmatpush1.msra.mxu0 0.0
        %3599 = vmatprep.subr.mxu0 0.0
        %3600 = vmatpush1.msra.mxu0 0.0
        %3601 = vmatprep.subr.mxu0 0.0
        %3602 = vmatpush1.msra.mxu0 0.0
        %3603 = vmatprep.subr.mxu0 0.0
        %3604 = vmatpush1.msra.mxu0 0.0
        %3605 = vmatprep.subr.mxu0 0.0
        %3606 = vmatpush1.msra.mxu0 0.0
        %3607 = vmatprep.subr.mxu0 0.0
        %3608 = vmatpush1.msra.mxu0 0.0
        %3609 = vmatprep.subr.mxu0 0.0
        %3610 = vmatpush1.msra.mxu0 0.0
        %3611 = vmatprep.subr.mxu0 0.0
        %3612 = vmatpush1.msra.mxu0 0.0
        %3613 = vmatprep.subr.mxu0 0.0
        %3614 = vmatpush1.msra.mxu0 0.0
        %3615 = vmatprep.subr.mxu0 0.0
        %3616 = vmatpush1.msra.mxu0 0.0
        %3617 = vmatprep.subr.mxu0 0.0
        %3618 = vmatpush1.msra.mxu0 0.0
        %3619 = vmatprep.subr.mxu0 0.0
        %3620 = vmatpush1.msra.mxu0 0.0
        %3621 = vmatprep.subr.mxu0 0.0
        %3622 = vmatpush1.msra.mxu0 0.0
        %3623 = vmatprep.subr.mxu0 0.0
        %3624 = vmatpush1.msra.mxu0 0.0
        %3625 = vmatprep.subr.mxu0 0.0
        %3626 = vmatpush1.msra.mxu0 0.0
        %3627 = vmatprep.subr.mxu0 0.0
        %3628 = vmatpush1.msra.mxu0 0.0
        %3629 = vmatprep.mubr.f32.mxu0 0.0
        %3630 = vmatmul.mubr.f32.gmra.mrb[0].mxu0 %v3474
        %v3631 = vpop.f32.mrb[0].mxu0
        %v3632 = vadd.f32 %v3562, %v3631
        %v3633 = vpop.f32.mrb[0].mxu0
        %3634 = vdwg.mxu0
        %v3635 = vld [vmem:[%s6] sm:$0x1]
        %v3637 = vlaneseq
        %v3638 = vshrl.u32 %v3637, 7
        %v3639 = vsub.s32 0, %v3638
        %v3640 = vrot.slane %v3635, %v3639
        %v3642 = vadd.f32 %v3632, %v3640
        %v3643 = vxor.u32 %v3642, 2147483648
        %v3644 = vmul.f32 %v3643, 1.442695
        %v3645 = vpow.pop %v3644
        %v3646 = vadd.f32 %v3645, 1.0
        %v3647 = vrcp.pop %v3646
        %v3648 = vmul.f32 1.0, %v3647
        %v3649 = vtanh.pop %v3642
        %v3650 = vmul.f32 %v3648, %v3359
        %3652 = vrot.lane.b32.xlu0 %v3649, 32
        %v3653 = vpop.permute.xlu0 %3652
        %v3655 = vmul.f32 %v3648, %v3653
        %3657 = vrot.lane.b32.xlu0 %v3655, 32
        %v3658 = vpop.permute.xlu0 %3657
        %v3660 = vadd.f32 %v3650, %v3658
        %v3661 = vtanh.pop %v3660
        %3663 = vrot.lane.b32.xlu0 %v3661, 32
        %v3664 = vpop.permute.xlu0 %3663
        %v3666 = vmul.f32 %v3648, %v3664
        %v3667 = vld [vmem:[#allocation8] sm:$0xff]
        %v3668 = vld [vmem:[#allocation8 + $0x8] sm:$0xff]
        %v3669 = vld [vmem:[#allocation8 + $0x10] sm:$0xff]
        %v3670 = vld [vmem:[#allocation8 + $0x18] sm:$0xff]
        %v3671 = vld [vmem:[%s8] sm:$0x1]
        %v3673 = vlaneseq
        %v3674 = vshrl.u32 %v3673, 7
        %v3675 = vsub.s32 0, %v3674
        %v3676 = vrot.slane %v3671, %v3675
        %3679 = vrot.lane.b32.xlu0 %v3666, 64
        %v3680 = vpop.permute.xlu0 %3679
        %v3681 = vsel %vm496, %v3680, 0
        %3683 = vmatprep.subr.mxu0 0.0
        %3684 = vmatpush1.msra.mxu0 %v3667
        %3685 = vmatprep.subr.mxu0 0.0
        %3686 = vmatpush1.msra.mxu0 %v3668
        %3687 = vmatprep.subr.mxu0 0.0
        %3688 = vmatpush1.msra.mxu0 %v3669
        %3689 = vmatprep.subr.mxu0 0.0
        %3690 = vmatpush1.msra.mxu0 %v3670
        %3691 = vmatprep.subr.mxu0 0.0
        %3692 = vmatpush1.msra.mxu0 0.0
        %3693 = vmatprep.subr.mxu0 0.0
        %3694 = vmatpush1.msra.mxu0 0.0
        %3695 = vmatprep.subr.mxu0 0.0
        %3696 = vmatpush1.msra.mxu0 0.0
        %3697 = vmatprep.subr.mxu0 0.0
        %3698 = vmatpush1.msra.mxu0 0.0
        %3699 = vmatprep.subr.mxu0 0.0
        %3700 = vmatpush1.msra.mxu0 0.0
        %3701 = vmatprep.subr.mxu0 0.0
        %3702 = vmatpush1.msra.mxu0 0.0
        %3703 = vmatprep.subr.mxu0 0.0
        %3704 = vmatpush1.msra.mxu0 0.0
        %3705 = vmatprep.subr.mxu0 0.0
        %3706 = vmatpush1.msra.mxu0 0.0
        %3707 = vmatprep.subr.mxu0 0.0
        %3708 = vmatpush1.msra.mxu0 0.0
        %3709 = vmatprep.subr.mxu0 0.0
        %3710 = vmatpush1.msra.mxu0 0.0
        %3711 = vmatprep.subr.mxu0 0.0
        %3712 = vmatpush1.msra.mxu0 0.0
        %3713 = vmatprep.subr.mxu0 0.0
        %3714 = vmatpush1.msra.mxu0 0.0
        %3715 = vmatprep.subr.mxu0 0.0
        %3716 = vmatpush1.msra.mxu0 0.0
        %3717 = vmatprep.subr.mxu0 0.0
        %3718 = vmatpush1.msra.mxu0 0.0
        %3719 = vmatprep.subr.mxu0 0.0
        %3720 = vmatpush1.msra.mxu0 0.0
        %3721 = vmatprep.subr.mxu0 0.0
        %3722 = vmatpush1.msra.mxu0 0.0
        %3723 = vmatprep.subr.mxu0 0.0
        %3724 = vmatpush1.msra.mxu0 0.0
        %3725 = vmatprep.subr.mxu0 0.0
        %3726 = vmatpush1.msra.mxu0 0.0
        %3727 = vmatprep.subr.mxu0 0.0
        %3728 = vmatpush1.msra.mxu0 0.0
        %3729 = vmatprep.subr.mxu0 0.0
        %3730 = vmatpush1.msra.mxu0 0.0
        %3731 = vmatprep.subr.mxu0 0.0
        %3732 = vmatpush1.msra.mxu0 0.0
        %3733 = vmatprep.subr.mxu0 0.0
        %3734 = vmatpush1.msra.mxu0 0.0
        %3735 = vmatprep.subr.mxu0 0.0
        %3736 = vmatpush1.msra.mxu0 0.0
        %3737 = vmatprep.subr.mxu0 0.0
        %3738 = vmatpush1.msra.mxu0 0.0
        %3739 = vmatprep.subr.mxu0 0.0
        %3740 = vmatpush1.msra.mxu0 0.0
        %3741 = vmatprep.subr.mxu0 0.0
        %3742 = vmatpush1.msra.mxu0 0.0
        %3743 = vmatprep.subr.mxu0 0.0
        %3744 = vmatpush1.msra.mxu0 0.0
        %3745 = vmatprep.subr.mxu0 0.0
        %3746 = vmatpush1.msra.mxu0 0.0
        %3747 = vmatprep.mubr.f32.mxu0 0.0
        %3748 = vmatmul.mubr.f32.gmra.mrb[0].mxu0 %v3681
        %v3749 = vpop.f32.mrb[0].mxu0
        %v3750 = vadd.f32 %v3676, %v3749
        %v3751 = vpop.f32.mrb[0].mxu0
        %3752 = vdwg.mxu0
        %3753 = vmax.xlane.f32.xlu0 %v3750
        %v3754 = vpop.xlane.xlu0 %3753
        %vm3755 = vcmp.eq.f32.partialorder %v3750, %v3754
        %v3756 = vsel %vm3755, %v426, 128
        %v3757 = vand.u32 %v3756, 65535
        %v3758 = vshra.s32 %v3756, 16
        %v3759 = vcvt.s32.f32 %v3757
        %v3760 = vcvt.s32.f32 %v3758
        %3761 = vmin.xlane.f32.xlu0 %v3760
        %v3762 = vpop.xlane.xlu0 %3761
        %vm3763 = vcmp.eq.f32.partialorder %v3760, %v3762
        %v3764 = vsel %vm3763, %v3759, inf
        %3765 = vmin.xlane.f32.xlu0 %v3764
        %v3766 = vpop.xlane.xlu0 %3765
        %v3767 = vcvt.f32.s32 %v3766
        %v3768 = vcvt.f32.s32 %v3762
        %v3769 = vshll.u32 %v3768, 16
        %v3770 = vadd.s32 %v3769, %v3767
        %vm3771 = vcmask 48168
        %3772 = vst.msk [vmem:[%s424] sm:$0xff] %vm3771, %v3770
        %vm3773 = vcmp.eq.s32.totalorder %v3770, %v426
        %v3774 = vsel %vm3773, 1, 0
        %v3775 = vcvt.s32.f32 %v3774
        %v3776 = vld [vmem:[#allocation7] sm:$0xff]
        %v3777 = vld [vmem:[#allocation7 + $0x8] sm:$0xff]
        %v3778 = vld [vmem:[#allocation7 + $0x10] sm:$0xff]
        %v3779 = vld [vmem:[#allocation7 + $0x18] sm:$0xff]
        %v3780 = vld [vmem:[#allocation7 + $0x20] sm:$0xff]
        %v3781 = vld [vmem:[#allocation7 + $0x28] sm:$0xff]
        %v3782 = vld [vmem:[#allocation7 + $0x30] sm:$0xff]
        %v3783 = vld [vmem:[#allocation7 + $0x38] sm:$0xff]
        %v3784 = vld [vmem:[#allocation7 + $0x40] sm:$0xff]
        %v3785 = vld [vmem:[#allocation7 + $0x48] sm:$0xff]
        %v3786 = vld [vmem:[#allocation7 + $0x50] sm:$0xff]
        %v3787 = vld [vmem:[#allocation7 + $0x58] sm:$0xff]
        %v3788 = vld [vmem:[#allocation7 + $0x60] sm:$0xff]
        %v3789 = vld [vmem:[#allocation7 + $0x68] sm:$0xff]
        %v3790 = vld [vmem:[#allocation7 + $0x70] sm:$0xff]
        %v3791 = vld [vmem:[#allocation7 + $0x78] sm:$0xff]
        %v3792 = vld [vmem:[%s5] sm:$0xff]
        %v3793 = vld [vmem:[%s5 + $0x8] sm:$0xff]
        %v3794 = vld [vmem:[%s5 + $0x10] sm:$0xff]
        %v3795 = vld [vmem:[%s5 + $0x18] sm:$0xff]
        %3796 = vmatprep.subr.mxu0 0.0
        %3797 = vmatpush1.msra.mxu0 %v3792
        %3798 = vmatprep.subr.mxu0 0.0
        %3799 = vmatpush1.msra.mxu0 %v3793
        %3800 = vmatprep.subr.mxu0 0.0
        %3801 = vmatpush1.msra.mxu0 %v3794
        %3802 = vmatprep.subr.mxu0 0.0
        %3803 = vmatpush1.msra.mxu0 %v3795
        %3804 = vmatprep.subr.mxu0 0.0
        %3805 = vmatpush1.msra.mxu0 0.0
        %3806 = vmatprep.subr.mxu0 0.0
        %3807 = vmatpush1.msra.mxu0 0.0
        %3808 = vmatprep.subr.mxu0 0.0
        %3809 = vmatpush1.msra.mxu0 0.0
        %3810 = vmatprep.subr.mxu0 0.0
        %3811 = vmatpush1.msra.mxu0 0.0
        %3812 = vmatprep.subr.mxu0 0.0
        %3813 = vmatpush1.msra.mxu0 0.0
        %3814 = vmatprep.subr.mxu0 0.0
        %3815 = vmatpush1.msra.mxu0 0.0
        %3816 = vmatprep.subr.mxu0 0.0
        %3817 = vmatpush1.msra.mxu0 0.0
        %3818 = vmatprep.subr.mxu0 0.0
        %3819 = vmatpush1.msra.mxu0 0.0
        %3820 = vmatprep.subr.mxu0 0.0
        %3821 = vmatpush1.msra.mxu0 0.0
        %3822 = vmatprep.subr.mxu0 0.0
        %3823 = vmatpush1.msra.mxu0 0.0
        %3824 = vmatprep.subr.mxu0 0.0
        %3825 = vmatpush1.msra.mxu0 0.0
        %3826 = vmatprep.subr.mxu0 0.0
        %3827 = vmatpush1.msra.mxu0 0.0
        %3828 = vmatprep.subr.mxu0 0.0
        %3829 = vmatpush1.msra.mxu0 0.0
        %3830 = vmatprep.subr.mxu0 0.0
        %3831 = vmatpush1.msra.mxu0 0.0
        %3832 = vmatprep.subr.mxu0 0.0
        %3833 = vmatpush1.msra.mxu0 0.0
        %3834 = vmatprep.subr.mxu0 0.0
        %3835 = vmatpush1.msra.mxu0 0.0
        %3836 = vmatprep.subr.mxu0 0.0
        %3837 = vmatpush1.msra.mxu0 0.0
        %3838 = vmatprep.subr.mxu0 0.0
        %3839 = vmatpush1.msra.mxu0 0.0
        %3840 = vmatprep.subr.mxu0 0.0
        %3841 = vmatpush1.msra.mxu0 0.0
        %3842 = vmatprep.subr.mxu0 0.0
        %3843 = vmatpush1.msra.mxu0 0.0
        %3844 = vmatprep.subr.mxu0 0.0
        %3845 = vmatpush1.msra.mxu0 0.0
        %3846 = vmatprep.subr.mxu0 0.0
        %3847 = vmatpush1.msra.mxu0 0.0
        %3848 = vmatprep.subr.mxu0 0.0
        %3849 = vmatpush1.msra.mxu0 0.0
        %3850 = vmatprep.subr.mxu0 0.0
        %3851 = vmatpush1.msra.mxu0 0.0
        %3852 = vmatprep.subr.mxu0 0.0
        %3853 = vmatpush1.msra.mxu0 0.0
        %3854 = vmatprep.subr.mxu0 0.0
        %3855 = vmatpush1.msra.mxu0 0.0
        %3856 = vmatprep.subr.mxu0 0.0
        %3857 = vmatpush1.msra.mxu0 0.0
        %3858 = vmatprep.subr.mxu0 0.0
        %3859 = vmatpush1.msra.mxu0 0.0
        %3860 = vmatprep.mubr.f32.mxu0 0.0
        %3861 = vmatmul.mubr.f32.gmra.mrb[0].mxu0 %v3681
        %v3862 = vpop.f32.mrb[0].mxu0
        %v3863 = vadd.f32 0.0, %v3862
        %v3864 = vpop.f32.mrb[0].mxu0
        %3865 = vdwg.mxu0
        %3866 = vmatprep.subr.mxu0 0.0
        %3867 = vmatpush1.msra.mxu0 %v3776
        %3868 = vmatprep.subr.mxu0 0.0
        %3869 = vmatpush1.msra.mxu0 %v3777
        %3870 = vmatprep.subr.mxu0 0.0
        %3871 = vmatpush1.msra.mxu0 %v3778
        %3872 = vmatprep.subr.mxu0 0.0
        %3873 = vmatpush1.msra.mxu0 %v3779
        %3874 = vmatprep.subr.mxu0 0.0
        %3875 = vmatpush1.msra.mxu0 %v3780
        %3876 = vmatprep.subr.mxu0 0.0
        %3877 = vmatpush1.msra.mxu0 %v3781
        %3878 = vmatprep.subr.mxu0 0.0
        %3879 = vmatpush1.msra.mxu0 %v3782
        %3880 = vmatprep.subr.mxu0 0.0
        %3881 = vmatpush1.msra.mxu0 %v3783
        %3882 = vmatprep.subr.mxu0 0.0
        %3883 = vmatpush1.msra.mxu0 %v3784
        %3884 = vmatprep.subr.mxu0 0.0
        %3885 = vmatpush1.msra.mxu0 %v3785
        %3886 = vmatprep.subr.mxu0 0.0
        %3887 = vmatpush1.msra.mxu0 %v3786
        %3888 = vmatprep.subr.mxu0 0.0
        %3889 = vmatpush1.msra.mxu0 %v3787
        %3890 = vmatprep.subr.mxu0 0.0
        %3891 = vmatpush1.msra.mxu0 %v3788
        %3892 = vmatprep.subr.mxu0 0.0
        %3893 = vmatpush1.msra.mxu0 %v3789
        %3894 = vmatprep.subr.mxu0 0.0
        %3895 = vmatpush1.msra.mxu0 %v3790
        %3896 = vmatprep.subr.mxu0 0.0
        %3897 = vmatpush1.msra.mxu0 %v3791
        %3898 = vmatprep.subr.mxu0 0.0
        %3899 = vmatpush1.msra.mxu0 0.0
        %3900 = vmatprep.subr.mxu0 0.0
        %3901 = vmatpush1.msra.mxu0 0.0
        %3902 = vmatprep.subr.mxu0 0.0
        %3903 = vmatpush1.msra.mxu0 0.0
        %3904 = vmatprep.subr.mxu0 0.0
        %3905 = vmatpush1.msra.mxu0 0.0
        %3906 = vmatprep.subr.mxu0 0.0
        %3907 = vmatpush1.msra.mxu0 0.0
        %3908 = vmatprep.subr.mxu0 0.0
        %3909 = vmatpush1.msra.mxu0 0.0
        %3910 = vmatprep.subr.mxu0 0.0
        %3911 = vmatpush1.msra.mxu0 0.0
        %3912 = vmatprep.subr.mxu0 0.0
        %3913 = vmatpush1.msra.mxu0 0.0
        %3914 = vmatprep.subr.mxu0 0.0
        %3915 = vmatpush1.msra.mxu0 0.0
        %3916 = vmatprep.subr.mxu0 0.0
        %3917 = vmatpush1.msra.mxu0 0.0
        %3918 = vmatprep.subr.mxu0 0.0
        %3919 = vmatpush1.msra.mxu0 0.0
        %3920 = vmatprep.subr.mxu0 0.0
        %3921 = vmatpush1.msra.mxu0 0.0
        %3922 = vmatprep.subr.mxu0 0.0
        %3923 = vmatpush1.msra.mxu0 0.0
        %3924 = vmatprep.subr.mxu0 0.0
        %3925 = vmatpush1.msra.mxu0 0.0
        %3926 = vmatprep.subr.mxu0 0.0
        %3927 = vmatpush1.msra.mxu0 0.0
        %3928 = vmatprep.subr.mxu0 0.0
        %3929 = vmatpush1.msra.mxu0 0.0
        %3930 = vmatprep.mubr.f32.mxu0 0.0
        %3931 = vmatmul.mubr.f32.gmra.mrb[0].mxu0 %v3775
        %v3932 = vpop.f32.mrb[0].mxu0
        %v3933 = vadd.f32 %v3863, %v3932
        %v3934 = vpop.f32.mrb[0].mxu0
        %3935 = vdwg.mxu0
        %v3936 = vld [vmem:[%s6] sm:$0x1]
        %v3938 = vlaneseq
        %v3939 = vshrl.u32 %v3938, 7
        %v3940 = vsub.s32 0, %v3939
        %v3941 = vrot.slane %v3936, %v3940
        %v3943 = vadd.f32 %v3933, %v3941
        %v3944 = vxor.u32 %v3943, 2147483648
        %v3945 = vmul.f32 %v3944, 1.442695
        %v3946 = vpow.pop %v3945
        %v3947 = vadd.f32 %v3946, 1.0
        %v3948 = vrcp.pop %v3947
        %v3949 = vmul.f32 1.0, %v3948
        %v3950 = vtanh.pop %v3943
        %v3951 = vmul.f32 %v3949, %v3660
        %3953 = vrot.lane.b32.xlu0 %v3950, 32
        %v3954 = vpop.permute.xlu0 %3953
        %v3956 = vmul.f32 %v3949, %v3954
        %3958 = vrot.lane.b32.xlu0 %v3956, 32
        %v3959 = vpop.permute.xlu0 %3958
        %v3961 = vadd.f32 %v3951, %v3959
        %v3962 = vtanh.pop %v3961
        %3964 = vrot.lane.b32.xlu0 %v3962, 32
        %v3965 = vpop.permute.xlu0 %3964
        %v3967 = vmul.f32 %v3949, %v3965
        %v3968 = vld [vmem:[#allocation8] sm:$0xff]
        %v3969 = vld [vmem:[#allocation8 + $0x8] sm:$0xff]
        %v3970 = vld [vmem:[#allocation8 + $0x10] sm:$0xff]
        %v3971 = vld [vmem:[#allocation8 + $0x18] sm:$0xff]
        %v3972 = vld [vmem:[%s8] sm:$0x1]
        %v3974 = vlaneseq
        %v3975 = vshrl.u32 %v3974, 7
        %v3976 = vsub.s32 0, %v3975
        %v3977 = vrot.slane %v3972, %v3976
        %3980 = vrot.lane.b32.xlu0 %v3967, 64
        %v3981 = vpop.permute.xlu0 %3980
        %v3982 = vsel %vm496, %v3981, 0
        %3984 = vmatprep.subr.mxu0 0.0
        %3985 = vmatpush1.msra.mxu0 %v3968
        %3986 = vmatprep.subr.mxu0 0.0
        %3987 = vmatpush1.msra.mxu0 %v3969
        %3988 = vmatprep.subr.mxu0 0.0
        %3989 = vmatpush1.msra.mxu0 %v3970
        %3990 = vmatprep.subr.mxu0 0.0
        %3991 = vmatpush1.msra.mxu0 %v3971
        %3992 = vmatprep.subr.mxu0 0.0
        %3993 = vmatpush1.msra.mxu0 0.0
        %3994 = vmatprep.subr.mxu0 0.0
        %3995 = vmatpush1.msra.mxu0 0.0
        %3996 = vmatprep.subr.mxu0 0.0
        %3997 = vmatpush1.msra.mxu0 0.0
        %3998 = vmatprep.subr.mxu0 0.0
        %3999 = vmatpush1.msra.mxu0 0.0
        %4000 = vmatprep.subr.mxu0 0.0
        %4001 = vmatpush1.msra.mxu0 0.0
        %4002 = vmatprep.subr.mxu0 0.0
        %4003 = vmatpush1.msra.mxu0 0.0
        %4004 = vmatprep.subr.mxu0 0.0
        %4005 = vmatpush1.msra.mxu0 0.0
        %4006 = vmatprep.subr.mxu0 0.0
        %4007 = vmatpush1.msra.mxu0 0.0
        %4008 = vmatprep.subr.mxu0 0.0
        %4009 = vmatpush1.msra.mxu0 0.0
        %4010 = vmatprep.subr.mxu0 0.0
        %4011 = vmatpush1.msra.mxu0 0.0
        %4012 = vmatprep.subr.mxu0 0.0
        %4013 = vmatpush1.msra.mxu0 0.0
        %4014 = vmatprep.subr.mxu0 0.0
        %4015 = vmatpush1.msra.mxu0 0.0
        %4016 = vmatprep.subr.mxu0 0.0
        %4017 = vmatpush1.msra.mxu0 0.0
        %4018 = vmatprep.subr.mxu0 0.0
        %4019 = vmatpush1.msra.mxu0 0.0
        %4020 = vmatprep.subr.mxu0 0.0
        %4021 = vmatpush1.msra.mxu0 0.0
        %4022 = vmatprep.subr.mxu0 0.0
        %4023 = vmatpush1.msra.mxu0 0.0
        %4024 = vmatprep.subr.mxu0 0.0
        %4025 = vmatpush1.msra.mxu0 0.0
        %4026 = vmatprep.subr.mxu0 0.0
        %4027 = vmatpush1.msra.mxu0 0.0
        %4028 = vmatprep.subr.mxu0 0.0
        %4029 = vmatpush1.msra.mxu0 0.0
        %4030 = vmatprep.subr.mxu0 0.0
        %4031 = vmatpush1.msra.mxu0 0.0
        %4032 = vmatprep.subr.mxu0 0.0
        %4033 = vmatpush1.msra.mxu0 0.0
        %4034 = vmatprep.subr.mxu0 0.0
        %4035 = vmatpush1.msra.mxu0 0.0
        %4036 = vmatprep.subr.mxu0 0.0
        %4037 = vmatpush1.msra.mxu0 0.0
        %4038 = vmatprep.subr.mxu0 0.0
        %4039 = vmatpush1.msra.mxu0 0.0
        %4040 = vmatprep.subr.mxu0 0.0
        %4041 = vmatpush1.msra.mxu0 0.0
        %4042 = vmatprep.subr.mxu0 0.0
        %4043 = vmatpush1.msra.mxu0 0.0
        %4044 = vmatprep.subr.mxu0 0.0
        %4045 = vmatpush1.msra.mxu0 0.0
        %4046 = vmatprep.subr.mxu0 0.0
        %4047 = vmatpush1.msra.mxu0 0.0
        %4048 = vmatprep.mubr.f32.mxu0 0.0
        %4049 = vmatmul.mubr.f32.gmra.mrb[0].mxu0 %v3982
        %v4050 = vpop.f32.mrb[0].mxu0
        %v4051 = vadd.f32 %v3977, %v4050
        %v4052 = vpop.f32.mrb[0].mxu0
        %4053 = vdwg.mxu0
        %4054 = vmax.xlane.f32.xlu0 %v4051
        %v4055 = vpop.xlane.xlu0 %4054
        %vm4056 = vcmp.eq.f32.partialorder %v4051, %v4055
        %v4057 = vsel %vm4056, %v426, 128
        %v4058 = vand.u32 %v4057, 65535
        %v4059 = vshra.s32 %v4057, 16
        %v4060 = vcvt.s32.f32 %v4058
        %v4061 = vcvt.s32.f32 %v4059
        %4062 = vmin.xlane.f32.xlu0 %v4061
        %v4063 = vpop.xlane.xlu0 %4062
        %vm4064 = vcmp.eq.f32.partialorder %v4061, %v4063
        %v4065 = vsel %vm4064, %v4060, inf
        %4066 = vmin.xlane.f32.xlu0 %v4065
        %v4067 = vpop.xlane.xlu0 %4066
        %v4068 = vcvt.f32.s32 %v4067
        %v4069 = vcvt.f32.s32 %v4063
        %v4070 = vshll.u32 %v4069, 16
        %v4071 = vadd.s32 %v4070, %v4068
        %vm4072 = vcmask 56368
        %4073 = vst.msk [vmem:[%s424] sm:$0xff] %vm4072, %v4071
        %vm4074 = vcmp.eq.s32.totalorder %v4071, %v426
        %v4075 = vsel %vm4074, 1, 0
        %v4076 = vcvt.s32.f32 %v4075
        %v4077 = vld [vmem:[#allocation7] sm:$0xff]
        %v4078 = vld [vmem:[#allocation7 + $0x8] sm:$0xff]
        %v4079 = vld [vmem:[#allocation7 + $0x10] sm:$0xff]
        %v4080 = vld [vmem:[#allocation7 + $0x18] sm:$0xff]
        %v4081 = vld [vmem:[#allocation7 + $0x20] sm:$0xff]
        %v4082 = vld [vmem:[#allocation7 + $0x28] sm:$0xff]
        %v4083 = vld [vmem:[#allocation7 + $0x30] sm:$0xff]
        %v4084 = vld [vmem:[#allocation7 + $0x38] sm:$0xff]
        %v4085 = vld [vmem:[#allocation7 + $0x40] sm:$0xff]
        %v4086 = vld [vmem:[#allocation7 + $0x48] sm:$0xff]
        %v4087 = vld [vmem:[#allocation7 + $0x50] sm:$0xff]
        %v4088 = vld [vmem:[#allocation7 + $0x58] sm:$0xff]
        %v4089 = vld [vmem:[#allocation7 + $0x60] sm:$0xff]
        %v4090 = vld [vmem:[#allocation7 + $0x68] sm:$0xff]
        %v4091 = vld [vmem:[#allocation7 + $0x70] sm:$0xff]
        %v4092 = vld [vmem:[#allocation7 + $0x78] sm:$0xff]
        %v4093 = vld [vmem:[%s5] sm:$0xff]
        %v4094 = vld [vmem:[%s5 + $0x8] sm:$0xff]
        %v4095 = vld [vmem:[%s5 + $0x10] sm:$0xff]
        %v4096 = vld [vmem:[%s5 + $0x18] sm:$0xff]
        %4097 = vmatprep.subr.mxu0 0.0
        %4098 = vmatpush1.msra.mxu0 %v4093
        %4099 = vmatprep.subr.mxu0 0.0
        %4100 = vmatpush1.msra.mxu0 %v4094
        %4101 = vmatprep.subr.mxu0 0.0
        %4102 = vmatpush1.msra.mxu0 %v4095
        %4103 = vmatprep.subr.mxu0 0.0
        %4104 = vmatpush1.msra.mxu0 %v4096
        %4105 = vmatprep.subr.mxu0 0.0
        %4106 = vmatpush1.msra.mxu0 0.0
        %4107 = vmatprep.subr.mxu0 0.0
        %4108 = vmatpush1.msra.mxu0 0.0
        %4109 = vmatprep.subr.mxu0 0.0
        %4110 = vmatpush1.msra.mxu0 0.0
        %4111 = vmatprep.subr.mxu0 0.0
        %4112 = vmatpush1.msra.mxu0 0.0
        %4113 = vmatprep.subr.mxu0 0.0
        %4114 = vmatpush1.msra.mxu0 0.0
        %4115 = vmatprep.subr.mxu0 0.0
        %4116 = vmatpush1.msra.mxu0 0.0
        %4117 = vmatprep.subr.mxu0 0.0
        %4118 = vmatpush1.msra.mxu0 0.0
        %4119 = vmatprep.subr.mxu0 0.0
        %4120 = vmatpush1.msra.mxu0 0.0
        %4121 = vmatprep.subr.mxu0 0.0
        %4122 = vmatpush1.msra.mxu0 0.0
        %4123 = vmatprep.subr.mxu0 0.0
        %4124 = vmatpush1.msra.mxu0 0.0
        %4125 = vmatprep.subr.mxu0 0.0
        %4126 = vmatpush1.msra.mxu0 0.0
        %4127 = vmatprep.subr.mxu0 0.0
        %4128 = vmatpush1.msra.mxu0 0.0
        %4129 = vmatprep.subr.mxu0 0.0
        %4130 = vmatpush1.msra.mxu0 0.0
        %4131 = vmatprep.subr.mxu0 0.0
        %4132 = vmatpush1.msra.mxu0 0.0
        %4133 = vmatprep.subr.mxu0 0.0
        %4134 = vmatpush1.msra.mxu0 0.0
        %4135 = vmatprep.subr.mxu0 0.0
        %4136 = vmatpush1.msra.mxu0 0.0
        %4137 = vmatprep.subr.mxu0 0.0
        %4138 = vmatpush1.msra.mxu0 0.0
        %4139 = vmatprep.subr.mxu0 0.0
        %4140 = vmatpush1.msra.mxu0 0.0
        %4141 = vmatprep.subr.mxu0 0.0
        %4142 = vmatpush1.msra.mxu0 0.0
        %4143 = vmatprep.subr.mxu0 0.0
        %4144 = vmatpush1.msra.mxu0 0.0
        %4145 = vmatprep.subr.mxu0 0.0
        %4146 = vmatpush1.msra.mxu0 0.0
        %4147 = vmatprep.subr.mxu0 0.0
        %4148 = vmatpush1.msra.mxu0 0.0
        %4149 = vmatprep.subr.mxu0 0.0
        %4150 = vmatpush1.msra.mxu0 0.0
        %4151 = vmatprep.subr.mxu0 0.0
        %4152 = vmatpush1.msra.mxu0 0.0
        %4153 = vmatprep.subr.mxu0 0.0
        %4154 = vmatpush1.msra.mxu0 0.0
        %4155 = vmatprep.subr.mxu0 0.0
        %4156 = vmatpush1.msra.mxu0 0.0
        %4157 = vmatprep.subr.mxu0 0.0
        %4158 = vmatpush1.msra.mxu0 0.0
        %4159 = vmatprep.subr.mxu0 0.0
        %4160 = vmatpush1.msra.mxu0 0.0
        %4161 = vmatprep.mubr.f32.mxu0 0.0
        %4162 = vmatmul.mubr.f32.gmra.mrb[0].mxu0 %v3982
        %v4163 = vpop.f32.mrb[0].mxu0
        %v4164 = vadd.f32 0.0, %v4163
        %v4165 = vpop.f32.mrb[0].mxu0
        %4166 = vdwg.mxu0
        %4167 = vmatprep.subr.mxu0 0.0
        %4168 = vmatpush1.msra.mxu0 %v4077
        %4169 = vmatprep.subr.mxu0 0.0
        %4170 = vmatpush1.msra.mxu0 %v4078
        %4171 = vmatprep.subr.mxu0 0.0
        %4172 = vmatpush1.msra.mxu0 %v4079
        %4173 = vmatprep.subr.mxu0 0.0
        %4174 = vmatpush1.msra.mxu0 %v4080
        %4175 = vmatprep.subr.mxu0 0.0
        %4176 = vmatpush1.msra.mxu0 %v4081
        %4177 = vmatprep.subr.mxu0 0.0
        %4178 = vmatpush1.msra.mxu0 %v4082
        %4179 = vmatprep.subr.mxu0 0.0
        %4180 = vmatpush1.msra.mxu0 %v4083
        %4181 = vmatprep.subr.mxu0 0.0
        %4182 = vmatpush1.msra.mxu0 %v4084
        %4183 = vmatprep.subr.mxu0 0.0
        %4184 = vmatpush1.msra.mxu0 %v4085
        %4185 = vmatprep.subr.mxu0 0.0
        %4186 = vmatpush1.msra.mxu0 %v4086
        %4187 = vmatprep.subr.mxu0 0.0
        %4188 = vmatpush1.msra.mxu0 %v4087
        %4189 = vmatprep.subr.mxu0 0.0
        %4190 = vmatpush1.msra.mxu0 %v4088
        %4191 = vmatprep.subr.mxu0 0.0
        %4192 = vmatpush1.msra.mxu0 %v4089
        %4193 = vmatprep.subr.mxu0 0.0
        %4194 = vmatpush1.msra.mxu0 %v4090
        %4195 = vmatprep.subr.mxu0 0.0
        %4196 = vmatpush1.msra.mxu0 %v4091
        %4197 = vmatprep.subr.mxu0 0.0
        %4198 = vmatpush1.msra.mxu0 %v4092
        %4199 = vmatprep.subr.mxu0 0.0
        %4200 = vmatpush1.msra.mxu0 0.0
        %4201 = vmatprep.subr.mxu0 0.0
        %4202 = vmatpush1.msra.mxu0 0.0
        %4203 = vmatprep.subr.mxu0 0.0
        %4204 = vmatpush1.msra.mxu0 0.0
        %4205 = vmatprep.subr.mxu0 0.0
        %4206 = vmatpush1.msra.mxu0 0.0
        %4207 = vmatprep.subr.mxu0 0.0
        %4208 = vmatpush1.msra.mxu0 0.0
        %4209 = vmatprep.subr.mxu0 0.0
        %4210 = vmatpush1.msra.mxu0 0.0
        %4211 = vmatprep.subr.mxu0 0.0
        %4212 = vmatpush1.msra.mxu0 0.0
        %4213 = vmatprep.subr.mxu0 0.0
        %4214 = vmatpush1.msra.mxu0 0.0
        %4215 = vmatprep.subr.mxu0 0.0
        %4216 = vmatpush1.msra.mxu0 0.0
        %4217 = vmatprep.subr.mxu0 0.0
        %4218 = vmatpush1.msra.mxu0 0.0
        %4219 = vmatprep.subr.mxu0 0.0
        %4220 = vmatpush1.msra.mxu0 0.0
        %4221 = vmatprep.subr.mxu0 0.0
        %4222 = vmatpush1.msra.mxu0 0.0
        %4223 = vmatprep.subr.mxu0 0.0
        %4224 = vmatpush1.msra.mxu0 0.0
        %4225 = vmatprep.subr.mxu0 0.0
        %4226 = vmatpush1.msra.mxu0 0.0
        %4227 = vmatprep.subr.mxu0 0.0
        %4228 = vmatpush1.msra.mxu0 0.0
        %4229 = vmatprep.subr.mxu0 0.0
        %4230 = vmatpush1.msra.mxu0 0.0
        %4231 = vmatprep.mubr.f32.mxu0 0.0
        %4232 = vmatmul.mubr.f32.gmra.mrb[0].mxu0 %v4076
        %v4233 = vpop.f32.mrb[0].mxu0
        %v4234 = vadd.f32 %v4164, %v4233
        %v4235 = vpop.f32.mrb[0].mxu0
        %4236 = vdwg.mxu0
        %v4237 = vld [vmem:[%s6] sm:$0x1]
        %v4239 = vlaneseq
        %v4240 = vshrl.u32 %v4239, 7
        %v4241 = vsub.s32 0, %v4240
        %v4242 = vrot.slane %v4237, %v4241
        %v4244 = vadd.f32 %v4234, %v4242
        %v4245 = vxor.u32 %v4244, 2147483648
        %v4246 = vmul.f32 %v4245, 1.442695
        %v4247 = vpow.pop %v4246
        %v4248 = vadd.f32 %v4247, 1.0
        %v4249 = vrcp.pop %v4248
        %v4250 = vmul.f32 1.0, %v4249
        %v4251 = vtanh.pop %v4244
        %v4252 = vmul.f32 %v4250, %v3961
        %4254 = vrot.lane.b32.xlu0 %v4251, 32
        %v4255 = vpop.permute.xlu0 %4254
        %v4257 = vmul.f32 %v4250, %v4255
        %4259 = vrot.lane.b32.xlu0 %v4257, 32
        %v4260 = vpop.permute.xlu0 %4259
        %v4262 = vadd.f32 %v4252, %v4260
        %v4263 = vtanh.pop %v4262
        %4265 = vrot.lane.b32.xlu0 %v4263, 32
        %v4266 = vpop.permute.xlu0 %4265
        %v4268 = vmul.f32 %v4250, %v4266
        %v4269 = vld [vmem:[#allocation8] sm:$0xff]
        %v4270 = vld [vmem:[#allocation8 + $0x8] sm:$0xff]
        %v4271 = vld [vmem:[#allocation8 + $0x10] sm:$0xff]
        %v4272 = vld [vmem:[#allocation8 + $0x18] sm:$0xff]
        %v4273 = vld [vmem:[%s8] sm:$0x1]
        %v4275 = vlaneseq
        %v4276 = vshrl.u32 %v4275, 7
        %v4277 = vsub.s32 0, %v4276
        %v4278 = vrot.slane %v4273, %v4277
        %4281 = vrot.lane.b32.xlu0 %v4268, 64
        %v4282 = vpop.permute.xlu0 %4281
        %v4283 = vsel %vm496, %v4282, 0
        %4285 = vmatprep.subr.mxu0 0.0
        %4286 = vmatpush1.msra.mxu0 %v4269
        %4287 = vmatprep.subr.mxu0 0.0
        %4288 = vmatpush1.msra.mxu0 %v4270
        %4289 = vmatprep.subr.mxu0 0.0
        %4290 = vmatpush1.msra.mxu0 %v4271
        %4291 = vmatprep.subr.mxu0 0.0
        %4292 = vmatpush1.msra.mxu0 %v4272
        %4293 = vmatprep.subr.mxu0 0.0
        %4294 = vmatpush1.msra.mxu0 0.0
        %4295 = vmatprep.subr.mxu0 0.0
        %4296 = vmatpush1.msra.mxu0 0.0
        %4297 = vmatprep.subr.mxu0 0.0
        %4298 = vmatpush1.msra.mxu0 0.0
        %4299 = vmatprep.subr.mxu0 0.0
        %4300 = vmatpush1.msra.mxu0 0.0
        %4301 = vmatprep.subr.mxu0 0.0
        %4302 = vmatpush1.msra.mxu0 0.0
        %4303 = vmatprep.subr.mxu0 0.0
        %4304 = vmatpush1.msra.mxu0 0.0
        %4305 = vmatprep.subr.mxu0 0.0
        %4306 = vmatpush1.msra.mxu0 0.0
        %4307 = vmatprep.subr.mxu0 0.0
        %4308 = vmatpush1.msra.mxu0 0.0
        %4309 = vmatprep.subr.mxu0 0.0
        %4310 = vmatpush1.msra.mxu0 0.0
        %4311 = vmatprep.subr.mxu0 0.0
        %4312 = vmatpush1.msra.mxu0 0.0
        %4313 = vmatprep.subr.mxu0 0.0
        %4314 = vmatpush1.msra.mxu0 0.0
        %4315 = vmatprep.subr.mxu0 0.0
        %4316 = vmatpush1.msra.mxu0 0.0
        %4317 = vmatprep.subr.mxu0 0.0
        %4318 = vmatpush1.msra.mxu0 0.0
        %4319 = vmatprep.subr.mxu0 0.0
        %4320 = vmatpush1.msra.mxu0 0.0
        %4321 = vmatprep.subr.mxu0 0.0
        %4322 = vmatpush1.msra.mxu0 0.0
        %4323 = vmatprep.subr.mxu0 0.0
        %4324 = vmatpush1.msra.mxu0 0.0
        %4325 = vmatprep.subr.mxu0 0.0
        %4326 = vmatpush1.msra.mxu0 0.0
        %4327 = vmatprep.subr.mxu0 0.0
        %4328 = vmatpush1.msra.mxu0 0.0
        %4329 = vmatprep.subr.mxu0 0.0
        %4330 = vmatpush1.msra.mxu0 0.0
        %4331 = vmatprep.subr.mxu0 0.0
        %4332 = vmatpush1.msra.mxu0 0.0
        %4333 = vmatprep.subr.mxu0 0.0
        %4334 = vmatpush1.msra.mxu0 0.0
        %4335 = vmatprep.subr.mxu0 0.0
        %4336 = vmatpush1.msra.mxu0 0.0
        %4337 = vmatprep.subr.mxu0 0.0
        %4338 = vmatpush1.msra.mxu0 0.0
        %4339 = vmatprep.subr.mxu0 0.0
        %4340 = vmatpush1.msra.mxu0 0.0
        %4341 = vmatprep.subr.mxu0 0.0
        %4342 = vmatpush1.msra.mxu0 0.0
        %4343 = vmatprep.subr.mxu0 0.0
        %4344 = vmatpush1.msra.mxu0 0.0
        %4345 = vmatprep.subr.mxu0 0.0
        %4346 = vmatpush1.msra.mxu0 0.0
        %4347 = vmatprep.subr.mxu0 0.0
        %4348 = vmatpush1.msra.mxu0 0.0
        %4349 = vmatprep.mubr.f32.mxu0 0.0
        %4350 = vmatmul.mubr.f32.gmra.mrb[0].mxu0 %v4283
        %v4351 = vpop.f32.mrb[0].mxu0
        %v4352 = vadd.f32 %v4278, %v4351
        %v4353 = vpop.f32.mrb[0].mxu0
        %4354 = vdwg.mxu0
        %4355 = vmax.xlane.f32.xlu0 %v4352
        %v4356 = vpop.xlane.xlu0 %4355
        %vm4357 = vcmp.eq.f32.partialorder %v4352, %v4356
        %v4358 = vsel %vm4357, %v426, 128
        %v4359 = vand.u32 %v4358, 65535
        %v4360 = vshra.s32 %v4358, 16
        %v4361 = vcvt.s32.f32 %v4359
        %v4362 = vcvt.s32.f32 %v4360
        %4363 = vmin.xlane.f32.xlu0 %v4362
        %v4364 = vpop.xlane.xlu0 %4363
        %vm4365 = vcmp.eq.f32.partialorder %v4362, %v4364
        %v4366 = vsel %vm4365, %v4361, inf
        %4367 = vmin.xlane.f32.xlu0 %v4366
        %v4368 = vpop.xlane.xlu0 %4367
        %v4369 = vcvt.f32.s32 %v4368
        %v4370 = vcvt.f32.s32 %v4364
        %v4371 = vshll.u32 %v4370, 16
        %v4372 = vadd.s32 %v4371, %v4369
        %vm4373 = vcmask 64568
        %4374 = vst.msk [vmem:[%s424] sm:$0xff] %vm4373, %v4372
        %s4375 = sand.u32 %s230, 1
        %s4376 = scalar_lea.sflag [#allocation4], %s4375
        %s4377 = sand.u32 %s230, 1
        %s4378 = smul.addr %s4377, 64
        %s4379 = scalar_lea.vmem [#allocation10], %s4378
        %p4380 = scmp.lt.s32.totalorder %s28, 1
        %s4381 = scalar_select %p4380, %s28, 1
        %s4382 = smul.addr %s4381, 8
        %s4383 = scalar_lea.vmem %s10, %s4382
        // Predicated region
        $region73: #{tpu_custom_call.1} parent=55 // pred_check
          %p4384 = pneg %p240
        $region74: #{tpu_custom_call.1} parent=55 // pred_check_branch
          %4386 = sbr.rel (%p4384) target = $region76
        $region75: #{tpu_custom_call.1} parent=55 // pred_region
          %s4388 = ssub.s32 1024, 1024
          %4389 = vsyncadd %s4376, %s4388
          %s4390 = smul.addr %s28, 128
          %s4391 = scalar_lea.hbm %s9, %s4390
          %s4392 = sshll.u32 %s4379, 4
          %s4393 = int_to_ptr.vmem [resolvable:$true] %s4392
          %4398 = dma.vmem_to_hbm [thread:$0]  %s4393, 1024, %s4391, %s4376, 128, 256, 8
        $region76: #{tpu_custom_call.1} parent=55 // pred_fallthru
          _
        // Predicated region
        $region77: #{tpu_custom_call.1} parent=55 // pred_check
          %p4399 = pneg %p266
        $region78: #{tpu_custom_call.1} parent=55 // pred_check_branch
          %4401 = sbr.rel (%p4399) target = $region80
        $region79: #{tpu_custom_call.1} parent=55 // pred_region
          _
        $region80: #{tpu_custom_call.1} parent=55 // pred_fallthru
          _
      $region56: #{tpu_custom_call.1} parent=5 // pred_fallthru
        _
      %p4402 = scmp.le.s32.totalorder 2, %s23
      // Predicated region
      $region81: #{tpu_custom_call.1} parent=5 // pred_check
        %p4403 = pneg %p4402
      $region82: #{tpu_custom_call.1} parent=5 // pred_check_branch
        %4405 = sbr.rel (%p4403) target = $region84
      $region83: #{tpu_custom_call.1} parent=5 // pred_region
        %s4406 = ssub.s32 %s23, 2
        // Predicated region
        $region85: #{tpu_custom_call.1} parent=83 // pred_check
          %p4407 = pneg %p246
        $region86: #{tpu_custom_call.1} parent=83 // pred_check_branch
          %4409 = sbr.rel (%p4407) target = $region88
        $region87: #{tpu_custom_call.1} parent=83 // pred_region
          %s4410 = sand.u32 %s231, 1
          %s4411 = scalar_lea.sflag [#allocation4], %s4410
          %s4412 = sand.u32 %s231, 1
          %s4413 = smul.addr %s4412, 64
          %s4414 = scalar_lea.vmem [#allocation10], %s4413
          %4415 = dma.done %s4411, 1024
        $region88: #{tpu_custom_call.1} parent=83 // pred_fallthru
          _
        // Predicated region
        $region89: #{tpu_custom_call.1} parent=83 // pred_check
          %p4416 = pneg %p272
        $region90: #{tpu_custom_call.1} parent=83 // pred_check_branch
          %4418 = sbr.rel (%p4416) target = $region92
        $region91: #{tpu_custom_call.1} parent=83 // pred_region
          %p4419 = scmp.lt.s32.totalorder %s29, 1
          %s4420 = scalar_select %p4419, %s29, 1
          %s4421 = smul.addr %s4420, 8
          %s4422 = scalar_lea.vmem %s10, %s4421
        $region92: #{tpu_custom_call.1} parent=83 // pred_fallthru
          _
      $region84: #{tpu_custom_call.1} parent=5 // pred_fallthru
        _
    $region6: #{tpu_custom_call.1} parent=1 // loop_footer
      %s27 = sadd.s32 1, %s23
    $region7: #{tpu_custom_call.1} parent=1 // loop_footer_branch
      %22 = sbr.rel target = $region3
    $region8: #{tpu_custom_call.1} parent=1 // loop_exit
      _
    %4423 = vsyncpa [#allocation3], 1
    %s4424 = scalar_lea.sflag [#allocation3], 1
    %4425 = vsyncpa %s4424, 1
    %4426 = vsyncpa [#allocation6], 1
    %4427 = vsyncpa [#allocation9], 1
    %4428 = vsyncpa [#allocation4], 1
    %s4429 = scalar_lea.sflag [#allocation4], 1
    %4430 = vsyncpa %s4429, 1

</llo_original>
